<compile_context>
chip_gen: v6e
topology: v6e:2x2x1
jax: 0.10.0
libtpu: 0.0.40
codegen_flags: <defaults>
</compile_context>

<pallas_src>
import jax
import jax.numpy as jnp
import numpy as np
from jax import lax
from jax.experimental import pallas as pl
from jax.experimental.pallas import tpu as pltpu


# -----------------------------------------------------------------------------
# Fused all-layers + fc kernel.  One grid step == one decoder layer.
# -----------------------------------------------------------------------------
def _make_fused_decoder_kernel(B, T, E, H, Dh, has_mask, eps=1e-5):
    scale = 1.0 / float(np.sqrt(Dh))

    def layer_norm(v, g, b):
        mu = jnp.mean(v, axis=-1, keepdims=True)
        var = jnp.mean((v - mu) ** 2, axis=-1, keepdims=True)
        return (v - mu) * lax.rsqrt(var + eps) * g + b

    def body(x0_ref, mem_ref, mask,
             wqkv_s_ref, bqkv_s_ref, woT_s_ref, bo_s_ref,
             wv_c_ref, bv_c_ref, woT_c_ref, bo_c_ref,
             g1_ref, be1_ref, g2_ref, be2_ref, g3_ref, be3_ref,
             w1_ref, bf1_ref, w2_ref, bf2_ref,
             fc_wT_ref, fc_b_ref,
             out_ref, x_scr):
        l = pl.program_id(0)

        @pl.when(l == 0)
        def _():
            x_scr[...] = x0_ref[...]

        x = x_scr[...]          # (B*T, E) carried activations
        mem = mem_ref[...]      # (B, E)   memory (single token per batch elem)

        # ---- self-attention: one fused QKV matmul, tiny per-(b,h) softmax ----
        qkv = (jnp.dot(x, wqkv_s_ref[0], preferred_element_type=jnp.float32)
               + bqkv_s_ref[0])                                   # (B*T, 3E)
        o_heads = []
        for h in range(H):                      # static unroll (H small)
            blocks = []
            for b in range(B):                  # static unroll (B small)
                r0 = b * T
                q_bh = qkv[r0:r0 + T, h * Dh:(h + 1) * Dh]
                k_bh = qkv[r0:r0 + T, E + h * Dh:E + (h + 1) * Dh]
                v_bh = qkv[r0:r0 + T, 2 * E + h * Dh:2 * E + (h + 1) * Dh]
                s = lax.dot_general(q_bh, k_bh, (((1,), (1,)), ((), ())),
                                    preferred_element_type=jnp.float32) * scale
                if mask is not None:
                    s = s + mask[b:b + 1, :]    # (1, T) key-padding bias
                m = jnp.max(s, axis=-1, keepdims=True)
                p = jnp.exp(s - m)
                p = p * pl.reciprocal(jnp.sum(p, axis=-1, keepdims=True),
                                      approx=True)
                blocks.append(jnp.dot(p, v_bh,
                                      preferred_element_type=jnp.float32))
            o_heads.append(jnp.concatenate(blocks, axis=0) if B > 1
                           else blocks[0])                        # (B*T, Dh)
        o = jnp.concatenate(o_heads, axis=1) if H > 1 else o_heads[0]  # (B*T, E)
        sa = (jnp.dot(o, woT_s_ref[0], preferred_element_type=jnp.float32)
              + bo_s_ref[0])
        x1 = layer_norm(x + sa, g1_ref[0], be1_ref[0])

        # ---- cross-attention over the single memory token (softmax == 1) ----
        v_rows = (jnp.dot(mem, wv_c_ref[0], preferred_element_type=jnp.float32)
                  + bv_c_ref[0])                                  # (B, E)
        ca_rows = (jnp.dot(v_rows, woT_c_ref[0],
                           preferred_element_type=jnp.float32)
                   + bo_c_ref[0])                                 # (B, E)
        if B > 1:
            ca = jnp.concatenate(
                [jnp.broadcast_to(ca_rows[b:b + 1, :], (T, E)) for b in range(B)],
                axis=0)
        else:
            ca = jnp.broadcast_to(ca_rows, (T, E))
        x2 = layer_norm(x1 + ca, g2_ref[0], be2_ref[0])

        # ---- feed-forward (Linear -> ReLU -> Linear), lane-dense weights ----
        h1 = (jnp.dot(x2, w1_ref[0], preferred_element_type=jnp.float32)
              + bf1_ref[0])
        h1 = jnp.maximum(h1, 0.0)
        y = lax.dot_general(h1, w2_ref[0], (((1,), (1,)), ((), ())),
                            preferred_element_type=jnp.float32) + bf2_ref[0]
        x3 = layer_norm(x2 + y, g3_ref[0], be3_ref[0])

        x_scr[...] = x3

        # ---- final vocab projection, fused into the last grid step ----
        @pl.when(l == pl.num_programs(0) - 1)
        def _():
            out_ref[...] = (jnp.dot(x3, fc_wT_ref[...],
                                    preferred_element_type=jnp.float32)
                            + fc_b_ref[...])

    if has_mask:
        def kernel(x0_ref, mem_ref, mask_ref, *rest):
            body(x0_ref, mem_ref, mask_ref[...], *rest)
    else:
        def kernel(x0_ref, mem_ref, *rest):
            body(x0_ref, mem_ref, None, *rest)
    return kernel


_STACKED_NAMES = ["wqkv_s", "bqkv_s", "woT_s", "bo_s",
                  "wv_c", "bv_c", "woT_c", "bo_c",
                  "g1", "be1", "g2", "be2", "g3", "be3",
                  "w1", "bf1", "w2", "bf2"]


def fused_decoder_pallas(x0, mem2d, mask_add, stacked, fc_wT, fc_b,
                         *, B, T, E, H, Dh, V, has_mask):
    L = stacked["wqkv_s"].shape[0]
    BT = B * T
    kernel = _make_fused_decoder_kernel(B, T, E, H, Dh, has_mask)

    def layer_spec(arr):
        nd = arr.ndim
        return pl.BlockSpec((1,) + tuple(arr.shape[1:]),
                            lambda l, nd=nd: (l,) + (0,) * (nd - 1))

    def full_spec(arr):
        nd = arr.ndim
        return pl.BlockSpec(arr.shape, lambda l, nd=nd: (0,) * nd)

    wlist = [stacked[n] for n in _STACKED_NAMES]
    inputs = [x0, mem2d] + ([mask_add] if has_mask else []) + wlist + [fc_wT, fc_b]
    in_specs = ([full_spec(x0), full_spec(mem2d)]
                + ([full_spec(mask_add)] if has_mask else [])
                + [layer_spec(w) for w in wlist]
                + [full_spec(fc_wT), full_spec(fc_b)])

    return pl.pallas_call(
        kernel,
        out_shape=jax.ShapeDtypeStruct((BT, V), jnp.float32),
        grid=(L,),
        in_specs=in_specs,
        out_specs=pl.BlockSpec((BT, V), lambda l: (0, 0)),
        scratch_shapes=[pltpu.VMEM((BT, E), jnp.float32)],
        compiler_params=pltpu.CompilerParams(
            dimension_semantics=("arbitrary",)),  # layer axis carries state
    )(*inputs)


# -----------------------------------------------------------------------------
# Parameter init (deterministic, synthetic).  Per-head layouts correspond to
# PyTorch's in_proj_weight (3E,E) reshaped to (3,H,Dh,E) and out_proj.weight.T
# reshaped to (H,Dh,E).  FFN weights stored lane-dense: w1 as [E, F] (= W1.T),
# w2 as [E, F] (= W2, contracted trans-B).
# -----------------------------------------------------------------------------
def init_params(key, embed_size, num_heads, num_layers, vocab_size, max_len, dim_ff):
    E, H = embed_size, num_heads
    Dh = E // H
    keys = jax.random.split(key, 4 + num_layers)

    def w(k, shape, s=0.05):
        return (s * jax.random.normal(k, shape)).astype(jnp.float32)

    params = {
        "embedding": w(keys[0], (vocab_size, E), 0.02),
        "pos": w(keys[1], (1, max_len, E), 0.02),
        "fc_wT": w(keys[2], (E, vocab_size), 0.05),
        "fc_b": w(keys[3], (1, vocab_size), 0.01),
        "layers": [],
    }
    for l in range(num_layers):
        lk = jax.random.split(keys[4 + l], 12)
        lp = {
            "wqkv_s": w(lk[0], (3, H, Dh, E)),
            "bqkv_s": w(lk[1], (3, H, 1, Dh), 0.01),
            "woT_s": w(lk[2], (H, Dh, E)),
            "bo_s": w(lk[3], (1, E), 0.01),
            "wqkv_c": w(lk[4], (3, H, Dh, E)),
            "bqkv_c": w(lk[5], (3, H, 1, Dh), 0.01),
            "woT_c": w(lk[6], (H, Dh, E)),
            "bo_c": w(lk[7], (1, E), 0.01),
            "g1": jnp.ones((1, E), jnp.float32),
            "be1": jnp.zeros((1, E), jnp.float32),
            "g2": jnp.ones((1, E), jnp.float32),
            "be2": jnp.zeros((1, E), jnp.float32),
            "g3": jnp.ones((1, E), jnp.float32),
            "be3": jnp.zeros((1, E), jnp.float32),
            "w1": w(lk[8], (E, dim_ff)),        # lane-dense [in=E, out=F]
            "bf1": w(lk[9], (1, dim_ff), 0.01),
            "w2": w(lk[10], (E, dim_ff)),       # lane-dense [out=E, in=F]
            "bf2": w(lk[11], (1, E), 0.01),
        }
        params["layers"].append(lp)
    return params


def _prepare_fused_weights(params):
    """Stack per-layer weights on a leading layer axis in kernel layouts."""
    acc = {n: [] for n in _STACKED_NAMES}
    for lp in params["layers"]:
        _, H, Dh, E = lp["wqkv_s"].shape
        acc["wqkv_s"].append(lp["wqkv_s"].reshape(3 * E, E).T)     # (E, 3E)
        acc["bqkv_s"].append(lp["bqkv_s"].reshape(1, 3 * E))       # (1, 3E)
        acc["woT_s"].append(lp["woT_s"].reshape(E, E))             # (E, E)
        acc["bo_s"].append(lp["bo_s"])
        acc["wv_c"].append(lp["wqkv_c"][2].reshape(E, E).T)        # (E, E)
        acc["bv_c"].append(lp["bqkv_c"][2].reshape(1, E))          # (1, E)
        acc["woT_c"].append(lp["woT_c"].reshape(E, E))             # (E, E)
        acc["bo_c"].append(lp["bo_c"])
        for n in ["g1", "be1", "g2", "be2", "g3", "be3",
                  "w1", "bf1", "w2", "bf2"]:
            acc[n].append(lp[n])
    return {n: jnp.stack(v, axis=0) for n, v in acc.items()}


# -----------------------------------------------------------------------------
# Forward pass (embedding gather in JAX, everything else in one Pallas call)
# -----------------------------------------------------------------------------
def transformer_decoder_forward(params, features, captions, padding_mask=None):
    # features: (B, E) float32 ; captions: (B, T) int32
    B, T = captions.shape
    E = params["embedding"].shape[1]
    V = params["fc_wT"].shape[1]
    H = params["layers"][0]["wqkv_s"].shape[1]
    Dh = params["layers"][0]["wqkv_s"].shape[2]

    # TODO(synk): embedding gather stays in the JAX wrapper (data-dependent
    # gather; not worth a Pallas kernel at this size).
    emb = jnp.take(params["embedding"], captions, axis=0) + params["pos"][:, :T, :]
    x0 = emb.reshape(B * T, E).astype(jnp.float32)
    mem2d = features.astype(jnp.float32)                       # (B, E)

    has_mask = padding_mask is not None
    mask_add = (jnp.where(padding_mask, -1e9, 0.0).astype(jnp.float32)
                if has_mask else None)                         # (B, T)

    stacked = _prepare_fused_weights(params)
    logits = fused_decoder_pallas(x0, mem2d, mask_add, stacked,
                                  params["fc_wT"], params["fc_b"],
                                  B=B, T=T, E=E, H=H, Dh=Dh, V=V,
                                  has_mask=has_mask)
    return logits.reshape(B, T, V)


# -----------------------------------------------------------------------------
# Pure-JAX reference (full MHA formula, incl. the "dead" cross q/k projections)
# -----------------------------------------------------------------------------
def _ref_layer(x, mem, mask_add, p, eps=1e-5):
    Dh = p["wqkv_s"].shape[2]

    def ln(v, g, b):
        mu = v.mean(-1, keepdims=True)
        var = ((v - mu) ** 2).mean(-1, keepdims=True)
        return (v - mu) / jnp.sqrt(var + eps) * g + b

    def mha(q_in, kv_in, wqkv, bqkv, woT, bo, add_mask):
        q = jnp.einsum("bte,hde->bhtd", q_in, wqkv[0]) + bqkv[0][None]
        k = jnp.einsum("bte,hde->bhtd", kv_in, wqkv[1]) + bqkv[1][None]
        v = jnp.einsum("bte,hde->bhtd", kv_in, wqkv[2]) + bqkv[2][None]
        s = jnp.einsum("bhqd,bhkd->bhqk", q, k) / jnp.sqrt(jnp.float32(Dh))
        if add_mask is not None:
            s = s + add_mask[:, None, None, :]
        a = jax.nn.softmax(s, axis=-1)
        o = jnp.einsum("bhqk,bhkd->bhqd", a, v)
        return jnp.einsum("bhqd,hde->bqe", o, woT) + bo[None]

    sa = mha(x, x, p["wqkv_s"], p["bqkv_s"], p["woT_s"], p["bo_s"], mask_add)
    x1 = ln(x + sa, p["g1"], p["be1"])
    ca = mha(x1, mem, p["wqkv_c"], p["bqkv_c"], p["woT_c"], p["bo_c"], None)
    x2 = ln(x1 + ca, p["g2"], p["be2"])
    h = jax.nn.relu(x2 @ p["w1"] + p["bf1"])
    y = jnp.einsum("btf,ef->bte", h, p["w2"]) + p["bf2"]
    return ln(x2 + y, p["g3"], p["be3"])


def reference_forward(params, features, captions, padding_mask=None):
    B, T = captions.shape
    emb = jnp.take(params["embedding"], captions, axis=0) + params["pos"][:, :T, :]
    mem = features[:, None, :].astype(jnp.float32)
    mask_add = (jnp.where(padding_mask, -1e9, 0.0).astype(jnp.float32)
                if padding_mask is not None else None)
    x = emb.astype(jnp.float32)
    for lp in params["layers"]:
        x = _ref_layer(x, mem, mask_add, lp)
    return x @ params["fc_wT"] + params["fc_b"][None]


if __name__ == "__main__":
    embed_size, num_heads, num_layers = 32, 4, 2
    vocab_size, max_len = 64, 16
    dim_ff = 2048  # PyTorch nn.TransformerDecoderLayer default dim_feedforward
    B, T = 2, 8

    key = jax.random.PRNGKey(0)
    kp, kf, kc = jax.random.split(key, 3)
    params = init_params(kp, embed_size, num_heads, num_layers,
                         vocab_size, max_len, dim_ff)
    features = jax.random.normal(kf, (B, embed_size), jnp.float32)
    captions = jax.random.randint(kc, (B, T), 0, vocab_size, dtype=jnp.int32)

    # no-mask path
    logits = transformer_decoder_forward(params, features, captions, padding_mask=None)
    logits = jax.block_until_ready(logits)
    ref = reference_forward(params, features, captions, None)
    err = float(jnp.max(jnp.abs(logits - ref)))
    assert logits.shape == (B, T, vocab_size), logits.shape
    assert err < 5e-3, f"max abs err vs reference (no mask): {err}"

    # key-padding-mask path
    padding_mask = jnp.zeros((B, T), jnp.bool_).at[0, T - 2:].set(True)
    logits_m = transformer_decoder_forward(params, features, captions, padding_mask)
    logits_m = jax.block_until_ready(logits_m)
    ref_m = reference_forward(params, features, captions, padding_mask)
    err_m = float(jnp.max(jnp.abs(logits_m - ref_m)))
    assert err_m < 5e-3, f"max abs err vs reference (masked): {err_m}"

    print("KERNEL_OK")
</pallas_src>

<mosaic_0001>
module attributes {stable_mosaic.version = 11 : i64} {
  func.func @kernel(%arg0: i32, %arg1: memref<16x32xf32, #tpu.memory_space<vmem>>, %arg2: memref<2x32xf32, #tpu.memory_space<vmem>>, %arg3: memref<1x32x96xf32, #tpu.memory_space<vmem>>, %arg4: memref<1x1x96xf32, #tpu.memory_space<vmem>>, %arg5: memref<1x32x32xf32, #tpu.memory_space<vmem>>, %arg6: memref<1x1x32xf32, #tpu.memory_space<vmem>>, %arg7: memref<1x32x32xf32, #tpu.memory_space<vmem>>, %arg8: memref<1x1x32xf32, #tpu.memory_space<vmem>>, %arg9: memref<1x32x32xf32, #tpu.memory_space<vmem>>, %arg10: memref<1x1x32xf32, #tpu.memory_space<vmem>>, %arg11: memref<1x1x32xf32, #tpu.memory_space<vmem>>, %arg12: memref<1x1x32xf32, #tpu.memory_space<vmem>>, %arg13: memref<1x1x32xf32, #tpu.memory_space<vmem>>, %arg14: memref<1x1x32xf32, #tpu.memory_space<vmem>>, %arg15: memref<1x1x32xf32, #tpu.memory_space<vmem>>, %arg16: memref<1x1x32xf32, #tpu.memory_space<vmem>>, %arg17: memref<1x32x2048xf32, #tpu.memory_space<vmem>>, %arg18: memref<1x1x2048xf32, #tpu.memory_space<vmem>>, %arg19: memref<1x32x2048xf32, #tpu.memory_space<vmem>>, %arg20: memref<1x1x32xf32, #tpu.memory_space<vmem>>, %arg21: memref<32x64xf32, #tpu.memory_space<vmem>>, %arg22: memref<1x64xf32, #tpu.memory_space<vmem>>, %arg23: memref<16x64xf32, #tpu.memory_space<vmem>>, %arg24: memref<16x32xf32, #tpu.memory_space<vmem>>) attributes {dimension_semantics = [#tpu.dimension_semantics<arbitrary>], iteration_bounds = array<i64: 2>, scalar_prefetch = 0 : i64, scratch_operands = 1 : i64, tpu.core_type = #tpu.core_type<tc>, window_params = [{pipeline_mode = #tpu.pipeline_mode<synchronous>, transform_indices = @transform_0, window_bounds = array<i64: 16, 32>}, {pipeline_mode = #tpu.pipeline_mode<synchronous>, transform_indices = @transform_1, window_bounds = array<i64: 2, 32>}, {transform_indices = @transform_2, window_bounds = array<i64: 1, 32, 96>}, {transform_indices = @transform_3, window_bounds = array<i64: 1, 1, 96>}, {transform_indices = @transform_4, window_bounds = array<i64: 1, 32, 32>}, {transform_indices = @transform_5, window_bounds = array<i64: 1, 1, 32>}, {transform_indices = @transform_6, window_bounds = array<i64: 1, 32, 32>}, {transform_indices = @transform_7, window_bounds = array<i64: 1, 1, 32>}, {transform_indices = @transform_8, window_bounds = array<i64: 1, 32, 32>}, {transform_indices = @transform_9, window_bounds = array<i64: 1, 1, 32>}, {transform_indices = @transform_10, window_bounds = array<i64: 1, 1, 32>}, {transform_indices = @transform_11, window_bounds = array<i64: 1, 1, 32>}, {transform_indices = @transform_12, window_bounds = array<i64: 1, 1, 32>}, {transform_indices = @transform_13, window_bounds = array<i64: 1, 1, 32>}, {transform_indices = @transform_14, window_bounds = array<i64: 1, 1, 32>}, {transform_indices = @transform_15, window_bounds = array<i64: 1, 1, 32>}, {transform_indices = @transform_16, window_bounds = array<i64: 1, 32, 2048>}, {transform_indices = @transform_17, window_bounds = array<i64: 1, 1, 2048>}, {transform_indices = @transform_18, window_bounds = array<i64: 1, 32, 2048>}, {transform_indices = @transform_19, window_bounds = array<i64: 1, 1, 32>}, {pipeline_mode = #tpu.pipeline_mode<synchronous>, transform_indices = @transform_20, window_bounds = array<i64: 32, 64>}, {pipeline_mode = #tpu.pipeline_mode<synchronous>, transform_indices = @transform_21, window_bounds = array<i64: 1, 64>}, {pipeline_mode = #tpu.pipeline_mode<synchronous>, transform_indices = @transform_22, window_bounds = array<i64: 16, 64>}]} {
    %c0_i32 = arith.constant 0 : i32
    %0 = arith.cmpi eq, %arg0, %c0_i32 : i32
    %1 = arith.extui %0 : i1 to i32
    %c0_i32_0 = arith.constant 0 : i32
    %2 = arith.cmpi ne, %1, %c0_i32_0 : i32
    scf.if %2 {
      %c0_122 = arith.constant 0 : index
      %c0_123 = arith.constant 0 : index
      %282 = vector.load %arg1[%c0_122, %c0_123] : memref<16x32xf32, #tpu.memory_space<vmem>>, vector<16x32xf32>
      %c0_124 = arith.constant 0 : index
      %c0_125 = arith.constant 0 : index
      %283 = vector.load %arg24[%c0_124, %c0_125] : memref<16x32xf32, #tpu.memory_space<vmem>>, vector<16x32xf32>
      tpu.vector_store %arg24[%c0_124, %c0_125], %282 {strides = array<i32>} : memref<16x32xf32, #tpu.memory_space<vmem>>, vector<16x32xf32>,
    } else {
    }
    %c0 = arith.constant 0 : index
    %c0_1 = arith.constant 0 : index
    %3 = vector.load %arg24[%c0, %c0_1] : memref<16x32xf32, #tpu.memory_space<vmem>>, vector<16x32xf32>
    %c0_2 = arith.constant 0 : index
    %c0_3 = arith.constant 0 : index
    %4 = vector.load %arg2[%c0_2, %c0_3] : memref<2x32xf32, #tpu.memory_space<vmem>>, vector<2x32xf32>
    %c0_4 = arith.constant 0 : index
    %c0_5 = arith.constant 0 : index
    %c0_6 = arith.constant 0 : index
    %5 = vector.load %arg3[%c0_4, %c0_5, %c0_6] : memref<1x32x96xf32, #tpu.memory_space<vmem>>, vector<1x32x96xf32>
    %6 = vector.shape_cast %5 : vector<1x32x96xf32> to vector<32x96xf32>
    %cst = arith.constant dense<0.000000e+00> : vector<16x96xf32>
    %7 = tpu.matmul %3, %6, %cst {dimension_numbers = #tpu.dot_dimension_numbers<[1], [0], [0], [1], [0, 0, 1, 1], [], []>} : vector<16x32xf32>, vector<32x96xf32>, vector<16x96xf32> -> vector<16x96xf32>
    %c0_7 = arith.constant 0 : index
    %c0_8 = arith.constant 0 : index
    %c0_9 = arith.constant 0 : index
    %8 = vector.load %arg4[%c0_7, %c0_8, %c0_9] : memref<1x1x96xf32, #tpu.memory_space<vmem>>, vector<1x1x96xf32>
    %9 = vector.shape_cast %8 : vector<1x1x96xf32> to vector<1x96xf32>
    %10 = vector.broadcast %9 : vector<1x96xf32> to vector<16x96xf32>
    %11 = arith.addf %7, %10 : vector<16x96xf32>
    %12 = vector.extract_strided_slice %11 {offsets = [0, 0], sizes = [8, 8], strides = [1, 1]} : vector<16x96xf32> to vector<8x8xf32>
    %13 = vector.extract_strided_slice %11 {offsets = [0, 32], sizes = [8, 8], strides = [1, 1]} : vector<16x96xf32> to vector<8x8xf32>
    %14 = vector.extract_strided_slice %11 {offsets = [0, 64], sizes = [8, 8], strides = [1, 1]} : vector<16x96xf32> to vector<8x8xf32>
    %cst_10 = arith.constant dense<0.000000e+00> : vector<8x8xf32>
    %15 = tpu.matmul %12, %13, %cst_10 {dimension_numbers = #tpu.dot_dimension_numbers<[1], [1], [0], [0], [0, 0, 1, 0], [], []>} : vector<8x8xf32>, vector<8x8xf32>, vector<8x8xf32> -> vector<8x8xf32>
    %cst_11 = arith.constant 0.353553385 : f32
    %16 = vector.broadcast %cst_11 : f32 to vector<8x8xf32>
    %17 = arith.mulf %15, %16 : vector<8x8xf32>
    %cst_12 = arith.constant dense<0xFF800000> : vector<8xf32>
    %18 = vector.multi_reduction <maximumf>, %17, %cst_12 [1] : vector<8x8xf32> to vector<8xf32>
    %19 = vector.shape_cast %18 : vector<8xf32> to vector<8x1xf32>
    %20 = vector.broadcast %19 : vector<8x1xf32> to vector<8x8xf32>
    %21 = arith.subf %17, %20 : vector<8x8xf32>
    %22 = math.exp %21 : vector<8x8xf32>
    %cst_13 = arith.constant dense<0.000000e+00> : vector<8xf32>
    %23 = vector.multi_reduction <add>, %22, %cst_13 [1] : vector<8x8xf32> to vector<8xf32>
    %24 = vector.shape_cast %23 : vector<8xf32> to vector<8x1xf32>
    %25 = tpu.reciprocal %24 {approx = true} : vector<8x1xf32> -> vector<8x1xf32>
    %26 = vector.broadcast %25 : vector<8x1xf32> to vector<8x8xf32>
    %27 = arith.mulf %22, %26 : vector<8x8xf32>
    %cst_14 = arith.constant dense<0.000000e+00> : vector<8x8xf32>
    %28 = tpu.matmul %27, %14, %cst_14 {dimension_numbers = #tpu.dot_dimension_numbers<[1], [0], [0], [1], [0, 0, 1, 1], [], []>} : vector<8x8xf32>, vector<8x8xf32>, vector<8x8xf32> -> vector<8x8xf32>
    %29 = vector.extract_strided_slice %11 {offsets = [8, 0], sizes = [8, 8], strides = [1, 1]} : vector<16x96xf32> to vector<8x8xf32>
    %30 = vector.extract_strided_slice %11 {offsets = [8, 32], sizes = [8, 8], strides = [1, 1]} : vector<16x96xf32> to vector<8x8xf32>
    %31 = vector.extract_strided_slice %11 {offsets = [8, 64], sizes = [8, 8], strides = [1, 1]} : vector<16x96xf32> to vector<8x8xf32>
    %cst_15 = arith.constant dense<0.000000e+00> : vector<8x8xf32>
    %32 = tpu.matmul %29, %30, %cst_15 {dimension_numbers = #tpu.dot_dimension_numbers<[1], [1], [0], [0], [0, 0, 1, 0], [], []>} : vector<8x8xf32>, vector<8x8xf32>, vector<8x8xf32> -> vector<8x8xf32>
    %cst_16 = arith.constant 0.353553385 : f32
    %33 = vector.broadcast %cst_16 : f32 to vector<8x8xf32>
    %34 = arith.mulf %32, %33 : vector<8x8xf32>
    %cst_17 = arith.constant dense<0xFF800000> : vector<8xf32>
    %35 = vector.multi_reduction <maximumf>, %34, %cst_17 [1] : vector<8x8xf32> to vector<8xf32>
    %36 = vector.shape_cast %35 : vector<8xf32> to vector<8x1xf32>
    %37 = vector.broadcast %36 : vector<8x1xf32> to vector<8x8xf32>
    %38 = arith.subf %34, %37 : vector<8x8xf32>
    %39 = math.exp %38 : vector<8x8xf32>
    %cst_18 = arith.constant dense<0.000000e+00> : vector<8xf32>
    %40 = vector.multi_reduction <add>, %39, %cst_18 [1] : vector<8x8xf32> to vector<8xf32>
    %41 = vector.shape_cast %40 : vector<8xf32> to vector<8x1xf32>
    %42 = tpu.reciprocal %41 {approx = true} : vector<8x1xf32> -> vector<8x1xf32>
    %43 = vector.broadcast %42 : vector<8x1xf32> to vector<8x8xf32>
    %44 = arith.mulf %39, %43 : vector<8x8xf32>
    %cst_19 = arith.constant dense<0.000000e+00> : vector<8x8xf32>
    %45 = tpu.matmul %44, %31, %cst_19 {dimension_numbers = #tpu.dot_dimension_numbers<[1], [0], [0], [1], [0, 0, 1, 1], [], []>} : vector<8x8xf32>, vector<8x8xf32>, vector<8x8xf32> -> vector<8x8xf32>
    %46 = tpu.concatenate %28, %45 in 0 : vector<8x8xf32>, vector<8x8xf32> -> vector<16x8xf32>
    %47 = vector.extract_strided_slice %11 {offsets = [0, 8], sizes = [8, 8], strides = [1, 1]} : vector<16x96xf32> to vector<8x8xf32>
    %48 = vector.extract_strided_slice %11 {offsets = [0, 40], sizes = [8, 8], strides = [1, 1]} : vector<16x96xf32> to vector<8x8xf32>
    %49 = vector.extract_strided_slice %11 {offsets = [0, 72], sizes = [8, 8], strides = [1, 1]} : vector<16x96xf32> to vector<8x8xf32>
    %cst_20 = arith.constant dense<0.000000e+00> : vector<8x8xf32>
    %50 = tpu.matmul %47, %48, %cst_20 {dimension_numbers = #tpu.dot_dimension_numbers<[1], [1], [0], [0], [0, 0, 1, 0], [], []>} : vector<8x8xf32>, vector<8x8xf32>, vector<8x8xf32> -> vector<8x8xf32>
    %cst_21 = arith.constant 0.353553385 : f32
    %51 = vector.broadcast %cst_21 : f32 to vector<8x8xf32>
    %52 = arith.mulf %50, %51 : vector<8x8xf32>
    %cst_22 = arith.constant dense<0xFF800000> : vector<8xf32>
    %53 = vector.multi_reduction <maximumf>, %52, %cst_22 [1] : vector<8x8xf32> to vector<8xf32>
    %54 = vector.shape_cast %53 : vector<8xf32> to vector<8x1xf32>
    %55 = vector.broadcast %54 : vector<8x1xf32> to vector<8x8xf32>
    %56 = arith.subf %52, %55 : vector<8x8xf32>
    %57 = math.exp %56 : vector<8x8xf32>
    %cst_23 = arith.constant dense<0.000000e+00> : vector<8xf32>
    %58 = vector.multi_reduction <add>, %57, %cst_23 [1] : vector<8x8xf32> to vector<8xf32>
    %59 = vector.shape_cast %58 : vector<8xf32> to vector<8x1xf32>
    %60 = tpu.reciprocal %59 {approx = true} : vector<8x1xf32> -> vector<8x1xf32>
    %61 = vector.broadcast %60 : vector<8x1xf32> to vector<8x8xf32>
    %62 = arith.mulf %57, %61 : vector<8x8xf32>
    %cst_24 = arith.constant dense<0.000000e+00> : vector<8x8xf32>
    %63 = tpu.matmul %62, %49, %cst_24 {dimension_numbers = #tpu.dot_dimension_numbers<[1], [0], [0], [1], [0, 0, 1, 1], [], []>} : vector<8x8xf32>, vector<8x8xf32>, vector<8x8xf32> -> vector<8x8xf32>
    %64 = vector.extract_strided_slice %11 {offsets = [8, 8], sizes = [8, 8], strides = [1, 1]} : vector<16x96xf32> to vector<8x8xf32>
    %65 = vector.extract_strided_slice %11 {offsets = [8, 40], sizes = [8, 8], strides = [1, 1]} : vector<16x96xf32> to vector<8x8xf32>
    %66 = vector.extract_strided_slice %11 {offsets = [8, 72], sizes = [8, 8], strides = [1, 1]} : vector<16x96xf32> to vector<8x8xf32>
    %cst_25 = arith.constant dense<0.000000e+00> : vector<8x8xf32>
    %67 = tpu.matmul %64, %65, %cst_25 {dimension_numbers = #tpu.dot_dimension_numbers<[1], [1], [0], [0], [0, 0, 1, 0], [], []>} : vector<8x8xf32>, vector<8x8xf32>, vector<8x8xf32> -> vector<8x8xf32>
    %cst_26 = arith.constant 0.353553385 : f32
    %68 = vector.broadcast %cst_26 : f32 to vector<8x8xf32>
    %69 = arith.mulf %67, %68 : vector<8x8xf32>
    %cst_27 = arith.constant dense<0xFF800000> : vector<8xf32>
    %70 = vector.multi_reduction <maximumf>, %69, %cst_27 [1] : vector<8x8xf32> to vector<8xf32>
    %71 = vector.shape_cast %70 : vector<8xf32> to vector<8x1xf32>
    %72 = vector.broadcast %71 : vector<8x1xf32> to vector<8x8xf32>
    %73 = arith.subf %69, %72 : vector<8x8xf32>
    %74 = math.exp %73 : vector<8x8xf32>
    %cst_28 = arith.constant dense<0.000000e+00> : vector<8xf32>
    %75 = vector.multi_reduction <add>, %74, %cst_28 [1] : vector<8x8xf32> to vector<8xf32>
    %76 = vector.shape_cast %75 : vector<8xf32> to vector<8x1xf32>
    %77 = tpu.reciprocal %76 {approx = true} : vector<8x1xf32> -> vector<8x1xf32>
    %78 = vector.broadcast %77 : vector<8x1xf32> to vector<8x8xf32>
    %79 = arith.mulf %74, %78 : vector<8x8xf32>
    %cst_29 = arith.constant dense<0.000000e+00> : vector<8x8xf32>
    %80 = tpu.matmul %79, %66, %cst_29 {dimension_numbers = #tpu.dot_dimension_numbers<[1], [0], [0], [1], [0, 0, 1, 1], [], []>} : vector<8x8xf32>, vector<8x8xf32>, vector<8x8xf32> -> vector<8x8xf32>
    %81 = tpu.concatenate %63, %80 in 0 : vector<8x8xf32>, vector<8x8xf32> -> vector<16x8xf32>
    %82 = vector.extract_strided_slice %11 {offsets = [0, 16], sizes = [8, 8], strides = [1, 1]} : vector<16x96xf32> to vector<8x8xf32>
    %83 = vector.extract_strided_slice %11 {offsets = [0, 48], sizes = [8, 8], strides = [1, 1]} : vector<16x96xf32> to vector<8x8xf32>
    %84 = vector.extract_strided_slice %11 {offsets = [0, 80], sizes = [8, 8], strides = [1, 1]} : vector<16x96xf32> to vector<8x8xf32>
    %cst_30 = arith.constant dense<0.000000e+00> : vector<8x8xf32>
    %85 = tpu.matmul %82, %83, %cst_30 {dimension_numbers = #tpu.dot_dimension_numbers<[1], [1], [0], [0], [0, 0, 1, 0], [], []>} : vector<8x8xf32>, vector<8x8xf32>, vector<8x8xf32> -> vector<8x8xf32>
    %cst_31 = arith.constant 0.353553385 : f32
    %86 = vector.broadcast %cst_31 : f32 to vector<8x8xf32>
    %87 = arith.mulf %85, %86 : vector<8x8xf32>
    %cst_32 = arith.constant dense<0xFF800000> : vector<8xf32>
    %88 = vector.multi_reduction <maximumf>, %87, %cst_32 [1] : vector<8x8xf32> to vector<8xf32>
    %89 = vector.shape_cast %88 : vector<8xf32> to vector<8x1xf32>
    %90 = vector.broadcast %89 : vector<8x1xf32> to vector<8x8xf32>
    %91 = arith.subf %87, %90 : vector<8x8xf32>
    %92 = math.exp %91 : vector<8x8xf32>
    %cst_33 = arith.constant dense<0.000000e+00> : vector<8xf32>
    %93 = vector.multi_reduction <add>, %92, %cst_33 [1] : vector<8x8xf32> to vector<8xf32>
    %94 = vector.shape_cast %93 : vector<8xf32> to vector<8x1xf32>
    %95 = tpu.reciprocal %94 {approx = true} : vector<8x1xf32> -> vector<8x1xf32>
    %96 = vector.broadcast %95 : vector<8x1xf32> to vector<8x8xf32>
    %97 = arith.mulf %92, %96 : vector<8x8xf32>
    %cst_34 = arith.constant dense<0.000000e+00> : vector<8x8xf32>
    %98 = tpu.matmul %97, %84, %cst_34 {dimension_numbers = #tpu.dot_dimension_numbers<[1], [0], [0], [1], [0, 0, 1, 1], [], []>} : vector<8x8xf32>, vector<8x8xf32>, vector<8x8xf32> -> vector<8x8xf32>
    %99 = vector.extract_strided_slice %11 {offsets = [8, 16], sizes = [8, 8], strides = [1, 1]} : vector<16x96xf32> to vector<8x8xf32>
    %100 = vector.extract_strided_slice %11 {offsets = [8, 48], sizes = [8, 8], strides = [1, 1]} : vector<16x96xf32> to vector<8x8xf32>
    %101 = vector.extract_strided_slice %11 {offsets = [8, 80], sizes = [8, 8], strides = [1, 1]} : vector<16x96xf32> to vector<8x8xf32>
    %cst_35 = arith.constant dense<0.000000e+00> : vector<8x8xf32>
    %102 = tpu.matmul %99, %100, %cst_35 {dimension_numbers = #tpu.dot_dimension_numbers<[1], [1], [0], [0], [0, 0, 1, 0], [], []>} : vector<8x8xf32>, vector<8x8xf32>, vector<8x8xf32> -> vector<8x8xf32>
    %cst_36 = arith.constant 0.353553385 : f32
    %103 = vector.broadcast %cst_36 : f32 to vector<8x8xf32>
    %104 = arith.mulf %102, %103 : vector<8x8xf32>
    %cst_37 = arith.constant dense<0xFF800000> : vector<8xf32>
    %105 = vector.multi_reduction <maximumf>, %104, %cst_37 [1] : vector<8x8xf32> to vector<8xf32>
    %106 = vector.shape_cast %105 : vector<8xf32> to vector<8x1xf32>
    %107 = vector.broadcast %106 : vector<8x1xf32> to vector<8x8xf32>
    %108 = arith.subf %104, %107 : vector<8x8xf32>
    %109 = math.exp %108 : vector<8x8xf32>
    %cst_38 = arith.constant dense<0.000000e+00> : vector<8xf32>
    %110 = vector.multi_reduction <add>, %109, %cst_38 [1] : vector<8x8xf32> to vector<8xf32>
    %111 = vector.shape_cast %110 : vector<8xf32> to vector<8x1xf32>
    %112 = tpu.reciprocal %111 {approx = true} : vector<8x1xf32> -> vector<8x1xf32>
    %113 = vector.broadcast %112 : vector<8x1xf32> to vector<8x8xf32>
    %114 = arith.mulf %109, %113 : vector<8x8xf32>
    %cst_39 = arith.constant dense<0.000000e+00> : vector<8x8xf32>
    %115 = tpu.matmul %114, %101, %cst_39 {dimension_numbers = #tpu.dot_dimension_numbers<[1], [0], [0], [1], [0, 0, 1, 1], [], []>} : vector<8x8xf32>, vector<8x8xf32>, vector<8x8xf32> -> vector<8x8xf32>
    %116 = tpu.concatenate %98, %115 in 0 : vector<8x8xf32>, vector<8x8xf32> -> vector<16x8xf32>
    %117 = vector.extract_strided_slice %11 {offsets = [0, 24], sizes = [8, 8], strides = [1, 1]} : vector<16x96xf32> to vector<8x8xf32>
    %118 = vector.extract_strided_slice %11 {offsets = [0, 56], sizes = [8, 8], strides = [1, 1]} : vector<16x96xf32> to vector<8x8xf32>
    %119 = vector.extract_strided_slice %11 {offsets = [0, 88], sizes = [8, 8], strides = [1, 1]} : vector<16x96xf32> to vector<8x8xf32>
    %cst_40 = arith.constant dense<0.000000e+00> : vector<8x8xf32>
    %120 = tpu.matmul %117, %118, %cst_40 {dimension_numbers = #tpu.dot_dimension_numbers<[1], [1], [0], [0], [0, 0, 1, 0], [], []>} : vector<8x8xf32>, vector<8x8xf32>, vector<8x8xf32> -> vector<8x8xf32>
    %cst_41 = arith.constant 0.353553385 : f32
    %121 = vector.broadcast %cst_41 : f32 to vector<8x8xf32>
    %122 = arith.mulf %120, %121 : vector<8x8xf32>
    %cst_42 = arith.constant dense<0xFF800000> : vector<8xf32>
    %123 = vector.multi_reduction <maximumf>, %122, %cst_42 [1] : vector<8x8xf32> to vector<8xf32>
    %124 = vector.shape_cast %123 : vector<8xf32> to vector<8x1xf32>
    %125 = vector.broadcast %124 : vector<8x1xf32> to vector<8x8xf32>
    %126 = arith.subf %122, %125 : vector<8x8xf32>
    %127 = math.exp %126 : vector<8x8xf32>
    %cst_43 = arith.constant dense<0.000000e+00> : vector<8xf32>
    %128 = vector.multi_reduction <add>, %127, %cst_43 [1] : vector<8x8xf32> to vector<8xf32>
    %129 = vector.shape_cast %128 : vector<8xf32> to vector<8x1xf32>
    %130 = tpu.reciprocal %129 {approx = true} : vector<8x1xf32> -> vector<8x1xf32>
    %131 = vector.broadcast %130 : vector<8x1xf32> to vector<8x8xf32>
    %132 = arith.mulf %127, %131 : vector<8x8xf32>
    %cst_44 = arith.constant dense<0.000000e+00> : vector<8x8xf32>
    %133 = tpu.matmul %132, %119, %cst_44 {dimension_numbers = #tpu.dot_dimension_numbers<[1], [0], [0], [1], [0, 0, 1, 1], [], []>} : vector<8x8xf32>, vector<8x8xf32>, vector<8x8xf32> -> vector<8x8xf32>
    %134 = vector.extract_strided_slice %11 {offsets = [8, 24], sizes = [8, 8], strides = [1, 1]} : vector<16x96xf32> to vector<8x8xf32>
    %135 = vector.extract_strided_slice %11 {offsets = [8, 56], sizes = [8, 8], strides = [1, 1]} : vector<16x96xf32> to vector<8x8xf32>
    %136 = vector.extract_strided_slice %11 {offsets = [8, 88], sizes = [8, 8], strides = [1, 1]} : vector<16x96xf32> to vector<8x8xf32>
    %cst_45 = arith.constant dense<0.000000e+00> : vector<8x8xf32>
    %137 = tpu.matmul %134, %135, %cst_45 {dimension_numbers = #tpu.dot_dimension_numbers<[1], [1], [0], [0], [0, 0, 1, 0], [], []>} : vector<8x8xf32>, vector<8x8xf32>, vector<8x8xf32> -> vector<8x8xf32>
    %cst_46 = arith.constant 0.353553385 : f32
    %138 = vector.broadcast %cst_46 : f32 to vector<8x8xf32>
    %139 = arith.mulf %137, %138 : vector<8x8xf32>
    %cst_47 = arith.constant dense<0xFF800000> : vector<8xf32>
    %140 = vector.multi_reduction <maximumf>, %139, %cst_47 [1] : vector<8x8xf32> to vector<8xf32>
    %141 = vector.shape_cast %140 : vector<8xf32> to vector<8x1xf32>
    %142 = vector.broadcast %141 : vector<8x1xf32> to vector<8x8xf32>
    %143 = arith.subf %139, %142 : vector<8x8xf32>
    %144 = math.exp %143 : vector<8x8xf32>
    %cst_48 = arith.constant dense<0.000000e+00> : vector<8xf32>
    %145 = vector.multi_reduction <add>, %144, %cst_48 [1] : vector<8x8xf32> to vector<8xf32>
    %146 = vector.shape_cast %145 : vector<8xf32> to vector<8x1xf32>
    %147 = tpu.reciprocal %146 {approx = true} : vector<8x1xf32> -> vector<8x1xf32>
    %148 = vector.broadcast %147 : vector<8x1xf32> to vector<8x8xf32>
    %149 = arith.mulf %144, %148 : vector<8x8xf32>
    %cst_49 = arith.constant dense<0.000000e+00> : vector<8x8xf32>
    %150 = tpu.matmul %149, %136, %cst_49 {dimension_numbers = #tpu.dot_dimension_numbers<[1], [0], [0], [1], [0, 0, 1, 1], [], []>} : vector<8x8xf32>, vector<8x8xf32>, vector<8x8xf32> -> vector<8x8xf32>
    %151 = tpu.concatenate %133, %150 in 0 : vector<8x8xf32>, vector<8x8xf32> -> vector<16x8xf32>
    %152 = tpu.concatenate %46, %81, %116, %151 in 1 : vector<16x8xf32>, vector<16x8xf32>, vector<16x8xf32>, vector<16x8xf32> -> vector<16x32xf32>
    %c0_50 = arith.constant 0 : index
    %c0_51 = arith.constant 0 : index
    %c0_52 = arith.constant 0 : index
    %153 = vector.load %arg5[%c0_50, %c0_51, %c0_52] : memref<1x32x32xf32, #tpu.memory_space<vmem>>, vector<1x32x32xf32>
    %154 = vector.shape_cast %153 : vector<1x32x32xf32> to vector<32x32xf32>
    %cst_53 = arith.constant dense<0.000000e+00> : vector<16x32xf32>
    %155 = tpu.matmul %152, %154, %cst_53 {dimension_numbers = #tpu.dot_dimension_numbers<[1], [0], [0], [1], [0, 0, 1, 1], [], []>} : vector<16x32xf32>, vector<32x32xf32>, vector<16x32xf32> -> vector<16x32xf32>
    %c0_54 = arith.constant 0 : index
    %c0_55 = arith.constant 0 : index
    %c0_56 = arith.constant 0 : index
    %156 = vector.load %arg6[%c0_54, %c0_55, %c0_56] : memref<1x1x32xf32, #tpu.memory_space<vmem>>, vector<1x1x32xf32>
    %157 = vector.shape_cast %156 : vector<1x1x32xf32> to vector<1x32xf32>
    %158 = vector.broadcast %157 : vector<1x32xf32> to vector<16x32xf32>
    %159 = arith.addf %155, %158 : vector<16x32xf32>
    %160 = arith.addf %3, %159 : vector<16x32xf32>
    %c0_57 = arith.constant 0 : index
    %c0_58 = arith.constant 0 : index
    %c0_59 = arith.constant 0 : index
    %161 = vector.load %arg11[%c0_57, %c0_58, %c0_59] : memref<1x1x32xf32, #tpu.memory_space<vmem>>, vector<1x1x32xf32>
    %162 = vector.shape_cast %161 : vector<1x1x32xf32> to vector<1x32xf32>
    %c0_60 = arith.constant 0 : index
    %c0_61 = arith.constant 0 : index
    %c0_62 = arith.constant 0 : index
    %163 = vector.load %arg12[%c0_60, %c0_61, %c0_62] : memref<1x1x32xf32, #tpu.memory_space<vmem>>, vector<1x1x32xf32>
    %164 = vector.shape_cast %163 : vector<1x1x32xf32> to vector<1x32xf32>
    %cst_63 = arith.constant dense<0.000000e+00> : vector<16xf32>
    %165 = vector.multi_reduction <add>, %160, %cst_63 [1] : vector<16x32xf32> to vector<16xf32>
    %166 = vector.shape_cast %165 : vector<16xf32> to vector<16x1xf32>
    %cst_64 = arith.constant 3.200000e+01 : f32
    %167 = vector.broadcast %cst_64 : f32 to vector<16x1xf32>
    %168 = arith.divf %166, %167 : vector<16x1xf32>
    %169 = vector.broadcast %168 : vector<16x1xf32> to vector<16x32xf32>
    %170 = arith.subf %160, %169 : vector<16x32xf32>
    %171 = arith.mulf %170, %170 : vector<16x32xf32>
    %cst_65 = arith.constant dense<0.000000e+00> : vector<16xf32>
    %172 = vector.multi_reduction <add>, %171, %cst_65 [1] : vector<16x32xf32> to vector<16xf32>
    %173 = vector.shape_cast %172 : vector<16xf32> to vector<16x1xf32>
    %cst_66 = arith.constant 3.200000e+01 : f32
    %174 = vector.broadcast %cst_66 : f32 to vector<16x1xf32>
    %175 = arith.divf %173, %174 : vector<16x1xf32>
    %176 = vector.broadcast %168 : vector<16x1xf32> to vector<16x32xf32>
    %177 = arith.subf %160, %176 : vector<16x32xf32>
    %cst_67 = arith.constant 9.99999974E-6 : f32
    %178 = vector.broadcast %cst_67 : f32 to vector<16x1xf32>
    %179 = arith.addf %175, %178 : vector<16x1xf32>
    %180 = math.rsqrt %179 : vector<16x1xf32>
    %181 = vector.broadcast %180 : vector<16x1xf32> to vector<16x32xf32>
    %182 = arith.mulf %177, %181 : vector<16x32xf32>
    %183 = vector.broadcast %162 : vector<1x32xf32> to vector<16x32xf32>
    %184 = arith.mulf %182, %183 : vector<16x32xf32>
    %185 = vector.broadcast %164 : vector<1x32xf32> to vector<16x32xf32>
    %186 = arith.addf %184, %185 : vector<16x32xf32>
    %c0_68 = arith.constant 0 : index
    %c0_69 = arith.constant 0 : index
    %c0_70 = arith.constant 0 : index
    %187 = vector.load %arg7[%c0_68, %c0_69, %c0_70] : memref<1x32x32xf32, #tpu.memory_space<vmem>>, vector<1x32x32xf32>
    %188 = vector.shape_cast %187 : vector<1x32x32xf32> to vector<32x32xf32>
    %cst_71 = arith.constant dense<0.000000e+00> : vector<2x32xf32>
    %189 = tpu.matmul %4, %188, %cst_71 {dimension_numbers = #tpu.dot_dimension_numbers<[1], [0], [0], [1], [0, 0, 1, 1], [], []>} : vector<2x32xf32>, vector<32x32xf32>, vector<2x32xf32> -> vector<2x32xf32>
    %c0_72 = arith.constant 0 : index
    %c0_73 = arith.constant 0 : index
    %c0_74 = arith.constant 0 : index
    %190 = vector.load %arg8[%c0_72, %c0_73, %c0_74] : memref<1x1x32xf32, #tpu.memory_space<vmem>>, vector<1x1x32xf32>
    %191 = vector.shape_cast %190 : vector<1x1x32xf32> to vector<1x32xf32>
    %192 = vector.broadcast %191 : vector<1x32xf32> to vector<2x32xf32>
    %193 = arith.addf %189, %192 : vector<2x32xf32>
    %c0_75 = arith.constant 0 : index
    %c0_76 = arith.constant 0 : index
    %c0_77 = arith.constant 0 : index
    %194 = vector.load %arg9[%c0_75, %c0_76, %c0_77] : memref<1x32x32xf32, #tpu.memory_space<vmem>>, vector<1x32x32xf32>
    %195 = vector.shape_cast %194 : vector<1x32x32xf32> to vector<32x32xf32>
    %cst_78 = arith.constant dense<0.000000e+00> : vector<2x32xf32>
    %196 = tpu.matmul %193, %195, %cst_78 {dimension_numbers = #tpu.dot_dimension_numbers<[1], [0], [0], [1], [0, 0, 1, 1], [], []>} : vector<2x32xf32>, vector<32x32xf32>, vector<2x32xf32> -> vector<2x32xf32>
    %c0_79 = arith.constant 0 : index
    %c0_80 = arith.constant 0 : index
    %c0_81 = arith.constant 0 : index
    %197 = vector.load %arg10[%c0_79, %c0_80, %c0_81] : memref<1x1x32xf32, #tpu.memory_space<vmem>>, vector<1x1x32xf32>
    %198 = vector.shape_cast %197 : vector<1x1x32xf32> to vector<1x32xf32>
    %199 = vector.broadcast %198 : vector<1x32xf32> to vector<2x32xf32>
    %200 = arith.addf %196, %199 : vector<2x32xf32>
    %201 = vector.extract_strided_slice %200 {offsets = [0, 0], sizes = [1, 32], strides = [1, 1]} : vector<2x32xf32> to vector<1x32xf32>
    %202 = vector.shape_cast %201 : vector<1x32xf32> to vector<1x32xf32>
    %203 = vector.broadcast %202 : vector<1x32xf32> to vector<8x32xf32>
    %204 = vector.extract_strided_slice %200 {offsets = [1, 0], sizes = [1, 32], strides = [1, 1]} : vector<2x32xf32> to vector<1x32xf32>
    %205 = vector.shape_cast %204 : vector<1x32xf32> to vector<1x32xf32>
    %206 = vector.broadcast %205 : vector<1x32xf32> to vector<8x32xf32>
    %207 = tpu.concatenate %203, %206 in 0 : vector<8x32xf32>, vector<8x32xf32> -> vector<16x32xf32>
    %208 = arith.addf %186, %207 : vector<16x32xf32>
    %c0_82 = arith.constant 0 : index
    %c0_83 = arith.constant 0 : index
    %c0_84 = arith.constant 0 : index
    %209 = vector.load %arg13[%c0_82, %c0_83, %c0_84] : memref<1x1x32xf32, #tpu.memory_space<vmem>>, vector<1x1x32xf32>
    %210 = vector.shape_cast %209 : vector<1x1x32xf32> to vector<1x32xf32>
    %c0_85 = arith.constant 0 : index
    %c0_86 = arith.constant 0 : index
    %c0_87 = arith.constant 0 : index
    %211 = vector.load %arg14[%c0_85, %c0_86, %c0_87] : memref<1x1x32xf32, #tpu.memory_space<vmem>>, vector<1x1x32xf32>
    %212 = vector.shape_cast %211 : vector<1x1x32xf32> to vector<1x32xf32>
    %cst_88 = arith.constant dense<0.000000e+00> : vector<16xf32>
    %213 = vector.multi_reduction <add>, %208, %cst_88 [1] : vector<16x32xf32> to vector<16xf32>
    %214 = vector.shape_cast %213 : vector<16xf32> to vector<16x1xf32>
    %cst_89 = arith.constant 3.200000e+01 : f32
    %215 = vector.broadcast %cst_89 : f32 to vector<16x1xf32>
    %216 = arith.divf %214, %215 : vector<16x1xf32>
    %217 = vector.broadcast %216 : vector<16x1xf32> to vector<16x32xf32>
    %218 = arith.subf %208, %217 : vector<16x32xf32>
    %219 = arith.mulf %218, %218 : vector<16x32xf32>
    %cst_90 = arith.constant dense<0.000000e+00> : vector<16xf32>
    %220 = vector.multi_reduction <add>, %219, %cst_90 [1] : vector<16x32xf32> to vector<16xf32>
    %221 = vector.shape_cast %220 : vector<16xf32> to vector<16x1xf32>
    %cst_91 = arith.constant 3.200000e+01 : f32
    %222 = vector.broadcast %cst_91 : f32 to vector<16x1xf32>
    %223 = arith.divf %221, %222 : vector<16x1xf32>
    %224 = vector.broadcast %216 : vector<16x1xf32> to vector<16x32xf32>
    %225 = arith.subf %208, %224 : vector<16x32xf32>
    %cst_92 = arith.constant 9.99999974E-6 : f32
    %226 = vector.broadcast %cst_92 : f32 to vector<16x1xf32>
    %227 = arith.addf %223, %226 : vector<16x1xf32>
    %228 = math.rsqrt %227 : vector<16x1xf32>
    %229 = vector.broadcast %228 : vector<16x1xf32> to vector<16x32xf32>
    %230 = arith.mulf %225, %229 : vector<16x32xf32>
    %231 = vector.broadcast %210 : vector<1x32xf32> to vector<16x32xf32>
    %232 = arith.mulf %230, %231 : vector<16x32xf32>
    %233 = vector.broadcast %212 : vector<1x32xf32> to vector<16x32xf32>
    %234 = arith.addf %232, %233 : vector<16x32xf32>
    %c0_93 = arith.constant 0 : index
    %c0_94 = arith.constant 0 : index
    %c0_95 = arith.constant 0 : index
    %235 = vector.load %arg17[%c0_93, %c0_94, %c0_95] : memref<1x32x2048xf32, #tpu.memory_space<vmem>>, vector<1x32x2048xf32>
    %236 = vector.shape_cast %235 : vector<1x32x2048xf32> to vector<32x2048xf32>
    %cst_96 = arith.constant dense<0.000000e+00> : vector<16x2048xf32>
    %237 = tpu.matmul %234, %236, %cst_96 {dimension_numbers = #tpu.dot_dimension_numbers<[1], [0], [0], [1], [0, 0, 1, 1], [], []>} : vector<16x32xf32>, vector<32x2048xf32>, vector<16x2048xf32> -> vector<16x2048xf32>
    %c0_97 = arith.constant 0 : index
    %c0_98 = arith.constant 0 : index
    %c0_99 = arith.constant 0 : index
    %238 = vector.load %arg18[%c0_97, %c0_98, %c0_99] : memref<1x1x2048xf32, #tpu.memory_space<vmem>>, vector<1x1x2048xf32>
    %239 = vector.shape_cast %238 : vector<1x1x2048xf32> to vector<1x2048xf32>
    %240 = vector.broadcast %239 : vector<1x2048xf32> to vector<16x2048xf32>
    %241 = arith.addf %237, %240 : vector<16x2048xf32>
    %cst_100 = arith.constant 0.000000e+00 : f32
    %242 = vector.broadcast %cst_100 : f32 to vector<16x2048xf32>
    %243 = arith.maximumf %241, %242 : vector<16x2048xf32>
    %c0_101 = arith.constant 0 : index
    %c0_102 = arith.constant 0 : index
    %c0_103 = arith.constant 0 : index
    %244 = vector.load %arg19[%c0_101, %c0_102, %c0_103] : memref<1x32x2048xf32, #tpu.memory_space<vmem>>, vector<1x32x2048xf32>
    %245 = vector.shape_cast %244 : vector<1x32x2048xf32> to vector<32x2048xf32>
    %cst_104 = arith.constant dense<0.000000e+00> : vector<16x32xf32>
    %246 = tpu.matmul %243, %245, %cst_104 {dimension_numbers = #tpu.dot_dimension_numbers<[1], [1], [0], [0], [0, 0, 1, 0], [], []>} : vector<16x2048xf32>, vector<32x2048xf32>, vector<16x32xf32> -> vector<16x32xf32>
    %c0_105 = arith.constant 0 : index
    %c0_106 = arith.constant 0 : index
    %c0_107 = arith.constant 0 : index
    %247 = vector.load %arg20[%c0_105, %c0_106, %c0_107] : memref<1x1x32xf32, #tpu.memory_space<vmem>>, vector<1x1x32xf32>
    %248 = vector.shape_cast %247 : vector<1x1x32xf32> to vector<1x32xf32>
    %249 = vector.broadcast %248 : vector<1x32xf32> to vector<16x32xf32>
    %250 = arith.addf %246, %249 : vector<16x32xf32>
    %251 = arith.addf %234, %250 : vector<16x32xf32>
    %c0_108 = arith.constant 0 : index
    %c0_109 = arith.constant 0 : index
    %c0_110 = arith.constant 0 : index
    %252 = vector.load %arg15[%c0_108, %c0_109, %c0_110] : memref<1x1x32xf32, #tpu.memory_space<vmem>>, vector<1x1x32xf32>
    %253 = vector.shape_cast %252 : vector<1x1x32xf32> to vector<1x32xf32>
    %c0_111 = arith.constant 0 : index
    %c0_112 = arith.constant 0 : index
    %c0_113 = arith.constant 0 : index
    %254 = vector.load %arg16[%c0_111, %c0_112, %c0_113] : memref<1x1x32xf32, #tpu.memory_space<vmem>>, vector<1x1x32xf32>
    %255 = vector.shape_cast %254 : vector<1x1x32xf32> to vector<1x32xf32>
    %cst_114 = arith.constant dense<0.000000e+00> : vector<16xf32>
    %256 = vector.multi_reduction <add>, %251, %cst_114 [1] : vector<16x32xf32> to vector<16xf32>
    %257 = vector.shape_cast %256 : vector<16xf32> to vector<16x1xf32>
    %cst_115 = arith.constant 3.200000e+01 : f32
    %258 = vector.broadcast %cst_115 : f32 to vector<16x1xf32>
    %259 = arith.divf %257, %258 : vector<16x1xf32>
    %260 = vector.broadcast %259 : vector<16x1xf32> to vector<16x32xf32>
    %261 = arith.subf %251, %260 : vector<16x32xf32>
    %262 = arith.mulf %261, %261 : vector<16x32xf32>
    %cst_116 = arith.constant dense<0.000000e+00> : vector<16xf32>
    %263 = vector.multi_reduction <add>, %262, %cst_116 [1] : vector<16x32xf32> to vector<16xf32>
    %264 = vector.shape_cast %263 : vector<16xf32> to vector<16x1xf32>
    %cst_117 = arith.constant 3.200000e+01 : f32
    %265 = vector.broadcast %cst_117 : f32 to vector<16x1xf32>
    %266 = arith.divf %264, %265 : vector<16x1xf32>
    %267 = vector.broadcast %259 : vector<16x1xf32> to vector<16x32xf32>
    %268 = arith.subf %251, %267 : vector<16x32xf32>
    %cst_118 = arith.constant 9.99999974E-6 : f32
    %269 = vector.broadcast %cst_118 : f32 to vector<16x1xf32>
    %270 = arith.addf %266, %269 : vector<16x1xf32>
    %271 = math.rsqrt %270 : vector<16x1xf32>
    %272 = vector.broadcast %271 : vector<16x1xf32> to vector<16x32xf32>
    %273 = arith.mulf %268, %272 : vector<16x32xf32>
    %274 = vector.broadcast %253 : vector<1x32xf32> to vector<16x32xf32>
    %275 = arith.mulf %273, %274 : vector<16x32xf32>
    %276 = vector.broadcast %255 : vector<1x32xf32> to vector<16x32xf32>
    %277 = arith.addf %275, %276 : vector<16x32xf32>
    %c0_119 = arith.constant 0 : index
    %c0_120 = arith.constant 0 : index
    %278 = vector.load %arg24[%c0_119, %c0_120] : memref<16x32xf32, #tpu.memory_space<vmem>>, vector<16x32xf32>
    tpu.vector_store %arg24[%c0_119, %c0_120], %277 {strides = array<i32>} : memref<16x32xf32, #tpu.memory_space<vmem>>, vector<16x32xf32>,
    %c1_i32 = arith.constant 1 : i32
    %279 = arith.cmpi eq, %arg0, %c1_i32 : i32
    %280 = arith.extui %279 : i1 to i32
    %c0_i32_121 = arith.constant 0 : i32
    %281 = arith.cmpi ne, %280, %c0_i32_121 : i32
    scf.if %281 {
      %c0_122 = arith.constant 0 : index
      %c0_123 = arith.constant 0 : index
      %282 = vector.load %arg21[%c0_122, %c0_123] : memref<32x64xf32, #tpu.memory_space<vmem>>, vector<32x64xf32>
      %cst_124 = arith.constant dense<0.000000e+00> : vector<16x64xf32>
      %283 = tpu.matmul %277, %282, %cst_124 {dimension_numbers = #tpu.dot_dimension_numbers<[1], [0], [0], [1], [0, 0, 1, 1], [], []>} : vector<16x32xf32>, vector<32x64xf32>, vector<16x64xf32> -> vector<16x64xf32>
      %c0_125 = arith.constant 0 : index
      %c0_126 = arith.constant 0 : index
      %284 = vector.load %arg22[%c0_125, %c0_126] : memref<1x64xf32, #tpu.memory_space<vmem>>, vector<1x64xf32>
      %285 = vector.broadcast %284 : vector<1x64xf32> to vector<16x64xf32>
      %286 = arith.addf %283, %285 : vector<16x64xf32>
      %c0_127 = arith.constant 0 : index
      %c0_128 = arith.constant 0 : index
      %287 = vector.load %arg23[%c0_127, %c0_128] : memref<16x64xf32, #tpu.memory_space<vmem>>, vector<16x64xf32>
      tpu.vector_store %arg23[%c0_127, %c0_128], %286 {strides = array<i32>} : memref<16x64xf32, #tpu.memory_space<vmem>>, vector<16x64xf32>,
    } else {
    }
    return
  }
  func.func @transform_0(%arg0: i32) -> (i32, i32) {
    %c0_i32 = arith.constant 0 : i32
    %c0_i32_0 = arith.constant 0 : i32
    %c0_i32_1 = arith.constant 0 : i32
    return %c0_i32, %c0_i32_0 : i32, i32
  }
  func.func @transform_1(%arg0: i32) -> (i32, i32) {
    %c0_i32 = arith.constant 0 : i32
    %c0_i32_0 = arith.constant 0 : i32
    %c0_i32_1 = arith.constant 0 : i32
    return %c0_i32, %c0_i32_0 : i32, i32
  }
  func.func @transform_2(%arg0: i32) -> (i32, i32, i32) {
    %c0_i32 = arith.constant 0 : i32
    %c0_i32_0 = arith.constant 0 : i32
    %c0_i32_1 = arith.constant 0 : i32
    return %arg0, %c0_i32, %c0_i32_0 : i32, i32, i32
  }
  func.func @transform_3(%arg0: i32) -> (i32, i32, i32) {
    %c0_i32 = arith.constant 0 : i32
    %c0_i32_0 = arith.constant 0 : i32
    %c0_i32_1 = arith.constant 0 : i32
    return %arg0, %c0_i32, %c0_i32_0 : i32, i32, i32
  }
  func.func @transform_4(%arg0: i32) -> (i32, i32, i32) {
    %c0_i32 = arith.constant 0 : i32
    %c0_i32_0 = arith.constant 0 : i32
    %c0_i32_1 = arith.constant 0 : i32
    return %arg0, %c0_i32, %c0_i32_0 : i32, i32, i32
  }
  func.func @transform_5(%arg0: i32) -> (i32, i32, i32) {
    %c0_i32 = arith.constant 0 : i32
    %c0_i32_0 = arith.constant 0 : i32
    %c0_i32_1 = arith.constant 0 : i32
    return %arg0, %c0_i32, %c0_i32_0 : i32, i32, i32
  }
  func.func @transform_6(%arg0: i32) -> (i32, i32, i32) {
    %c0_i32 = arith.constant 0 : i32
    %c0_i32_0 = arith.constant 0 : i32
    %c0_i32_1 = arith.constant 0 : i32
    return %arg0, %c0_i32, %c0_i32_0 : i32, i32, i32
  }
  func.func @transform_7(%arg0: i32) -> (i32, i32, i32) {
    %c0_i32 = arith.constant 0 : i32
    %c0_i32_0 = arith.constant 0 : i32
    %c0_i32_1 = arith.constant 0 : i32
    return %arg0, %c0_i32, %c0_i32_0 : i32, i32, i32
  }
  func.func @transform_8(%arg0: i32) -> (i32, i32, i32) {
    %c0_i32 = arith.constant 0 : i32
    %c0_i32_0 = arith.constant 0 : i32
    %c0_i32_1 = arith.constant 0 : i32
    return %arg0, %c0_i32, %c0_i32_0 : i32, i32, i32
  }
  func.func @transform_9(%arg0: i32) -> (i32, i32, i32) {
    %c0_i32 = arith.constant 0 : i32
    %c0_i32_0 = arith.constant 0 : i32
    %c0_i32_1 = arith.constant 0 : i32
    return %arg0, %c0_i32, %c0_i32_0 : i32, i32, i32
  }
  func.func @transform_10(%arg0: i32) -> (i32, i32, i32) {
    %c0_i32 = arith.constant 0 : i32
    %c0_i32_0 = arith.constant 0 : i32
    %c0_i32_1 = arith.constant 0 : i32
    return %arg0, %c0_i32, %c0_i32_0 : i32, i32, i32
  }
  func.func @transform_11(%arg0: i32) -> (i32, i32, i32) {
    %c0_i32 = arith.constant 0 : i32
    %c0_i32_0 = arith.constant 0 : i32
    %c0_i32_1 = arith.constant 0 : i32
    return %arg0, %c0_i32, %c0_i32_0 : i32, i32, i32
  }
  func.func @transform_12(%arg0: i32) -> (i32, i32, i32) {
    %c0_i32 = arith.constant 0 : i32
    %c0_i32_0 = arith.constant 0 : i32
    %c0_i32_1 = arith.constant 0 : i32
    return %arg0, %c0_i32, %c0_i32_0 : i32, i32, i32
  }
  func.func @transform_13(%arg0: i32) -> (i32, i32, i32) {
    %c0_i32 = arith.constant 0 : i32
    %c0_i32_0 = arith.constant 0 : i32
    %c0_i32_1 = arith.constant 0 : i32
    return %arg0, %c0_i32, %c0_i32_0 : i32, i32, i32
  }
  func.func @transform_14(%arg0: i32) -> (i32, i32, i32) {
    %c0_i32 = arith.constant 0 : i32
    %c0_i32_0 = arith.constant 0 : i32
    %c0_i32_1 = arith.constant 0 : i32
    return %arg0, %c0_i32, %c0_i32_0 : i32, i32, i32
  }
  func.func @transform_15(%arg0: i32) -> (i32, i32, i32) {
    %c0_i32 = arith.constant 0 : i32
    %c0_i32_0 = arith.constant 0 : i32
    %c0_i32_1 = arith.constant 0 : i32
    return %arg0, %c0_i32, %c0_i32_0 : i32, i32, i32
  }
  func.func @transform_16(%arg0: i32) -> (i32, i32, i32) {
    %c0_i32 = arith.constant 0 : i32
    %c0_i32_0 = arith.constant 0 : i32
    %c0_i32_1 = arith.constant 0 : i32
    return %arg0, %c0_i32, %c0_i32_0 : i32, i32, i32
  }
  func.func @transform_17(%arg0: i32) -> (i32, i32, i32) {
    %c0_i32 = arith.constant 0 : i32
    %c0_i32_0 = arith.constant 0 : i32
    %c0_i32_1 = arith.constant 0 : i32
    return %arg0, %c0_i32, %c0_i32_0 : i32, i32, i32
  }
  func.func @transform_18(%arg0: i32) -> (i32, i32, i32) {
    %c0_i32 = arith.constant 0 : i32
    %c0_i32_0 = arith.constant 0 : i32
    %c0_i32_1 = arith.constant 0 : i32
    return %arg0, %c0_i32, %c0_i32_0 : i32, i32, i32
  }
  func.func @transform_19(%arg0: i32) -> (i32, i32, i32) {
    %c0_i32 = arith.constant 0 : i32
    %c0_i32_0 = arith.constant 0 : i32
    %c0_i32_1 = arith.constant 0 : i32
    return %arg0, %c0_i32, %c0_i32_0 : i32, i32, i32
  }
  func.func @transform_20(%arg0: i32) -> (i32, i32) {
    %c0_i32 = arith.constant 0 : i32
    %c0_i32_0 = arith.constant 0 : i32
    %c0_i32_1 = arith.constant 0 : i32
    return %c0_i32, %c0_i32_0 : i32, i32
  }
  func.func @transform_21(%arg0: i32) -> (i32, i32) {
    %c0_i32 = arith.constant 0 : i32
    %c0_i32_0 = arith.constant 0 : i32
    %c0_i32_1 = arith.constant 0 : i32
    return %c0_i32, %c0_i32_0 : i32, i32
  }
  func.func @transform_22(%arg0: i32) -> (i32, i32) {
    %c0_i32 = arith.constant 0 : i32
    %c0_i32_0 = arith.constant 0 : i32
    %c0_i32_1 = arith.constant 0 : i32
    return %c0_i32, %c0_i32_0 : i32, i32
  }
}

</mosaic_0001>

<llo_original>
// kernel: tpu_custom_call.1
$region0: #{tpu_custom_call.1}
  #allocation0 [shape = 'u32[]', space=smem, size = 0x4, offset = 0x4, fixed_abs, tag = 'smem constant byte address 0x4 - core index']
  #allocation1 [shape = 'u32[144,128]{1,0:T(1,128)}', space=vmem, size = 0x12000, scoped, tag = 'internal scratch']
  #allocation2 [shape = 'f32[16,32]{1,0:T(8,128)}', space=vmem, size = 0x2000, scoped, tag = 'scratch operand']
  %s0 = inlined_call_operand.hbm [shape: f32[16,32], index: 0, kind: input, shape index: {}]
  %s1 = inlined_call_operand.hbm [shape: f32[2,32], index: 1, kind: input, shape index: {}]
  %s2 = inlined_call_operand.hbm [shape: f32[2,32,96], index: 2, kind: input, shape index: {}]
  %s3 = inlined_call_operand.vmem [shape: f32[2,1,96], index: 3, kind: input, shape index: {}]
  %s4 = inlined_call_operand.hbm [shape: f32[2,32,32], index: 4, kind: input, shape index: {}]
  %s5 = inlined_call_operand.vmem [shape: f32[2,1,32], index: 5, kind: input, shape index: {}]
  %s6 = inlined_call_operand.hbm [shape: f32[2,32,32], index: 6, kind: input, shape index: {}]
  %s7 = inlined_call_operand.hbm [shape: f32[2,1,32], index: 7, kind: input, shape index: {}]
  %s8 = inlined_call_operand.hbm [shape: f32[2,32,32], index: 8, kind: input, shape index: {}]
  %s9 = inlined_call_operand.hbm [shape: f32[2,1,32], index: 9, kind: input, shape index: {}]
  %s10 = inlined_call_operand.hbm [shape: f32[2,1,32], index: 10, kind: input, shape index: {}]
  %s11 = inlined_call_operand.hbm [shape: f32[2,1,32], index: 11, kind: input, shape index: {}]
  %s12 = inlined_call_operand.hbm [shape: f32[2,1,32], index: 12, kind: input, shape index: {}]
  %s13 = inlined_call_operand.hbm [shape: f32[2,1,32], index: 13, kind: input, shape index: {}]
  %s14 = inlined_call_operand.hbm [shape: f32[2,1,32], index: 14, kind: input, shape index: {}]
  %s15 = inlined_call_operand.hbm [shape: f32[2,1,32], index: 15, kind: input, shape index: {}]
  %s16 = inlined_call_operand.hbm [shape: f32[2,32,2048], index: 16, kind: input, shape index: {}]
  %s17 = inlined_call_operand.hbm [shape: f32[2,1,2048], index: 17, kind: input, shape index: {}]
  %s18 = inlined_call_operand.hbm [shape: f32[2,32,2048], index: 18, kind: input, shape index: {}]
  %s19 = inlined_call_operand.hbm [shape: f32[2,1,32], index: 19, kind: input, shape index: {}]
  %s20 = inlined_call_operand.vmem [shape: f32[32,64], index: 20, kind: input, shape index: {}]
  %s21 = inlined_call_operand.vmem [shape: f32[1,64], index: 21, kind: input, shape index: {}]
  %s22 = inlined_call_operand.hbm [shape: f32[16,64], index: 22, kind: output, shape index: {}]
  %s23 = sld [smem:[#allocation0]]
  $region201: #{tpu_custom_call.1} parent=0
    _
  %s25 = ssub.s32 1, %s23
  %s26 = scalar_select 0, %s25, %s23
  $region1: #{tpu_custom_call.1} parent=0
    #allocation3 [shape = 'u8[8192]{0}', space=vmem, size = 0x2000, scoped, tag = 'input window, operand 0, single buffered']
    #allocation4 [shape = 's32[2]{0}', space=sflag, size = 0x8, scoped, tag = 'scoped memory for tpu_custom_call.1']
    #allocation5 [shape = 's32[2]{0}', space=sflag, size = 0x8, scoped, tag = 'scoped memory for tpu_custom_call.1']
    #allocation6 [shape = 'u8[1024]{0}', space=vmem, size = 0x400, scoped, tag = 'input window, operand 1, single buffered']
    #allocation7 [shape = 's32[1]{0}', space=sflag, size = 0x4, scoped, tag = 'scoped memory for tpu_custom_call.1']
    #allocation8 [shape = 'u8[32768]{0}', space=vmem, size = 0x8000, scoped, tag = 'input window, operand 2']
    #allocation9 [shape = 'u8[32768]{0}', space=vmem, size = 0x8000, scoped, tag = 'input window, operand 4']
    #allocation10 [shape = 'u8[32768]{0}', space=vmem, size = 0x8000, scoped, tag = 'input window, operand 6']
    #allocation11 [shape = 'u8[1024]{0}', space=vmem, size = 0x400, scoped, tag = 'input window, operand 7']
    #allocation12 [shape = 'u8[32768]{0}', space=vmem, size = 0x8000, scoped, tag = 'input window, operand 8']
    #allocation13 [shape = 'u8[1024]{0}', space=vmem, size = 0x400, scoped, tag = 'input window, operand 9']
    #allocation14 [shape = 'u8[1024]{0}', space=vmem, size = 0x400, scoped, tag = 'input window, operand 10']
    #allocation15 [shape = 'u8[1024]{0}', space=vmem, size = 0x400, scoped, tag = 'input window, operand 11']
    #allocation16 [shape = 'u8[1024]{0}', space=vmem, size = 0x400, scoped, tag = 'input window, operand 12']
    #allocation17 [shape = 'u8[1024]{0}', space=vmem, size = 0x400, scoped, tag = 'input window, operand 13']
    #allocation18 [shape = 'u8[1024]{0}', space=vmem, size = 0x400, scoped, tag = 'input window, operand 14']
    #allocation19 [shape = 'u8[1024]{0}', space=vmem, size = 0x400, scoped, tag = 'input window, operand 15']
    #allocation20 [shape = 'u8[524288]{0}', space=vmem, size = 0x80000, scoped, tag = 'input window, operand 16']
    #allocation21 [shape = 'u8[16384]{0}', space=vmem, size = 0x4000, scoped, tag = 'input window, operand 17']
    #allocation22 [shape = 'u8[524288]{0}', space=vmem, size = 0x80000, scoped, tag = 'input window, operand 18']
    #allocation23 [shape = 'u8[1024]{0}', space=vmem, size = 0x400, scoped, tag = 'input window, operand 19']
    #allocation24 [shape = 'u8[8192]{0}', space=vmem, size = 0x2000, scoped, tag = 'output window, operand 0, single buffered']
    %27 = vsyncpa [#allocation4], 0
    %28 = vsyncpa [#allocation7], 0
    %29 = vsyncpa [#allocation5], 0
    loop: start=0, step=1, limit=4
    $region2: #{tpu_custom_call.1} parent=1 // loop_pre_header
      _
    $region3: #{tpu_custom_call.1} parent=1 // loop_header
      %s31 = sphi 0, %s35
      %p32 = scmp.ge.s32.totalorder %s31, 4
      %s39 = sphi 0, %s39
      %s41 = sphi 0, %s39
      %s42 = sphi 0, %s41
      %s56 = sphi 0, %s42
      %s60 = sphi 0, %s60
      %s62 = sphi 0, %s60
      %s63 = sphi 0, %s62
      %s77 = sphi 0, %s63
      %s83 = sphi 0, %s85
      %s86 = sphi 0, %s83
      %s87 = sphi 0, %s86
      %s103 = sphi 0, %s87
      %s109 = sphi 0, %s111
      %s112 = sphi 0, %s109
      %s113 = sphi 0, %s112
      %s129 = sphi 0, %s113
      %s135 = sphi 0, %s137
      %s138 = sphi 0, %s135
      %s139 = sphi 0, %s138
      %s155 = sphi 0, %s139
      %s161 = sphi 0, %s163
      %s164 = sphi 0, %s161
      %s165 = sphi 0, %s164
      %s181 = sphi 0, %s165
      %s187 = sphi 0, %s189
      %s190 = sphi 0, %s187
      %s191 = sphi 0, %s190
      %s207 = sphi 0, %s191
      %s213 = sphi 0, %s215
      %s216 = sphi 0, %s213
      %s217 = sphi 0, %s216
      %s233 = sphi 0, %s217
      %s239 = sphi 0, %s241
      %s242 = sphi 0, %s239
      %s243 = sphi 0, %s242
      %s259 = sphi 0, %s243
      %s265 = sphi 0, %s267
      %s268 = sphi 0, %s265
      %s269 = sphi 0, %s268
      %s285 = sphi 0, %s269
      %s291 = sphi 0, %s293
      %s294 = sphi 0, %s291
      %s295 = sphi 0, %s294
      %s311 = sphi 0, %s295
      %s317 = sphi 0, %s319
      %s320 = sphi 0, %s317
      %s321 = sphi 0, %s320
      %s337 = sphi 0, %s321
      %s343 = sphi 0, %s345
      %s346 = sphi 0, %s343
      %s347 = sphi 0, %s346
      %s363 = sphi 0, %s347
      %s369 = sphi 0, %s371
      %s372 = sphi 0, %s369
      %s373 = sphi 0, %s372
      %s389 = sphi 0, %s373
      %s395 = sphi 0, %s397
      %s398 = sphi 0, %s395
      %s399 = sphi 0, %s398
      %s415 = sphi 0, %s399
      %s421 = sphi 0, %s423
      %s424 = sphi 0, %s421
      %s425 = sphi 0, %s424
      %s441 = sphi 0, %s425
      %s447 = sphi 0, %s449
      %s450 = sphi 0, %s447
      %s451 = sphi 0, %s450
      %s467 = sphi 0, %s451
      %s473 = sphi 0, %s475
      %s476 = sphi 0, %s473
      %s477 = sphi 0, %s476
      %s493 = sphi 0, %s477
      %s499 = sphi 0, %s501
      %s502 = sphi 0, %s499
      %s503 = sphi 0, %s502
      %s519 = sphi 0, %s503
      %s525 = sphi 0, %s527
      %s528 = sphi 0, %s525
      %s529 = sphi 0, %s528
      %s545 = sphi 0, %s529
      %s549 = sphi 0, %s549
      %s551 = sphi 0, %s549
      %s552 = sphi 0, %s551
      %s566 = sphi 0, %s552
      %s570 = sphi 0, %s570
      %s572 = sphi 0, %s570
      %s573 = sphi 0, %s572
      %s587 = sphi 0, %s573
      %s591 = sphi 0, %s591
      %s593 = sphi 0, %s591
      %s594 = sphi 0, %s593
      %s608 = sphi 0, %s594
    $region4: #{tpu_custom_call.1} parent=1 // loop_header_branch
      %34 = sbr.rel (%p32) target = $region8
    $region5: #{tpu_custom_call.1} parent=1 // loop_body
      %s36 = ssub.s32 %s31, 1
      %s37 = ssub.s32 %s31, 2
      %s38 = sadd.s32 %s31, 1
      %s40 = sadd.s32 %s39, 1
      %p43 = scmp.eq.s32.totalorder %s31, 1
      %p44 = scmp.ne.s32.totalorder %s39, %s41
      %p45 = scmp.eq.s32.totalorder %s31, 0
      %p46 = por %p44, %p45
      %p47 = scmp.ne.s32.totalorder %s39, %s41
      %p48 = scmp.eq.s32.totalorder %s36, 1
      %p49 = por %p47, %p48
      %p50 = scmp.ne.s32.totalorder %s41, %s42
      %p51 = scmp.eq.s32.totalorder %s36, 0
      %p52 = por %p50, %p51
      %p53 = scmp.ne.s32.totalorder %s41, %s42
      %p54 = scmp.eq.s32.totalorder %s37, 1
      %p55 = por %p53, %p54
      %p57 = scmp.ne.s32.totalorder %s42, %s56
      %p58 = scmp.eq.s32.totalorder %s37, 0
      %p59 = por %p57, %p58
      %s61 = sadd.s32 %s60, 1
      %p64 = scmp.eq.s32.totalorder %s31, 1
      %p65 = scmp.ne.s32.totalorder %s60, %s62
      %p66 = scmp.eq.s32.totalorder %s31, 0
      %p67 = por %p65, %p66
      %p68 = scmp.ne.s32.totalorder %s60, %s62
      %p69 = scmp.eq.s32.totalorder %s36, 1
      %p70 = por %p68, %p69
      %p71 = scmp.ne.s32.totalorder %s62, %s63
      %p72 = scmp.eq.s32.totalorder %s36, 0
      %p73 = por %p71, %p72
      %p74 = scmp.ne.s32.totalorder %s62, %s63
      %p75 = scmp.eq.s32.totalorder %s37, 1
      %p76 = por %p74, %p75
      %p78 = scmp.ne.s32.totalorder %s63, %s77
      %p79 = scmp.eq.s32.totalorder %s37, 0
      %p80 = por %p78, %p79
      %s81 = ssub.s32 %s31, %s38
      %p82 = scmp.eq.s32.totalorder %s81, 0
      %s84 = sadd.s32 %s83, 1
      %s85 = scalar_select %p82, %s83, %s84
      %p88 = pneg %p82
      %p89 = scmp.eq.s32.totalorder %s31, 1
      %p90 = por %p88, %p89
      %p91 = scmp.ne.s32.totalorder %s83, %s86
      %p92 = scmp.eq.s32.totalorder %s31, 0
      %p93 = por %p91, %p92
      %p94 = scmp.ne.s32.totalorder %s83, %s86
      %p95 = scmp.eq.s32.totalorder %s36, 1
      %p96 = por %p94, %p95
      %p97 = scmp.ne.s32.totalorder %s86, %s87
      %p98 = scmp.eq.s32.totalorder %s36, 0
      %p99 = por %p97, %p98
      %p100 = scmp.ne.s32.totalorder %s86, %s87
      %p101 = scmp.eq.s32.totalorder %s37, 1
      %p102 = por %p100, %p101
      %p104 = scmp.ne.s32.totalorder %s87, %s103
      %p105 = scmp.eq.s32.totalorder %s37, 0
      %p106 = por %p104, %p105
      %s107 = ssub.s32 %s31, %s38
      %p108 = scmp.eq.s32.totalorder %s107, 0
      %s110 = sadd.s32 %s109, 1
      %s111 = scalar_select %p108, %s109, %s110
      %p114 = pneg %p108
      %p115 = scmp.eq.s32.totalorder %s31, 1
      %p116 = por %p114, %p115
      %p117 = scmp.ne.s32.totalorder %s109, %s112
      %p118 = scmp.eq.s32.totalorder %s31, 0
      %p119 = por %p117, %p118
      %p120 = scmp.ne.s32.totalorder %s109, %s112
      %p121 = scmp.eq.s32.totalorder %s36, 1
      %p122 = por %p120, %p121
      %p123 = scmp.ne.s32.totalorder %s112, %s113
      %p124 = scmp.eq.s32.totalorder %s36, 0
      %p125 = por %p123, %p124
      %p126 = scmp.ne.s32.totalorder %s112, %s113
      %p127 = scmp.eq.s32.totalorder %s37, 1
      %p128 = por %p126, %p127
      %p130 = scmp.ne.s32.totalorder %s113, %s129
      %p131 = scmp.eq.s32.totalorder %s37, 0
      %p132 = por %p130, %p131
      %s133 = ssub.s32 %s31, %s38
      %p134 = scmp.eq.s32.totalorder %s133, 0
      %s136 = sadd.s32 %s135, 1
      %s137 = scalar_select %p134, %s135, %s136
      %p140 = pneg %p134
      %p141 = scmp.eq.s32.totalorder %s31, 1
      %p142 = por %p140, %p141
      %p143 = scmp.ne.s32.totalorder %s135, %s138
      %p144 = scmp.eq.s32.totalorder %s31, 0
      %p145 = por %p143, %p144
      %p146 = scmp.ne.s32.totalorder %s135, %s138
      %p147 = scmp.eq.s32.totalorder %s36, 1
      %p148 = por %p146, %p147
      %p149 = scmp.ne.s32.totalorder %s138, %s139
      %p150 = scmp.eq.s32.totalorder %s36, 0
      %p151 = por %p149, %p150
      %p152 = scmp.ne.s32.totalorder %s138, %s139
      %p153 = scmp.eq.s32.totalorder %s37, 1
      %p154 = por %p152, %p153
      %p156 = scmp.ne.s32.totalorder %s139, %s155
      %p157 = scmp.eq.s32.totalorder %s37, 0
      %p158 = por %p156, %p157
      %s159 = ssub.s32 %s31, %s38
      %p160 = scmp.eq.s32.totalorder %s159, 0
      %s162 = sadd.s32 %s161, 1
      %s163 = scalar_select %p160, %s161, %s162
      %p166 = pneg %p160
      %p167 = scmp.eq.s32.totalorder %s31, 1
      %p168 = por %p166, %p167
      %p169 = scmp.ne.s32.totalorder %s161, %s164
      %p170 = scmp.eq.s32.totalorder %s31, 0
      %p171 = por %p169, %p170
      %p172 = scmp.ne.s32.totalorder %s161, %s164
      %p173 = scmp.eq.s32.totalorder %s36, 1
      %p174 = por %p172, %p173
      %p175 = scmp.ne.s32.totalorder %s164, %s165
      %p176 = scmp.eq.s32.totalorder %s36, 0
      %p177 = por %p175, %p176
      %p178 = scmp.ne.s32.totalorder %s164, %s165
      %p179 = scmp.eq.s32.totalorder %s37, 1
      %p180 = por %p178, %p179
      %p182 = scmp.ne.s32.totalorder %s165, %s181
      %p183 = scmp.eq.s32.totalorder %s37, 0
      %p184 = por %p182, %p183
      %s185 = ssub.s32 %s31, %s38
      %p186 = scmp.eq.s32.totalorder %s185, 0
      %s188 = sadd.s32 %s187, 1
      %s189 = scalar_select %p186, %s187, %s188
      %p192 = pneg %p186
      %p193 = scmp.eq.s32.totalorder %s31, 1
      %p194 = por %p192, %p193
      %p195 = scmp.ne.s32.totalorder %s187, %s190
      %p196 = scmp.eq.s32.totalorder %s31, 0
      %p197 = por %p195, %p196
      %p198 = scmp.ne.s32.totalorder %s187, %s190
      %p199 = scmp.eq.s32.totalorder %s36, 1
      %p200 = por %p198, %p199
      %p201 = scmp.ne.s32.totalorder %s190, %s191
      %p202 = scmp.eq.s32.totalorder %s36, 0
      %p203 = por %p201, %p202
      %p204 = scmp.ne.s32.totalorder %s190, %s191
      %p205 = scmp.eq.s32.totalorder %s37, 1
      %p206 = por %p204, %p205
      %p208 = scmp.ne.s32.totalorder %s191, %s207
      %p209 = scmp.eq.s32.totalorder %s37, 0
      %p210 = por %p208, %p209
      %s211 = ssub.s32 %s31, %s38
      %p212 = scmp.eq.s32.totalorder %s211, 0
      %s214 = sadd.s32 %s213, 1
      %s215 = scalar_select %p212, %s213, %s214
      %p218 = pneg %p212
      %p219 = scmp.eq.s32.totalorder %s31, 1
      %p220 = por %p218, %p219
      %p221 = scmp.ne.s32.totalorder %s213, %s216
      %p222 = scmp.eq.s32.totalorder %s31, 0
      %p223 = por %p221, %p222
      %p224 = scmp.ne.s32.totalorder %s213, %s216
      %p225 = scmp.eq.s32.totalorder %s36, 1
      %p226 = por %p224, %p225
      %p227 = scmp.ne.s32.totalorder %s216, %s217
      %p228 = scmp.eq.s32.totalorder %s36, 0
      %p229 = por %p227, %p228
      %p230 = scmp.ne.s32.totalorder %s216, %s217
      %p231 = scmp.eq.s32.totalorder %s37, 1
      %p232 = por %p230, %p231
      %p234 = scmp.ne.s32.totalorder %s217, %s233
      %p235 = scmp.eq.s32.totalorder %s37, 0
      %p236 = por %p234, %p235
      %s237 = ssub.s32 %s31, %s38
      %p238 = scmp.eq.s32.totalorder %s237, 0
      %s240 = sadd.s32 %s239, 1
      %s241 = scalar_select %p238, %s239, %s240
      %p244 = pneg %p238
      %p245 = scmp.eq.s32.totalorder %s31, 1
      %p246 = por %p244, %p245
      %p247 = scmp.ne.s32.totalorder %s239, %s242
      %p248 = scmp.eq.s32.totalorder %s31, 0
      %p249 = por %p247, %p248
      %p250 = scmp.ne.s32.totalorder %s239, %s242
      %p251 = scmp.eq.s32.totalorder %s36, 1
      %p252 = por %p250, %p251
      %p253 = scmp.ne.s32.totalorder %s242, %s243
      %p254 = scmp.eq.s32.totalorder %s36, 0
      %p255 = por %p253, %p254
      %p256 = scmp.ne.s32.totalorder %s242, %s243
      %p257 = scmp.eq.s32.totalorder %s37, 1
      %p258 = por %p256, %p257
      %p260 = scmp.ne.s32.totalorder %s243, %s259
      %p261 = scmp.eq.s32.totalorder %s37, 0
      %p262 = por %p260, %p261
      %s263 = ssub.s32 %s31, %s38
      %p264 = scmp.eq.s32.totalorder %s263, 0
      %s266 = sadd.s32 %s265, 1
      %s267 = scalar_select %p264, %s265, %s266
      %p270 = pneg %p264
      %p271 = scmp.eq.s32.totalorder %s31, 1
      %p272 = por %p270, %p271
      %p273 = scmp.ne.s32.totalorder %s265, %s268
      %p274 = scmp.eq.s32.totalorder %s31, 0
      %p275 = por %p273, %p274
      %p276 = scmp.ne.s32.totalorder %s265, %s268
      %p277 = scmp.eq.s32.totalorder %s36, 1
      %p278 = por %p276, %p277
      %p279 = scmp.ne.s32.totalorder %s268, %s269
      %p280 = scmp.eq.s32.totalorder %s36, 0
      %p281 = por %p279, %p280
      %p282 = scmp.ne.s32.totalorder %s268, %s269
      %p283 = scmp.eq.s32.totalorder %s37, 1
      %p284 = por %p282, %p283
      %p286 = scmp.ne.s32.totalorder %s269, %s285
      %p287 = scmp.eq.s32.totalorder %s37, 0
      %p288 = por %p286, %p287
      %s289 = ssub.s32 %s31, %s38
      %p290 = scmp.eq.s32.totalorder %s289, 0
      %s292 = sadd.s32 %s291, 1
      %s293 = scalar_select %p290, %s291, %s292
      %p296 = pneg %p290
      %p297 = scmp.eq.s32.totalorder %s31, 1
      %p298 = por %p296, %p297
      %p299 = scmp.ne.s32.totalorder %s291, %s294
      %p300 = scmp.eq.s32.totalorder %s31, 0
      %p301 = por %p299, %p300
      %p302 = scmp.ne.s32.totalorder %s291, %s294
      %p303 = scmp.eq.s32.totalorder %s36, 1
      %p304 = por %p302, %p303
      %p305 = scmp.ne.s32.totalorder %s294, %s295
      %p306 = scmp.eq.s32.totalorder %s36, 0
      %p307 = por %p305, %p306
      %p308 = scmp.ne.s32.totalorder %s294, %s295
      %p309 = scmp.eq.s32.totalorder %s37, 1
      %p310 = por %p308, %p309
      %p312 = scmp.ne.s32.totalorder %s295, %s311
      %p313 = scmp.eq.s32.totalorder %s37, 0
      %p314 = por %p312, %p313
      %s315 = ssub.s32 %s31, %s38
      %p316 = scmp.eq.s32.totalorder %s315, 0
      %s318 = sadd.s32 %s317, 1
      %s319 = scalar_select %p316, %s317, %s318
      %p322 = pneg %p316
      %p323 = scmp.eq.s32.totalorder %s31, 1
      %p324 = por %p322, %p323
      %p325 = scmp.ne.s32.totalorder %s317, %s320
      %p326 = scmp.eq.s32.totalorder %s31, 0
      %p327 = por %p325, %p326
      %p328 = scmp.ne.s32.totalorder %s317, %s320
      %p329 = scmp.eq.s32.totalorder %s36, 1
      %p330 = por %p328, %p329
      %p331 = scmp.ne.s32.totalorder %s320, %s321
      %p332 = scmp.eq.s32.totalorder %s36, 0
      %p333 = por %p331, %p332
      %p334 = scmp.ne.s32.totalorder %s320, %s321
      %p335 = scmp.eq.s32.totalorder %s37, 1
      %p336 = por %p334, %p335
      %p338 = scmp.ne.s32.totalorder %s321, %s337
      %p339 = scmp.eq.s32.totalorder %s37, 0
      %p340 = por %p338, %p339
      %s341 = ssub.s32 %s31, %s38
      %p342 = scmp.eq.s32.totalorder %s341, 0
      %s344 = sadd.s32 %s343, 1
      %s345 = scalar_select %p342, %s343, %s344
      %p348 = pneg %p342
      %p349 = scmp.eq.s32.totalorder %s31, 1
      %p350 = por %p348, %p349
      %p351 = scmp.ne.s32.totalorder %s343, %s346
      %p352 = scmp.eq.s32.totalorder %s31, 0
      %p353 = por %p351, %p352
      %p354 = scmp.ne.s32.totalorder %s343, %s346
      %p355 = scmp.eq.s32.totalorder %s36, 1
      %p356 = por %p354, %p355
      %p357 = scmp.ne.s32.totalorder %s346, %s347
      %p358 = scmp.eq.s32.totalorder %s36, 0
      %p359 = por %p357, %p358
      %p360 = scmp.ne.s32.totalorder %s346, %s347
      %p361 = scmp.eq.s32.totalorder %s37, 1
      %p362 = por %p360, %p361
      %p364 = scmp.ne.s32.totalorder %s347, %s363
      %p365 = scmp.eq.s32.totalorder %s37, 0
      %p366 = por %p364, %p365
      %s367 = ssub.s32 %s31, %s38
      %p368 = scmp.eq.s32.totalorder %s367, 0
      %s370 = sadd.s32 %s369, 1
      %s371 = scalar_select %p368, %s369, %s370
      %p374 = pneg %p368
      %p375 = scmp.eq.s32.totalorder %s31, 1
      %p376 = por %p374, %p375
      %p377 = scmp.ne.s32.totalorder %s369, %s372
      %p378 = scmp.eq.s32.totalorder %s31, 0
      %p379 = por %p377, %p378
      %p380 = scmp.ne.s32.totalorder %s369, %s372
      %p381 = scmp.eq.s32.totalorder %s36, 1
      %p382 = por %p380, %p381
      %p383 = scmp.ne.s32.totalorder %s372, %s373
      %p384 = scmp.eq.s32.totalorder %s36, 0
      %p385 = por %p383, %p384
      %p386 = scmp.ne.s32.totalorder %s372, %s373
      %p387 = scmp.eq.s32.totalorder %s37, 1
      %p388 = por %p386, %p387
      %p390 = scmp.ne.s32.totalorder %s373, %s389
      %p391 = scmp.eq.s32.totalorder %s37, 0
      %p392 = por %p390, %p391
      %s393 = ssub.s32 %s31, %s38
      %p394 = scmp.eq.s32.totalorder %s393, 0
      %s396 = sadd.s32 %s395, 1
      %s397 = scalar_select %p394, %s395, %s396
      %p400 = pneg %p394
      %p401 = scmp.eq.s32.totalorder %s31, 1
      %p402 = por %p400, %p401
      %p403 = scmp.ne.s32.totalorder %s395, %s398
      %p404 = scmp.eq.s32.totalorder %s31, 0
      %p405 = por %p403, %p404
      %p406 = scmp.ne.s32.totalorder %s395, %s398
      %p407 = scmp.eq.s32.totalorder %s36, 1
      %p408 = por %p406, %p407
      %p409 = scmp.ne.s32.totalorder %s398, %s399
      %p410 = scmp.eq.s32.totalorder %s36, 0
      %p411 = por %p409, %p410
      %p412 = scmp.ne.s32.totalorder %s398, %s399
      %p413 = scmp.eq.s32.totalorder %s37, 1
      %p414 = por %p412, %p413
      %p416 = scmp.ne.s32.totalorder %s399, %s415
      %p417 = scmp.eq.s32.totalorder %s37, 0
      %p418 = por %p416, %p417
      %s419 = ssub.s32 %s31, %s38
      %p420 = scmp.eq.s32.totalorder %s419, 0
      %s422 = sadd.s32 %s421, 1
      %s423 = scalar_select %p420, %s421, %s422
      %p426 = pneg %p420
      %p427 = scmp.eq.s32.totalorder %s31, 1
      %p428 = por %p426, %p427
      %p429 = scmp.ne.s32.totalorder %s421, %s424
      %p430 = scmp.eq.s32.totalorder %s31, 0
      %p431 = por %p429, %p430
      %p432 = scmp.ne.s32.totalorder %s421, %s424
      %p433 = scmp.eq.s32.totalorder %s36, 1
      %p434 = por %p432, %p433
      %p435 = scmp.ne.s32.totalorder %s424, %s425
      %p436 = scmp.eq.s32.totalorder %s36, 0
      %p437 = por %p435, %p436
      %p438 = scmp.ne.s32.totalorder %s424, %s425
      %p439 = scmp.eq.s32.totalorder %s37, 1
      %p440 = por %p438, %p439
      %p442 = scmp.ne.s32.totalorder %s425, %s441
      %p443 = scmp.eq.s32.totalorder %s37, 0
      %p444 = por %p442, %p443
      %s445 = ssub.s32 %s31, %s38
      %p446 = scmp.eq.s32.totalorder %s445, 0
      %s448 = sadd.s32 %s447, 1
      %s449 = scalar_select %p446, %s447, %s448
      %p452 = pneg %p446
      %p453 = scmp.eq.s32.totalorder %s31, 1
      %p454 = por %p452, %p453
      %p455 = scmp.ne.s32.totalorder %s447, %s450
      %p456 = scmp.eq.s32.totalorder %s31, 0
      %p457 = por %p455, %p456
      %p458 = scmp.ne.s32.totalorder %s447, %s450
      %p459 = scmp.eq.s32.totalorder %s36, 1
      %p460 = por %p458, %p459
      %p461 = scmp.ne.s32.totalorder %s450, %s451
      %p462 = scmp.eq.s32.totalorder %s36, 0
      %p463 = por %p461, %p462
      %p464 = scmp.ne.s32.totalorder %s450, %s451
      %p465 = scmp.eq.s32.totalorder %s37, 1
      %p466 = por %p464, %p465
      %p468 = scmp.ne.s32.totalorder %s451, %s467
      %p469 = scmp.eq.s32.totalorder %s37, 0
      %p470 = por %p468, %p469
      %s471 = ssub.s32 %s31, %s38
      %p472 = scmp.eq.s32.totalorder %s471, 0
      %s474 = sadd.s32 %s473, 1
      %s475 = scalar_select %p472, %s473, %s474
      %p478 = pneg %p472
      %p479 = scmp.eq.s32.totalorder %s31, 1
      %p480 = por %p478, %p479
      %p481 = scmp.ne.s32.totalorder %s473, %s476
      %p482 = scmp.eq.s32.totalorder %s31, 0
      %p483 = por %p481, %p482
      %p484 = scmp.ne.s32.totalorder %s473, %s476
      %p485 = scmp.eq.s32.totalorder %s36, 1
      %p486 = por %p484, %p485
      %p487 = scmp.ne.s32.totalorder %s476, %s477
      %p488 = scmp.eq.s32.totalorder %s36, 0
      %p489 = por %p487, %p488
      %p490 = scmp.ne.s32.totalorder %s476, %s477
      %p491 = scmp.eq.s32.totalorder %s37, 1
      %p492 = por %p490, %p491
      %p494 = scmp.ne.s32.totalorder %s477, %s493
      %p495 = scmp.eq.s32.totalorder %s37, 0
      %p496 = por %p494, %p495
      %s497 = ssub.s32 %s31, %s38
      %p498 = scmp.eq.s32.totalorder %s497, 0
      %s500 = sadd.s32 %s499, 1
      %s501 = scalar_select %p498, %s499, %s500
      %p504 = pneg %p498
      %p505 = scmp.eq.s32.totalorder %s31, 1
      %p506 = por %p504, %p505
      %p507 = scmp.ne.s32.totalorder %s499, %s502
      %p508 = scmp.eq.s32.totalorder %s31, 0
      %p509 = por %p507, %p508
      %p510 = scmp.ne.s32.totalorder %s499, %s502
      %p511 = scmp.eq.s32.totalorder %s36, 1
      %p512 = por %p510, %p511
      %p513 = scmp.ne.s32.totalorder %s502, %s503
      %p514 = scmp.eq.s32.totalorder %s36, 0
      %p515 = por %p513, %p514
      %p516 = scmp.ne.s32.totalorder %s502, %s503
      %p517 = scmp.eq.s32.totalorder %s37, 1
      %p518 = por %p516, %p517
      %p520 = scmp.ne.s32.totalorder %s503, %s519
      %p521 = scmp.eq.s32.totalorder %s37, 0
      %p522 = por %p520, %p521
      %s523 = ssub.s32 %s31, %s38
      %p524 = scmp.eq.s32.totalorder %s523, 0
      %s526 = sadd.s32 %s525, 1
      %s527 = scalar_select %p524, %s525, %s526
      %p530 = pneg %p524
      %p531 = scmp.eq.s32.totalorder %s31, 1
      %p532 = por %p530, %p531
      %p533 = scmp.ne.s32.totalorder %s525, %s528
      %p534 = scmp.eq.s32.totalorder %s31, 0
      %p535 = por %p533, %p534
      %p536 = scmp.ne.s32.totalorder %s525, %s528
      %p537 = scmp.eq.s32.totalorder %s36, 1
      %p538 = por %p536, %p537
      %p539 = scmp.ne.s32.totalorder %s528, %s529
      %p540 = scmp.eq.s32.totalorder %s36, 0
      %p541 = por %p539, %p540
      %p542 = scmp.ne.s32.totalorder %s528, %s529
      %p543 = scmp.eq.s32.totalorder %s37, 1
      %p544 = por %p542, %p543
      %p546 = scmp.ne.s32.totalorder %s529, %s545
      %p547 = scmp.eq.s32.totalorder %s37, 0
      %p548 = por %p546, %p547
      %s550 = sadd.s32 %s549, 1
      %p553 = scmp.eq.s32.totalorder %s31, 1
      %p554 = scmp.ne.s32.totalorder %s549, %s551
      %p555 = scmp.eq.s32.totalorder %s31, 0
      %p556 = por %p554, %p555
      %p557 = scmp.ne.s32.totalorder %s549, %s551
      %p558 = scmp.eq.s32.totalorder %s36, 1
      %p559 = por %p557, %p558
      %p560 = scmp.ne.s32.totalorder %s551, %s552
      %p561 = scmp.eq.s32.totalorder %s36, 0
      %p562 = por %p560, %p561
      %p563 = scmp.ne.s32.totalorder %s551, %s552
      %p564 = scmp.eq.s32.totalorder %s37, 1
      %p565 = por %p563, %p564
      %p567 = scmp.ne.s32.totalorder %s552, %s566
      %p568 = scmp.eq.s32.totalorder %s37, 0
      %p569 = por %p567, %p568
      %s571 = sadd.s32 %s570, 1
      %p574 = scmp.eq.s32.totalorder %s31, 1
      %p575 = scmp.ne.s32.totalorder %s570, %s572
      %p576 = scmp.eq.s32.totalorder %s31, 0
      %p577 = por %p575, %p576
      %p578 = scmp.ne.s32.totalorder %s570, %s572
      %p579 = scmp.eq.s32.totalorder %s36, 1
      %p580 = por %p578, %p579
      %p581 = scmp.ne.s32.totalorder %s572, %s573
      %p582 = scmp.eq.s32.totalorder %s36, 0
      %p583 = por %p581, %p582
      %p584 = scmp.ne.s32.totalorder %s572, %s573
      %p585 = scmp.eq.s32.totalorder %s37, 1
      %p586 = por %p584, %p585
      %p588 = scmp.ne.s32.totalorder %s573, %s587
      %p589 = scmp.eq.s32.totalorder %s37, 0
      %p590 = por %p588, %p589
      %s592 = sadd.s32 %s591, 1
      %p595 = scmp.eq.s32.totalorder %s31, 1
      %p596 = scmp.ne.s32.totalorder %s591, %s593
      %p597 = scmp.eq.s32.totalorder %s31, 0
      %p598 = por %p596, %p597
      %p599 = scmp.ne.s32.totalorder %s591, %s593
      %p600 = scmp.eq.s32.totalorder %s36, 1
      %p601 = por %p599, %p600
      %p602 = scmp.ne.s32.totalorder %s593, %s594
      %p603 = scmp.eq.s32.totalorder %s36, 0
      %p604 = por %p602, %p603
      %p605 = scmp.ne.s32.totalorder %s593, %s594
      %p606 = scmp.eq.s32.totalorder %s37, 1
      %p607 = por %p605, %p606
      %p609 = scmp.ne.s32.totalorder %s594, %s608
      %p610 = scmp.eq.s32.totalorder %s37, 0
      %p611 = por %p609, %p610
      %p612 = scmp.le.s32.totalorder 1, %s31
      %p613 = scmp.lt.s32.totalorder %s31, 3
      %p614 = pnand %p612, %p613
      %p615 = pneg %p614
      // Predicated region
      $region9: #{tpu_custom_call.1} parent=5 // pred_check
        _
      $region10: #{tpu_custom_call.1} parent=5 // pred_check_branch
        %617 = sbr.rel (%p614) target = $region12
      $region11: #{tpu_custom_call.1} parent=5 // pred_region
        %s618 = ssub.s32 %s31, 1
        // Predicated region
        $region13: #{tpu_custom_call.1} parent=11 // pred_check
          %p619 = pneg %p52
        $region14: #{tpu_custom_call.1} parent=11 // pred_check_branch
          %621 = sbr.rel (%p619) target = $region16
        $region15: #{tpu_custom_call.1} parent=11 // pred_region
          %s623 = ssub.s32 256, 256
          %624 = vsyncadd [#allocation4], %s623
          %s625 = sshll.u32 [#allocation3], 4
          %s626 = int_to_ptr.vmem [resolvable:$true] %s625
          %631 = dma.hbm_to_vmem [thread:$0]  %s0, 256, %s626, [#allocation4], 128, 128, 8
        $region16: #{tpu_custom_call.1} parent=11 // pred_fallthru
          _
        // Predicated region
        $region17: #{tpu_custom_call.1} parent=11 // pred_check
          %p632 = pneg %p73
        $region18: #{tpu_custom_call.1} parent=11 // pred_check_branch
          %634 = sbr.rel (%p632) target = $region20
        $region19: #{tpu_custom_call.1} parent=11 // pred_region
          %s636 = ssub.s32 32, 32
          %637 = vsyncadd [#allocation7], %s636
          %s639 = sshll.u32 [#allocation6], 4
          %s640 = int_to_ptr.vmem [resolvable:$true] %s639
          %642 = dma.hbm_to_vmem [thread:$0]  %s1, 32, %s640, [#allocation7]
        $region20: #{tpu_custom_call.1} parent=11 // pred_fallthru
          _
        // Predicated region
        $region21: #{tpu_custom_call.1} parent=11 // pred_check
          %p643 = pneg %p562
        $region22: #{tpu_custom_call.1} parent=11 // pred_check_branch
          %645 = sbr.rel (%p643) target = $region24
        $region23: #{tpu_custom_call.1} parent=11 // pred_region
          _
        $region24: #{tpu_custom_call.1} parent=11 // pred_fallthru
          _
        // Predicated region
        $region25: #{tpu_custom_call.1} parent=11 // pred_check
          %p646 = pneg %p583
        $region26: #{tpu_custom_call.1} parent=11 // pred_check_branch
          %648 = sbr.rel (%p646) target = $region28
        $region27: #{tpu_custom_call.1} parent=11 // pred_region
          _
        $region28: #{tpu_custom_call.1} parent=11 // pred_fallthru
          _
      $region12: #{tpu_custom_call.1} parent=5 // pred_fallthru
        _
      %p649 = scmp.lt.s32.totalorder %s31, 2
      // Predicated region
      $region29: #{tpu_custom_call.1} parent=5 // pred_check
        %p650 = pneg %p649
      $region30: #{tpu_custom_call.1} parent=5 // pred_check_branch
        %652 = sbr.rel (%p650) target = $region32
      $region31: #{tpu_custom_call.1} parent=5 // pred_region
        // Predicated region
        $region33: #{tpu_custom_call.1} parent=31 // pred_check
          %p653 = pneg %p93
        $region34: #{tpu_custom_call.1} parent=31 // pred_check_branch
          %655 = sbr.rel (%p653) target = $region36
        $region35: #{tpu_custom_call.1} parent=31 // pred_region
          %s656 = sand.u32 %s31, 1
          %s657 = scalar_lea.sflag [#allocation4], %s656
          %s658 = sand.u32 %s83, 1
          %s659 = smul.addr %s658, 32
          %s660 = scalar_lea.vmem [#allocation8], %s659
          %s662 = ssub.s32 512, 512
          %663 = vsyncadd %s657, %s662
          %s664 = smul.addr %s31, 4
          %s665 = smul.addr %s664, 128
          %s666 = scalar_lea.hbm %s2, %s665
          %s667 = sshll.u32 %s660, 4
          %s668 = int_to_ptr.vmem [resolvable:$true] %s667
          %673 = dma.hbm_to_vmem [thread:$0]  %s666, 512, %s668, %s657, 128, 128, 8
        $region36: #{tpu_custom_call.1} parent=31 // pred_fallthru
          _
        // Predicated region
        $region37: #{tpu_custom_call.1} parent=31 // pred_check
          %p674 = pneg %p119
        $region38: #{tpu_custom_call.1} parent=31 // pred_check_branch
          %676 = sbr.rel (%p674) target = $region40
        $region39: #{tpu_custom_call.1} parent=31 // pred_region
          %p677 = scmp.lt.s32.totalorder %s31, 1
          %s678 = scalar_select %p677, %s31, 1
          %s679 = scalar_lea.vmem %s3, %s678
        $region40: #{tpu_custom_call.1} parent=31 // pred_fallthru
          _
        // Predicated region
        $region41: #{tpu_custom_call.1} parent=31 // pred_check
          %p680 = pneg %p145
        $region42: #{tpu_custom_call.1} parent=31 // pred_check_branch
          %682 = sbr.rel (%p680) target = $region44
        $region43: #{tpu_custom_call.1} parent=31 // pred_region
          %s683 = sand.u32 %s31, 1
          %s684 = scalar_lea.sflag [#allocation4], %s683
          %s685 = sand.u32 %s135, 1
          %s686 = smul.addr %s685, 32
          %s687 = scalar_lea.vmem [#allocation9], %s686
          %s689 = ssub.s32 512, 512
          %690 = vsyncadd %s684, %s689
          %s691 = smul.addr %s31, 4
          %s692 = smul.addr %s691, 128
          %s693 = scalar_lea.hbm %s4, %s692
          %s694 = sshll.u32 %s687, 4
          %s695 = int_to_ptr.vmem [resolvable:$true] %s694
          %700 = dma.hbm_to_vmem [thread:$0]  %s693, 512, %s695, %s684, 128, 128, 8
        $region44: #{tpu_custom_call.1} parent=31 // pred_fallthru
          _
        // Predicated region
        $region45: #{tpu_custom_call.1} parent=31 // pred_check
          %p701 = pneg %p171
        $region46: #{tpu_custom_call.1} parent=31 // pred_check_branch
          %703 = sbr.rel (%p701) target = $region48
        $region47: #{tpu_custom_call.1} parent=31 // pred_region
          %p704 = scmp.lt.s32.totalorder %s31, 1
          %s705 = scalar_select %p704, %s31, 1
          %s706 = scalar_lea.vmem %s5, %s705
        $region48: #{tpu_custom_call.1} parent=31 // pred_fallthru
          _
        // Predicated region
        $region49: #{tpu_custom_call.1} parent=31 // pred_check
          %p707 = pneg %p197
        $region50: #{tpu_custom_call.1} parent=31 // pred_check_branch
          %709 = sbr.rel (%p707) target = $region52
        $region51: #{tpu_custom_call.1} parent=31 // pred_region
          %s710 = sand.u32 %s31, 1
          %s711 = scalar_lea.sflag [#allocation4], %s710
          %s712 = sand.u32 %s187, 1
          %s713 = smul.addr %s712, 32
          %s714 = scalar_lea.vmem [#allocation10], %s713
          %s716 = ssub.s32 512, 512
          %717 = vsyncadd %s711, %s716
          %s718 = smul.addr %s31, 4
          %s719 = smul.addr %s718, 128
          %s720 = scalar_lea.hbm %s6, %s719
          %s721 = sshll.u32 %s714, 4
          %s722 = int_to_ptr.vmem [resolvable:$true] %s721
          %727 = dma.hbm_to_vmem [thread:$0]  %s720, 512, %s722, %s711, 128, 128, 8
        $region52: #{tpu_custom_call.1} parent=31 // pred_fallthru
          _
        // Predicated region
        $region53: #{tpu_custom_call.1} parent=31 // pred_check
          %p728 = pneg %p223
        $region54: #{tpu_custom_call.1} parent=31 // pred_check_branch
          %730 = sbr.rel (%p728) target = $region56
        $region55: #{tpu_custom_call.1} parent=31 // pred_region
          %s731 = sand.u32 %s31, 1
          %s732 = scalar_lea.sflag [#allocation4], %s731
          %s733 = sand.u32 %s213, 1
          %s734 = scalar_lea.vmem [#allocation11], %s733
          %s736 = ssub.s32 16, 16
          %737 = vsyncadd %s732, %s736
          %s738 = smul.addr %s31, 16
          %s739 = scalar_lea.hbm %s7, %s738
          %s741 = sshll.u32 %s734, 4
          %s742 = int_to_ptr.vmem [resolvable:$true] %s741
          %744 = dma.hbm_to_vmem [thread:$0]  %s739, 16, %s742, %s732
        $region56: #{tpu_custom_call.1} parent=31 // pred_fallthru
          _
        // Predicated region
        $region57: #{tpu_custom_call.1} parent=31 // pred_check
          %p745 = pneg %p249
        $region58: #{tpu_custom_call.1} parent=31 // pred_check_branch
          %747 = sbr.rel (%p745) target = $region60
        $region59: #{tpu_custom_call.1} parent=31 // pred_region
          %s748 = sand.u32 %s31, 1
          %s749 = scalar_lea.sflag [#allocation4], %s748
          %s750 = sand.u32 %s239, 1
          %s751 = smul.addr %s750, 32
          %s752 = scalar_lea.vmem [#allocation12], %s751
          %s754 = ssub.s32 512, 512
          %755 = vsyncadd %s749, %s754
          %s756 = smul.addr %s31, 4
          %s757 = smul.addr %s756, 128
          %s758 = scalar_lea.hbm %s8, %s757
          %s759 = sshll.u32 %s752, 4
          %s760 = int_to_ptr.vmem [resolvable:$true] %s759
          %765 = dma.hbm_to_vmem [thread:$0]  %s758, 512, %s760, %s749, 128, 128, 8
        $region60: #{tpu_custom_call.1} parent=31 // pred_fallthru
          _
        // Predicated region
        $region61: #{tpu_custom_call.1} parent=31 // pred_check
          %p766 = pneg %p275
        $region62: #{tpu_custom_call.1} parent=31 // pred_check_branch
          %768 = sbr.rel (%p766) target = $region64
        $region63: #{tpu_custom_call.1} parent=31 // pred_region
          %s769 = sand.u32 %s31, 1
          %s770 = scalar_lea.sflag [#allocation4], %s769
          %s771 = sand.u32 %s265, 1
          %s772 = scalar_lea.vmem [#allocation13], %s771
          %s774 = ssub.s32 16, 16
          %775 = vsyncadd %s770, %s774
          %s776 = smul.addr %s31, 16
          %s777 = scalar_lea.hbm %s9, %s776
          %s779 = sshll.u32 %s772, 4
          %s780 = int_to_ptr.vmem [resolvable:$true] %s779
          %782 = dma.hbm_to_vmem [thread:$0]  %s777, 16, %s780, %s770
        $region64: #{tpu_custom_call.1} parent=31 // pred_fallthru
          _
        // Predicated region
        $region65: #{tpu_custom_call.1} parent=31 // pred_check
          %p783 = pneg %p301
        $region66: #{tpu_custom_call.1} parent=31 // pred_check_branch
          %785 = sbr.rel (%p783) target = $region68
        $region67: #{tpu_custom_call.1} parent=31 // pred_region
          %s786 = sand.u32 %s31, 1
          %s787 = scalar_lea.sflag [#allocation4], %s786
          %s788 = sand.u32 %s291, 1
          %s789 = scalar_lea.vmem [#allocation14], %s788
          %s791 = ssub.s32 16, 16
          %792 = vsyncadd %s787, %s791
          %s793 = smul.addr %s31, 16
          %s794 = scalar_lea.hbm %s10, %s793
          %s796 = sshll.u32 %s789, 4
          %s797 = int_to_ptr.vmem [resolvable:$true] %s796
          %799 = dma.hbm_to_vmem [thread:$0]  %s794, 16, %s797, %s787
        $region68: #{tpu_custom_call.1} parent=31 // pred_fallthru
          _
        // Predicated region
        $region69: #{tpu_custom_call.1} parent=31 // pred_check
          %p800 = pneg %p327
        $region70: #{tpu_custom_call.1} parent=31 // pred_check_branch
          %802 = sbr.rel (%p800) target = $region72
        $region71: #{tpu_custom_call.1} parent=31 // pred_region
          %s803 = sand.u32 %s31, 1
          %s804 = scalar_lea.sflag [#allocation4], %s803
          %s805 = sand.u32 %s317, 1
          %s806 = scalar_lea.vmem [#allocation15], %s805
          %s808 = ssub.s32 16, 16
          %809 = vsyncadd %s804, %s808
          %s810 = smul.addr %s31, 16
          %s811 = scalar_lea.hbm %s11, %s810
          %s813 = sshll.u32 %s806, 4
          %s814 = int_to_ptr.vmem [resolvable:$true] %s813
          %816 = dma.hbm_to_vmem [thread:$0]  %s811, 16, %s814, %s804
        $region72: #{tpu_custom_call.1} parent=31 // pred_fallthru
          _
        // Predicated region
        $region73: #{tpu_custom_call.1} parent=31 // pred_check
          %p817 = pneg %p353
        $region74: #{tpu_custom_call.1} parent=31 // pred_check_branch
          %819 = sbr.rel (%p817) target = $region76
        $region75: #{tpu_custom_call.1} parent=31 // pred_region
          %s820 = sand.u32 %s31, 1
          %s821 = scalar_lea.sflag [#allocation4], %s820
          %s822 = sand.u32 %s343, 1
          %s823 = scalar_lea.vmem [#allocation16], %s822
          %s825 = ssub.s32 16, 16
          %826 = vsyncadd %s821, %s825
          %s827 = smul.addr %s31, 16
          %s828 = scalar_lea.hbm %s12, %s827
          %s830 = sshll.u32 %s823, 4
          %s831 = int_to_ptr.vmem [resolvable:$true] %s830
          %833 = dma.hbm_to_vmem [thread:$0]  %s828, 16, %s831, %s821
        $region76: #{tpu_custom_call.1} parent=31 // pred_fallthru
          _
        // Predicated region
        $region77: #{tpu_custom_call.1} parent=31 // pred_check
          %p834 = pneg %p379
        $region78: #{tpu_custom_call.1} parent=31 // pred_check_branch
          %836 = sbr.rel (%p834) target = $region80
        $region79: #{tpu_custom_call.1} parent=31 // pred_region
          %s837 = sand.u32 %s31, 1
          %s838 = scalar_lea.sflag [#allocation4], %s837
          %s839 = sand.u32 %s369, 1
          %s840 = scalar_lea.vmem [#allocation17], %s839
          %s842 = ssub.s32 16, 16
          %843 = vsyncadd %s838, %s842
          %s844 = smul.addr %s31, 16
          %s845 = scalar_lea.hbm %s13, %s844
          %s847 = sshll.u32 %s840, 4
          %s848 = int_to_ptr.vmem [resolvable:$true] %s847
          %850 = dma.hbm_to_vmem [thread:$0]  %s845, 16, %s848, %s838
        $region80: #{tpu_custom_call.1} parent=31 // pred_fallthru
          _
        // Predicated region
        $region81: #{tpu_custom_call.1} parent=31 // pred_check
          %p851 = pneg %p405
        $region82: #{tpu_custom_call.1} parent=31 // pred_check_branch
          %853 = sbr.rel (%p851) target = $region84
        $region83: #{tpu_custom_call.1} parent=31 // pred_region
          %s854 = sand.u32 %s31, 1
          %s855 = scalar_lea.sflag [#allocation4], %s854
          %s856 = sand.u32 %s395, 1
          %s857 = scalar_lea.vmem [#allocation18], %s856
          %s859 = ssub.s32 16, 16
          %860 = vsyncadd %s855, %s859
          %s861 = smul.addr %s31, 16
          %s862 = scalar_lea.hbm %s14, %s861
          %s864 = sshll.u32 %s857, 4
          %s865 = int_to_ptr.vmem [resolvable:$true] %s864
          %867 = dma.hbm_to_vmem [thread:$0]  %s862, 16, %s865, %s855
        $region84: #{tpu_custom_call.1} parent=31 // pred_fallthru
          _
        // Predicated region
        $region85: #{tpu_custom_call.1} parent=31 // pred_check
          %p868 = pneg %p431
        $region86: #{tpu_custom_call.1} parent=31 // pred_check_branch
          %870 = sbr.rel (%p868) target = $region88
        $region87: #{tpu_custom_call.1} parent=31 // pred_region
          %s871 = sand.u32 %s31, 1
          %s872 = scalar_lea.sflag [#allocation4], %s871
          %s873 = sand.u32 %s421, 1
          %s874 = scalar_lea.vmem [#allocation19], %s873
          %s876 = ssub.s32 16, 16
          %877 = vsyncadd %s872, %s876
          %s878 = smul.addr %s31, 16
          %s879 = scalar_lea.hbm %s15, %s878
          %s881 = sshll.u32 %s874, 4
          %s882 = int_to_ptr.vmem [resolvable:$true] %s881
          %884 = dma.hbm_to_vmem [thread:$0]  %s879, 16, %s882, %s872
        $region88: #{tpu_custom_call.1} parent=31 // pred_fallthru
          _
        // Predicated region
        $region89: #{tpu_custom_call.1} parent=31 // pred_check
          %p885 = pneg %p457
        $region90: #{tpu_custom_call.1} parent=31 // pred_check_branch
          %887 = sbr.rel (%p885) target = $region92
        $region91: #{tpu_custom_call.1} parent=31 // pred_region
          %s888 = sand.u32 %s31, 1
          %s889 = scalar_lea.sflag [#allocation4], %s888
          %s890 = sand.u32 %s447, 1
          %s891 = smul.addr %s890, 512
          %s892 = scalar_lea.vmem [#allocation20], %s891
          %s894 = ssub.s32 8192, 8192
          %895 = vsyncadd %s889, %s894
          %s896 = smul.addr %s31, 64
          %s897 = smul.addr %s896, 128
          %s898 = scalar_lea.hbm %s16, %s897
          %s899 = sshll.u32 %s892, 4
          %s900 = int_to_ptr.vmem [resolvable:$true] %s899
          %905 = dma.hbm_to_vmem [thread:$0]  %s898, 8192, %s900, %s889, 2048, 2048, 128
        $region92: #{tpu_custom_call.1} parent=31 // pred_fallthru
          _
        // Predicated region
        $region93: #{tpu_custom_call.1} parent=31 // pred_check
          %p906 = pneg %p483
        $region94: #{tpu_custom_call.1} parent=31 // pred_check_branch
          %908 = sbr.rel (%p906) target = $region96
        $region95: #{tpu_custom_call.1} parent=31 // pred_region
          %s909 = sand.u32 %s31, 1
          %s910 = scalar_lea.sflag [#allocation4], %s909
          %s911 = sand.u32 %s473, 1
          %s912 = smul.addr %s911, 16
          %s913 = scalar_lea.vmem [#allocation21], %s912
          %s915 = ssub.s32 256, 256
          %916 = vsyncadd %s910, %s915
          %s917 = smul.addr %s31, 16
          %s918 = smul.addr %s917, 16
          %s919 = scalar_lea.hbm %s17, %s918
          %s921 = sshll.u32 %s913, 4
          %s922 = int_to_ptr.vmem [resolvable:$true] %s921
          %924 = dma.hbm_to_vmem [thread:$0]  %s919, 256, %s922, %s910
        $region96: #{tpu_custom_call.1} parent=31 // pred_fallthru
          _
        // Predicated region
        $region97: #{tpu_custom_call.1} parent=31 // pred_check
          %p925 = pneg %p509
        $region98: #{tpu_custom_call.1} parent=31 // pred_check_branch
          %927 = sbr.rel (%p925) target = $region100
        $region99: #{tpu_custom_call.1} parent=31 // pred_region
          %s928 = sand.u32 %s31, 1
          %s929 = scalar_lea.sflag [#allocation4], %s928
          %s930 = sand.u32 %s499, 1
          %s931 = smul.addr %s930, 512
          %s932 = scalar_lea.vmem [#allocation22], %s931
          %s934 = ssub.s32 8192, 8192
          %935 = vsyncadd %s929, %s934
          %s936 = smul.addr %s31, 64
          %s937 = smul.addr %s936, 128
          %s938 = scalar_lea.hbm %s18, %s937
          %s939 = sshll.u32 %s932, 4
          %s940 = int_to_ptr.vmem [resolvable:$true] %s939
          %945 = dma.hbm_to_vmem [thread:$0]  %s938, 8192, %s940, %s929, 2048, 2048, 128
        $region100: #{tpu_custom_call.1} parent=31 // pred_fallthru
          _
        // Predicated region
        $region101: #{tpu_custom_call.1} parent=31 // pred_check
          %p946 = pneg %p535
        $region102: #{tpu_custom_call.1} parent=31 // pred_check_branch
          %948 = sbr.rel (%p946) target = $region104
        $region103: #{tpu_custom_call.1} parent=31 // pred_region
          %s949 = sand.u32 %s31, 1
          %s950 = scalar_lea.sflag [#allocation4], %s949
          %s951 = sand.u32 %s525, 1
          %s952 = scalar_lea.vmem [#allocation23], %s951
          %s954 = ssub.s32 16, 16
          %955 = vsyncadd %s950, %s954
          %s956 = smul.addr %s31, 16
          %s957 = scalar_lea.hbm %s19, %s956
          %s959 = sshll.u32 %s952, 4
          %s960 = int_to_ptr.vmem [resolvable:$true] %s959
          %962 = dma.hbm_to_vmem [thread:$0]  %s957, 16, %s960, %s950
        $region104: #{tpu_custom_call.1} parent=31 // pred_fallthru
          _
      $region32: #{tpu_custom_call.1} parent=5 // pred_fallthru
        _
      %p963 = scmp.le.s32.totalorder 1, %s31
      %p964 = scmp.lt.s32.totalorder %s31, 3
      %p965 = pnand %p963, %p964
      %p966 = pneg %p965
      // Predicated region
      $region105: #{tpu_custom_call.1} parent=5 // pred_check
        _
      $region106: #{tpu_custom_call.1} parent=5 // pred_check_branch
        %968 = sbr.rel (%p965) target = $region108
      $region107: #{tpu_custom_call.1} parent=5 // pred_region
        %s969 = ssub.s32 %s31, 1
        // Predicated region
        $region109: #{tpu_custom_call.1} parent=107 // pred_check
          %p970 = pneg %p52
        $region110: #{tpu_custom_call.1} parent=107 // pred_check_branch
          %972 = sbr.rel (%p970) target = $region112
        $region111: #{tpu_custom_call.1} parent=107 // pred_region
          %973 = dma.done [#allocation4], 256
        $region112: #{tpu_custom_call.1} parent=107 // pred_fallthru
          _
        // Predicated region
        $region113: #{tpu_custom_call.1} parent=107 // pred_check
          %p974 = pneg %p73
        $region114: #{tpu_custom_call.1} parent=107 // pred_check_branch
          %976 = sbr.rel (%p974) target = $region116
        $region115: #{tpu_custom_call.1} parent=107 // pred_region
          %977 = dma.done [#allocation7], 32
        $region116: #{tpu_custom_call.1} parent=107 // pred_fallthru
          _
        %s978 = sand.u32 %s36, 1
        %s979 = scalar_lea.sflag [#allocation4], %s978
        %s980 = sand.u32 %s86, 1
        %s981 = smul.addr %s980, 32
        %s982 = scalar_lea.vmem [#allocation8], %s981
        // Predicated region
        $region117: #{tpu_custom_call.1} parent=107 // pred_check
          %p983 = pneg %p99
        $region118: #{tpu_custom_call.1} parent=107 // pred_check_branch
          %985 = sbr.rel (%p983) target = $region120
        $region119: #{tpu_custom_call.1} parent=107 // pred_region
          %986 = dma.done %s979, 512
        $region120: #{tpu_custom_call.1} parent=107 // pred_fallthru
          _
        %s987 = sand.u32 %s36, 1
        %s988 = scalar_lea.sflag [#allocation4], %s987
        %s989 = sand.u32 %s138, 1
        %s990 = smul.addr %s989, 32
        %s991 = scalar_lea.vmem [#allocation9], %s990
        // Predicated region
        $region121: #{tpu_custom_call.1} parent=107 // pred_check
          %p992 = pneg %p151
        $region122: #{tpu_custom_call.1} parent=107 // pred_check_branch
          %994 = sbr.rel (%p992) target = $region124
        $region123: #{tpu_custom_call.1} parent=107 // pred_region
          %995 = dma.done %s988, 512
        $region124: #{tpu_custom_call.1} parent=107 // pred_fallthru
          _
        %s996 = sand.u32 %s36, 1
        %s997 = scalar_lea.sflag [#allocation4], %s996
        %s998 = sand.u32 %s190, 1
        %s999 = smul.addr %s998, 32
        %s1000 = scalar_lea.vmem [#allocation10], %s999
        // Predicated region
        $region125: #{tpu_custom_call.1} parent=107 // pred_check
          %p1001 = pneg %p203
        $region126: #{tpu_custom_call.1} parent=107 // pred_check_branch
          %1003 = sbr.rel (%p1001) target = $region128
        $region127: #{tpu_custom_call.1} parent=107 // pred_region
          %1004 = dma.done %s997, 512
        $region128: #{tpu_custom_call.1} parent=107 // pred_fallthru
          _
        %s1005 = sand.u32 %s36, 1
        %s1006 = scalar_lea.sflag [#allocation4], %s1005
        %s1007 = sand.u32 %s216, 1
        %s1008 = scalar_lea.vmem [#allocation11], %s1007
        // Predicated region
        $region129: #{tpu_custom_call.1} parent=107 // pred_check
          %p1009 = pneg %p229
        $region130: #{tpu_custom_call.1} parent=107 // pred_check_branch
          %1011 = sbr.rel (%p1009) target = $region132
        $region131: #{tpu_custom_call.1} parent=107 // pred_region
          %1012 = dma.done %s1006, 16
        $region132: #{tpu_custom_call.1} parent=107 // pred_fallthru
          _
        %s1013 = sand.u32 %s36, 1
        %s1014 = scalar_lea.sflag [#allocation4], %s1013
        %s1015 = sand.u32 %s242, 1
        %s1016 = smul.addr %s1015, 32
        %s1017 = scalar_lea.vmem [#allocation12], %s1016
        // Predicated region
        $region133: #{tpu_custom_call.1} parent=107 // pred_check
          %p1018 = pneg %p255
        $region134: #{tpu_custom_call.1} parent=107 // pred_check_branch
          %1020 = sbr.rel (%p1018) target = $region136
        $region135: #{tpu_custom_call.1} parent=107 // pred_region
          %1021 = dma.done %s1014, 512
        $region136: #{tpu_custom_call.1} parent=107 // pred_fallthru
          _
        %s1022 = sand.u32 %s36, 1
        %s1023 = scalar_lea.sflag [#allocation4], %s1022
        %s1024 = sand.u32 %s268, 1
        %s1025 = scalar_lea.vmem [#allocation13], %s1024
        // Predicated region
        $region137: #{tpu_custom_call.1} parent=107 // pred_check
          %p1026 = pneg %p281
        $region138: #{tpu_custom_call.1} parent=107 // pred_check_branch
          %1028 = sbr.rel (%p1026) target = $region140
        $region139: #{tpu_custom_call.1} parent=107 // pred_region
          %1029 = dma.done %s1023, 16
        $region140: #{tpu_custom_call.1} parent=107 // pred_fallthru
          _
        %s1030 = sand.u32 %s36, 1
        %s1031 = scalar_lea.sflag [#allocation4], %s1030
        %s1032 = sand.u32 %s294, 1
        %s1033 = scalar_lea.vmem [#allocation14], %s1032
        // Predicated region
        $region141: #{tpu_custom_call.1} parent=107 // pred_check
          %p1034 = pneg %p307
        $region142: #{tpu_custom_call.1} parent=107 // pred_check_branch
          %1036 = sbr.rel (%p1034) target = $region144
        $region143: #{tpu_custom_call.1} parent=107 // pred_region
          %1037 = dma.done %s1031, 16
        $region144: #{tpu_custom_call.1} parent=107 // pred_fallthru
          _
        %s1038 = sand.u32 %s36, 1
        %s1039 = scalar_lea.sflag [#allocation4], %s1038
        %s1040 = sand.u32 %s320, 1
        %s1041 = scalar_lea.vmem [#allocation15], %s1040
        // Predicated region
        $region145: #{tpu_custom_call.1} parent=107 // pred_check
          %p1042 = pneg %p333
        $region146: #{tpu_custom_call.1} parent=107 // pred_check_branch
          %1044 = sbr.rel (%p1042) target = $region148
        $region147: #{tpu_custom_call.1} parent=107 // pred_region
          %1045 = dma.done %s1039, 16
        $region148: #{tpu_custom_call.1} parent=107 // pred_fallthru
          _
        %s1046 = sand.u32 %s36, 1
        %s1047 = scalar_lea.sflag [#allocation4], %s1046
        %s1048 = sand.u32 %s346, 1
        %s1049 = scalar_lea.vmem [#allocation16], %s1048
        // Predicated region
        $region149: #{tpu_custom_call.1} parent=107 // pred_check
          %p1050 = pneg %p359
        $region150: #{tpu_custom_call.1} parent=107 // pred_check_branch
          %1052 = sbr.rel (%p1050) target = $region152
        $region151: #{tpu_custom_call.1} parent=107 // pred_region
          %1053 = dma.done %s1047, 16
        $region152: #{tpu_custom_call.1} parent=107 // pred_fallthru
          _
        %s1054 = sand.u32 %s36, 1
        %s1055 = scalar_lea.sflag [#allocation4], %s1054
        %s1056 = sand.u32 %s372, 1
        %s1057 = scalar_lea.vmem [#allocation17], %s1056
        // Predicated region
        $region153: #{tpu_custom_call.1} parent=107 // pred_check
          %p1058 = pneg %p385
        $region154: #{tpu_custom_call.1} parent=107 // pred_check_branch
          %1060 = sbr.rel (%p1058) target = $region156
        $region155: #{tpu_custom_call.1} parent=107 // pred_region
          %1061 = dma.done %s1055, 16
        $region156: #{tpu_custom_call.1} parent=107 // pred_fallthru
          _
        %s1062 = sand.u32 %s36, 1
        %s1063 = scalar_lea.sflag [#allocation4], %s1062
        %s1064 = sand.u32 %s398, 1
        %s1065 = scalar_lea.vmem [#allocation18], %s1064
        // Predicated region
        $region157: #{tpu_custom_call.1} parent=107 // pred_check
          %p1066 = pneg %p411
        $region158: #{tpu_custom_call.1} parent=107 // pred_check_branch
          %1068 = sbr.rel (%p1066) target = $region160
        $region159: #{tpu_custom_call.1} parent=107 // pred_region
          %1069 = dma.done %s1063, 16
        $region160: #{tpu_custom_call.1} parent=107 // pred_fallthru
          _
        %s1070 = sand.u32 %s36, 1
        %s1071 = scalar_lea.sflag [#allocation4], %s1070
        %s1072 = sand.u32 %s424, 1
        %s1073 = scalar_lea.vmem [#allocation19], %s1072
        // Predicated region
        $region161: #{tpu_custom_call.1} parent=107 // pred_check
          %p1074 = pneg %p437
        $region162: #{tpu_custom_call.1} parent=107 // pred_check_branch
          %1076 = sbr.rel (%p1074) target = $region164
        $region163: #{tpu_custom_call.1} parent=107 // pred_region
          %1077 = dma.done %s1071, 16
        $region164: #{tpu_custom_call.1} parent=107 // pred_fallthru
          _
        %s1078 = sand.u32 %s36, 1
        %s1079 = scalar_lea.sflag [#allocation4], %s1078
        %s1080 = sand.u32 %s450, 1
        %s1081 = smul.addr %s1080, 512
        %s1082 = scalar_lea.vmem [#allocation20], %s1081
        // Predicated region
        $region165: #{tpu_custom_call.1} parent=107 // pred_check
          %p1083 = pneg %p463
        $region166: #{tpu_custom_call.1} parent=107 // pred_check_branch
          %1085 = sbr.rel (%p1083) target = $region168
        $region167: #{tpu_custom_call.1} parent=107 // pred_region
          %1086 = dma.done %s1079, 8192
        $region168: #{tpu_custom_call.1} parent=107 // pred_fallthru
          _
        %s1087 = sand.u32 %s36, 1
        %s1088 = scalar_lea.sflag [#allocation4], %s1087
        %s1089 = sand.u32 %s476, 1
        %s1090 = smul.addr %s1089, 16
        %s1091 = scalar_lea.vmem [#allocation21], %s1090
        // Predicated region
        $region169: #{tpu_custom_call.1} parent=107 // pred_check
          %p1092 = pneg %p489
        $region170: #{tpu_custom_call.1} parent=107 // pred_check_branch
          %1094 = sbr.rel (%p1092) target = $region172
        $region171: #{tpu_custom_call.1} parent=107 // pred_region
          %1095 = dma.done %s1088, 256
        $region172: #{tpu_custom_call.1} parent=107 // pred_fallthru
          _
        %s1096 = sand.u32 %s36, 1
        %s1097 = scalar_lea.sflag [#allocation4], %s1096
        %s1098 = sand.u32 %s502, 1
        %s1099 = smul.addr %s1098, 512
        %s1100 = scalar_lea.vmem [#allocation22], %s1099
        // Predicated region
        $region173: #{tpu_custom_call.1} parent=107 // pred_check
          %p1101 = pneg %p515
        $region174: #{tpu_custom_call.1} parent=107 // pred_check_branch
          %1103 = sbr.rel (%p1101) target = $region176
        $region175: #{tpu_custom_call.1} parent=107 // pred_region
          %1104 = dma.done %s1097, 8192
        $region176: #{tpu_custom_call.1} parent=107 // pred_fallthru
          _
        %s1105 = sand.u32 %s36, 1
        %s1106 = scalar_lea.sflag [#allocation4], %s1105
        %s1107 = sand.u32 %s528, 1
        %s1108 = scalar_lea.vmem [#allocation23], %s1107
        // Predicated region
        $region177: #{tpu_custom_call.1} parent=107 // pred_check
          %p1109 = pneg %p541
        $region178: #{tpu_custom_call.1} parent=107 // pred_check_branch
          %1111 = sbr.rel (%p1109) target = $region180
        $region179: #{tpu_custom_call.1} parent=107 // pred_region
          %1112 = dma.done %s1106, 16
        $region180: #{tpu_custom_call.1} parent=107 // pred_fallthru
          _
        %p1113 = pneg %p52
        %p1114 = pneg %p49
        %p1115 = pneg %p73
        %p1116 = pneg %p70
        %s1117 = sand.u32 %s36, 1
        %s1118 = scalar_lea.sflag [#allocation4], %s1117
        %s1119 = sand.u32 %s86, 1
        %s1120 = smul.addr %s1119, 32
        %s1121 = scalar_lea.vmem [#allocation8], %s1120
        %p1122 = pneg %p99
        %p1123 = pneg %p96
        %p1124 = scmp.lt.s32.totalorder %s36, 1
        %s1125 = scalar_select %p1124, %s36, 1
        %s1126 = scalar_lea.vmem %s3, %s1125
        %p1127 = pneg %p125
        %p1128 = pneg %p122
        %s1129 = sand.u32 %s36, 1
        %s1130 = scalar_lea.sflag [#allocation4], %s1129
        %s1131 = sand.u32 %s138, 1
        %s1132 = smul.addr %s1131, 32
        %s1133 = scalar_lea.vmem [#allocation9], %s1132
        %p1134 = pneg %p151
        %p1135 = pneg %p148
        %p1136 = scmp.lt.s32.totalorder %s36, 1
        %s1137 = scalar_select %p1136, %s36, 1
        %s1138 = scalar_lea.vmem %s5, %s1137
        %p1139 = pneg %p177
        %p1140 = pneg %p174
        %s1141 = sand.u32 %s36, 1
        %s1142 = scalar_lea.sflag [#allocation4], %s1141
        %s1143 = sand.u32 %s190, 1
        %s1144 = smul.addr %s1143, 32
        %s1145 = scalar_lea.vmem [#allocation10], %s1144
        %p1146 = pneg %p203
        %p1147 = pneg %p200
        %s1148 = sand.u32 %s36, 1
        %s1149 = scalar_lea.sflag [#allocation4], %s1148
        %s1150 = sand.u32 %s216, 1
        %s1151 = scalar_lea.vmem [#allocation11], %s1150
        %p1152 = pneg %p229
        %p1153 = pneg %p226
        %s1154 = sand.u32 %s36, 1
        %s1155 = scalar_lea.sflag [#allocation4], %s1154
        %s1156 = sand.u32 %s242, 1
        %s1157 = smul.addr %s1156, 32
        %s1158 = scalar_lea.vmem [#allocation12], %s1157
        %p1159 = pneg %p255
        %p1160 = pneg %p252
        %s1161 = sand.u32 %s36, 1
        %s1162 = scalar_lea.sflag [#allocation4], %s1161
        %s1163 = sand.u32 %s268, 1
        %s1164 = scalar_lea.vmem [#allocation13], %s1163
        %p1165 = pneg %p281
        %p1166 = pneg %p278
        %s1167 = sand.u32 %s36, 1
        %s1168 = scalar_lea.sflag [#allocation4], %s1167
        %s1169 = sand.u32 %s294, 1
        %s1170 = scalar_lea.vmem [#allocation14], %s1169
        %p1171 = pneg %p307
        %p1172 = pneg %p304
        %s1173 = sand.u32 %s36, 1
        %s1174 = scalar_lea.sflag [#allocation4], %s1173
        %s1175 = sand.u32 %s320, 1
        %s1176 = scalar_lea.vmem [#allocation15], %s1175
        %p1177 = pneg %p333
        %p1178 = pneg %p330
        %s1179 = sand.u32 %s36, 1
        %s1180 = scalar_lea.sflag [#allocation4], %s1179
        %s1181 = sand.u32 %s346, 1
        %s1182 = scalar_lea.vmem [#allocation16], %s1181
        %p1183 = pneg %p359
        %p1184 = pneg %p356
        %s1185 = sand.u32 %s36, 1
        %s1186 = scalar_lea.sflag [#allocation4], %s1185
        %s1187 = sand.u32 %s372, 1
        %s1188 = scalar_lea.vmem [#allocation17], %s1187
        %p1189 = pneg %p385
        %p1190 = pneg %p382
        %s1191 = sand.u32 %s36, 1
        %s1192 = scalar_lea.sflag [#allocation4], %s1191
        %s1193 = sand.u32 %s398, 1
        %s1194 = scalar_lea.vmem [#allocation18], %s1193
        %p1195 = pneg %p411
        %p1196 = pneg %p408
        %s1197 = sand.u32 %s36, 1
        %s1198 = scalar_lea.sflag [#allocation4], %s1197
        %s1199 = sand.u32 %s424, 1
        %s1200 = scalar_lea.vmem [#allocation19], %s1199
        %p1201 = pneg %p437
        %p1202 = pneg %p434
        %s1203 = sand.u32 %s36, 1
        %s1204 = scalar_lea.sflag [#allocation4], %s1203
        %s1205 = sand.u32 %s450, 1
        %s1206 = smul.addr %s1205, 512
        %s1207 = scalar_lea.vmem [#allocation20], %s1206
        %p1208 = pneg %p463
        %p1209 = pneg %p460
        %s1210 = sand.u32 %s36, 1
        %s1211 = scalar_lea.sflag [#allocation4], %s1210
        %s1212 = sand.u32 %s476, 1
        %s1213 = smul.addr %s1212, 16
        %s1214 = scalar_lea.vmem [#allocation21], %s1213
        %p1215 = pneg %p489
        %p1216 = pneg %p486
        %s1217 = sand.u32 %s36, 1
        %s1218 = scalar_lea.sflag [#allocation4], %s1217
        %s1219 = sand.u32 %s502, 1
        %s1220 = smul.addr %s1219, 512
        %s1221 = scalar_lea.vmem [#allocation22], %s1220
        %p1222 = pneg %p515
        %p1223 = pneg %p512
        %s1224 = sand.u32 %s36, 1
        %s1225 = scalar_lea.sflag [#allocation4], %s1224
        %s1226 = sand.u32 %s528, 1
        %s1227 = scalar_lea.vmem [#allocation23], %s1226
        %p1228 = pneg %p541
        %p1229 = pneg %p538
        %p1230 = pneg %p562
        %p1231 = pneg %p559
        %p1232 = pneg %p583
        %p1233 = pneg %p580
        %p1234 = pneg %p604
        %p1235 = pneg %p601
        %p1236 = scmp.lt.s32.totalorder %s36, 1
        %s1237 = scalar_select %p1236, %s36, 1
        %s1238 = scalar_lea.vmem %s3, %s1237
        %p1239 = scmp.lt.s32.totalorder %s36, 1
        %s1240 = scalar_select %p1239, %s36, 1
        %s1241 = scalar_lea.vmem %s5, %s1240
        %p1242 = scmp.eq.s32.totalorder %s36, 0
        // Predicated region
        $region181: #{tpu_custom_call.1} parent=107 // pred_check
          %p1243 = pneg %p1242
        $region182: #{tpu_custom_call.1} parent=107 // pred_check_branch
          %1245 = sbr.rel (%p1243) target = $region184
        $region183: #{tpu_custom_call.1} parent=107 // pred_region
          %v1246 = vld [vmem:[#allocation3] sm:$0xff]
          %v1247 = vld [vmem:[#allocation3 + $0x8] sm:$0xff]
          %vm1248 = vcmask 261120
          %1249 = vst.msk [vmem:[#allocation2] sm:$0xff] %vm1248, %v1246
          %1250 = vst.msk [vmem:[#allocation2 + $0x8] sm:$0xff] %vm1248, %v1247
        $region184: #{tpu_custom_call.1} parent=107 // pred_fallthru
          _
        %v1251 = vld [vmem:[#allocation2] sm:$0xff]
        %v1252 = vld [vmem:[#allocation2 + $0x8] sm:$0xff]
        %v1253 = vld [vmem:[#allocation6] sm:$0x3]
        %v1254 = vld [vmem:[%s982] sm:$0xff]
        %v1255 = vld [vmem:[%s982 + $0x8] sm:$0xff]
        %v1256 = vld [vmem:[%s982 + $0x10] sm:$0xff]
        %v1257 = vld [vmem:[%s982 + $0x18] sm:$0xff]
        %v1258 = vld [vmem:[%s1238] sm:$0x1]
        %v1260 = vlaneseq
        %v1261 = vshrl.u32 %v1260, 7
        %v1262 = vsub.s32 0, %v1261
        %v1263 = vrot.slane %v1258, %v1262
        %vm1265 = vcmask 261120
        %v1267 = vsel %vm1265, %v1251, 0
        %v1270 = vsel %vm1265, %v1252, 0
        %1272 = vmatprep.subr.mxu0 0.0
        %1273 = vmatpush1.msra.mxu0 0.0
        %1274 = vmatprep.subr.mxu0 0.0
        %1275 = vmatpush1.msra.mxu0 0.0
        %1276 = vmatprep.subr.mxu0 0.0
        %1277 = vmatpush1.msra.mxu0 0.0
        %1278 = vmatprep.subr.mxu0 0.0
        %1279 = vmatpush1.msra.mxu0 0.0
        %1280 = vmatprep.subr.mxu0 0.0
        %1281 = vmatpush1.msra.mxu0 0.0
        %1282 = vmatprep.subr.mxu0 0.0
        %1283 = vmatpush1.msra.mxu0 0.0
        %1284 = vmatprep.subr.mxu0 0.0
        %1285 = vmatpush1.msra.mxu0 0.0
        %1286 = vmatprep.subr.mxu0 0.0
        %1287 = vmatpush1.msra.mxu0 0.0
        %1288 = vmatprep.subr.mxu0 0.0
        %1289 = vmatpush1.msra.mxu0 0.0
        %1290 = vmatprep.subr.mxu0 0.0
        %1291 = vmatpush1.msra.mxu0 0.0
        %1292 = vmatprep.subr.mxu0 0.0
        %1293 = vmatpush1.msra.mxu0 0.0
        %1294 = vmatprep.subr.mxu0 0.0
        %1295 = vmatpush1.msra.mxu0 0.0
        %1296 = vmatprep.subr.mxu0 0.0
        %1297 = vmatpush1.msra.mxu0 %v1257
        %1298 = vmatprep.subr.mxu0 0.0
        %1299 = vmatpush1.msra.mxu0 %v1256
        %1300 = vmatprep.subr.mxu0 0.0
        %1301 = vmatpush1.msra.mxu0 %v1255
        %1302 = vmatprep.subr.mxu0 0.0
        %1303 = vmatpush1.msra.mxu0 %v1254
        %1304 = vmatprep.subr.mxu0 0.0
        %1305 = vmatpush2.msra.mxu0 0.0
        %1306 = vmatprep.subr.mxu0 0.0
        %1307 = vmatpush2.msra.mxu0 0.0
        %1308 = vmatprep.subr.mxu0 0.0
        %1309 = vmatpush2.msra.mxu0 0.0
        %1310 = vmatprep.subr.mxu0 0.0
        %1311 = vmatpush2.msra.mxu0 0.0
        %1312 = vmatprep.subr.mxu0 0.0
        %1313 = vmatpush2.msra.mxu0 0.0
        %1314 = vmatprep.subr.mxu0 0.0
        %1315 = vmatpush2.msra.mxu0 0.0
        %1316 = vmatprep.subr.mxu0 0.0
        %1317 = vmatpush2.msra.mxu0 0.0
        %1318 = vmatprep.subr.mxu0 0.0
        %1319 = vmatpush2.msra.mxu0 0.0
        %1320 = vmatprep.subr.mxu0 0.0
        %1321 = vmatpush2.msra.mxu0 0.0
        %1322 = vmatprep.subr.mxu0 0.0
        %1323 = vmatpush2.msra.mxu0 0.0
        %1324 = vmatprep.subr.mxu0 0.0
        %1325 = vmatpush2.msra.mxu0 0.0
        %1326 = vmatprep.subr.mxu0 0.0
        %1327 = vmatpush2.msra.mxu0 0.0
        %1328 = vmatprep.subr.mxu0 0.0
        %1329 = vmatpush2.msra.mxu0 0.0
        %1330 = vmatprep.subr.mxu0 0.0
        %1331 = vmatpush2.msra.mxu0 0.0
        %1332 = vmatprep.subr.mxu0 0.0
        %1333 = vmatpush2.msra.mxu0 0.0
        %1334 = vmatprep.subr.mxu0 0.0
        %1335 = vmatpush2.msra.mxu0 0.0
        %1336 = vmatprep.mubr.f32.mxu0 0.0
        %1337 = vmatmul.mubr.f32.gmra.mxu0 %v1267
        %v1338 = vpop.f32.mrf.mxu0
        %v1339 = vadd.f32 %v1263, %v1338
        %v1340 = vpop.f32.mrf.mxu0
        %1341 = vmatprep.mubr.f32.mxu0 0.0
        %1342 = vmatmul.mubr.f32.gmra.mxu0 %v1270
        %v1343 = vpop.f32.mrf.mxu0
        %v1344 = vadd.f32 %v1263, %v1343
        %v1345 = vpop.f32.mrf.mxu0
        %1346 = vdwg.mxu0
        %1348 = vrot.lane.b32.xlu0 %v1339, 96
        %v1349 = vpop.permute.xlu0 %1348
        %vm1350 = vcmask 64512
        %v1351 = vsel %vm1350, %v1339, 0
        %v1353 = vsel %vm1350, %v1349, 0
        %1355 = vmatprep.subr.mxu0 0.0
        %1356 = vmatpush1.xpose.msra.mxu0 0.0
        %1357 = vmatprep.subr.mxu0 0.0
        %1358 = vmatpush1.xpose.msra.mxu0 0.0
        %1359 = vmatprep.subr.mxu0 0.0
        %1360 = vmatpush1.xpose.msra.mxu0 0.0
        %1361 = vmatprep.subr.mxu0 0.0
        %1362 = vmatpush1.xpose.msra.mxu0 0.0
        %1363 = vmatprep.subr.mxu0 0.0
        %1364 = vmatpush1.xpose.msra.mxu0 0.0
        %1365 = vmatprep.subr.mxu0 0.0
        %1366 = vmatpush1.xpose.msra.mxu0 0.0
        %1367 = vmatprep.subr.mxu0 0.0
        %1368 = vmatpush1.xpose.msra.mxu0 0.0
        %1369 = vmatprep.subr.mxu0 0.0
        %1370 = vmatpush1.xpose.msra.mxu0 0.0
        %1371 = vmatprep.subr.mxu0 0.0
        %1372 = vmatpush1.xpose.msra.mxu0 0.0
        %1373 = vmatprep.subr.mxu0 0.0
        %1374 = vmatpush1.xpose.msra.mxu0 0.0
        %1375 = vmatprep.subr.mxu0 0.0
        %1376 = vmatpush1.xpose.msra.mxu0 0.0
        %1377 = vmatprep.subr.mxu0 0.0
        %1378 = vmatpush1.xpose.msra.mxu0 0.0
        %1379 = vmatprep.subr.mxu0 0.0
        %1380 = vmatpush1.xpose.msra.mxu0 0.0
        %1381 = vmatprep.subr.mxu0 0.0
        %1382 = vmatpush1.xpose.msra.mxu0 0.0
        %1383 = vmatprep.subr.mxu0 0.0
        %1384 = vmatpush1.xpose.msra.mxu0 0.0
        %1385 = vmatprep.subr.mxu0 0.0
        %1386 = vmatpush1.xpose.msra.mxu0 %v1353
        %1387 = vmatprep.subr.mxu0 0.0
        %1388 = vmatpush2.xpose.msra.mxu0 0.0
        %1389 = vmatprep.subr.mxu0 0.0
        %1390 = vmatpush2.xpose.msra.mxu0 0.0
        %1391 = vmatprep.subr.mxu0 0.0
        %1392 = vmatpush2.xpose.msra.mxu0 0.0
        %1393 = vmatprep.subr.mxu0 0.0
        %1394 = vmatpush2.xpose.msra.mxu0 0.0
        %1395 = vmatprep.subr.mxu0 0.0
        %1396 = vmatpush2.xpose.msra.mxu0 0.0
        %1397 = vmatprep.subr.mxu0 0.0
        %1398 = vmatpush2.xpose.msra.mxu0 0.0
        %1399 = vmatprep.subr.mxu0 0.0
        %1400 = vmatpush2.xpose.msra.mxu0 0.0
        %1401 = vmatprep.subr.mxu0 0.0
        %1402 = vmatpush2.xpose.msra.mxu0 0.0
        %1403 = vmatprep.subr.mxu0 0.0
        %1404 = vmatpush2.xpose.msra.mxu0 0.0
        %1405 = vmatprep.subr.mxu0 0.0
        %1406 = vmatpush2.xpose.msra.mxu0 0.0
        %1407 = vmatprep.subr.mxu0 0.0
        %1408 = vmatpush2.xpose.msra.mxu0 0.0
        %1409 = vmatprep.subr.mxu0 0.0
        %1410 = vmatpush2.xpose.msra.mxu0 0.0
        %1411 = vmatprep.subr.mxu0 0.0
        %1412 = vmatpush2.xpose.msra.mxu0 0.0
        %1413 = vmatprep.subr.mxu0 0.0
        %1414 = vmatpush2.xpose.msra.mxu0 0.0
        %1415 = vmatprep.subr.mxu0 0.0
        %1416 = vmatpush2.xpose.msra.mxu0 0.0
        %1417 = vmatprep.subr.mxu0 0.0
        %1418 = vmatpush2.xpose.msra.mxu0 0.0
        %1419 = vmatprep.mubr.f32.mxu0 0.0
        %1420 = vmatmul.mubr.f32.gmra.mxu0 %v1351
        %v1421 = vpop.f32.mrf.mxu0
        %v1422 = vadd.f32 0.0, %v1421
        %v1423 = vpop.f32.mrf.mxu0
        %1424 = vdwg.mxu0
        %v1425 = vmul.f32 %v1422, 0.35355338
        %v1426 = vsel %vm1350, %v1425, -inf
        %1427 = vmax.xlane.f32.xlu0 %v1426
        %v1428 = vpop.xlane.xlu0 %1427
        %v1429 = vsub.f32 %v1425, %v1428
        %v1430 = vmul.f32 %v1429, 1.442695
        %v1431 = vpow.pop %v1430
        %v1432 = vsel %vm1350, %v1431, 0.0
        %1433 = vadd.xlane.f32.xlu0 %v1432
        %v1434 = vpop.xlane.xlu0 %1433
        %v1435 = vrcp.pop %v1434
        %v1436 = vmul.f32 %v1431, %v1435
        %1437 = vrot.lane.b32.xlu0 %v1339, 64
        %v1438 = vpop.permute.xlu0 %1437
        %v1441 = vsel %vm1350, %v1436, 0
        %1443 = vmatprep.subr.mxu0 0.0
        %1444 = vmatpush1.msra.mxu0 0.0
        %1445 = vmatprep.subr.mxu0 0.0
        %1446 = vmatpush1.msra.mxu0 0.0
        %1447 = vmatprep.subr.mxu0 0.0
        %1448 = vmatpush1.msra.mxu0 0.0
        %1449 = vmatprep.subr.mxu0 0.0
        %1450 = vmatpush1.msra.mxu0 0.0
        %1451 = vmatprep.subr.mxu0 0.0
        %1452 = vmatpush1.msra.mxu0 0.0
        %1453 = vmatprep.subr.mxu0 0.0
        %1454 = vmatpush1.msra.mxu0 0.0
        %1455 = vmatprep.subr.mxu0 0.0
        %1456 = vmatpush1.msra.mxu0 0.0
        %1457 = vmatprep.subr.mxu0 0.0
        %1458 = vmatpush1.msra.mxu0 0.0
        %1459 = vmatprep.subr.mxu0 0.0
        %1460 = vmatpush1.msra.mxu0 0.0
        %1461 = vmatprep.subr.mxu0 0.0
        %1462 = vmatpush1.msra.mxu0 0.0
        %1463 = vmatprep.subr.mxu0 0.0
        %1464 = vmatpush1.msra.mxu0 0.0
        %1465 = vmatprep.subr.mxu0 0.0
        %1466 = vmatpush1.msra.mxu0 0.0
        %1467 = vmatprep.subr.mxu0 0.0
        %1468 = vmatpush1.msra.mxu0 0.0
        %1469 = vmatprep.subr.mxu0 0.0
        %1470 = vmatpush1.msra.mxu0 0.0
        %1471 = vmatprep.subr.mxu0 0.0
        %1472 = vmatpush1.msra.mxu0 0.0
        %1473 = vmatprep.subr.mxu0 0.0
        %1474 = vmatpush1.msra.mxu0 %v1438
        %1475 = vmatprep.subr.mxu0 0.0
        %1476 = vmatpush2.msra.mxu0 0.0
        %1477 = vmatprep.subr.mxu0 0.0
        %1478 = vmatpush2.msra.mxu0 0.0
        %1479 = vmatprep.subr.mxu0 0.0
        %1480 = vmatpush2.msra.mxu0 0.0
        %1481 = vmatprep.subr.mxu0 0.0
        %1482 = vmatpush2.msra.mxu0 0.0
        %1483 = vmatprep.subr.mxu0 0.0
        %1484 = vmatpush2.msra.mxu0 0.0
        %1485 = vmatprep.subr.mxu0 0.0
        %1486 = vmatpush2.msra.mxu0 0.0
        %1487 = vmatprep.subr.mxu0 0.0
        %1488 = vmatpush2.msra.mxu0 0.0
        %1489 = vmatprep.subr.mxu0 0.0
        %1490 = vmatpush2.msra.mxu0 0.0
        %1491 = vmatprep.subr.mxu0 0.0
        %1492 = vmatpush2.msra.mxu0 0.0
        %1493 = vmatprep.subr.mxu0 0.0
        %1494 = vmatpush2.msra.mxu0 0.0
        %1495 = vmatprep.subr.mxu0 0.0
        %1496 = vmatpush2.msra.mxu0 0.0
        %1497 = vmatprep.subr.mxu0 0.0
        %1498 = vmatpush2.msra.mxu0 0.0
        %1499 = vmatprep.subr.mxu0 0.0
        %1500 = vmatpush2.msra.mxu0 0.0
        %1501 = vmatprep.subr.mxu0 0.0
        %1502 = vmatpush2.msra.mxu0 0.0
        %1503 = vmatprep.subr.mxu0 0.0
        %1504 = vmatpush2.msra.mxu0 0.0
        %1505 = vmatprep.subr.mxu0 0.0
        %1506 = vmatpush2.msra.mxu0 0.0
        %1507 = vmatprep.mubr.f32.mxu0 0.0
        %1508 = vmatmul.mubr.f32.gmra.mxu0 %v1441
        %v1509 = vpop.f32.mrf.mxu0
        %v1510 = vadd.f32 0.0, %v1509
        %v1511 = vpop.f32.mrf.mxu0
        %1512 = vdwg.mxu0
        %1514 = vrot.lane.b32.xlu0 %v1344, 96
        %v1515 = vpop.permute.xlu0 %1514
        %v1516 = vsel %vm1350, %v1344, 0
        %v1518 = vsel %vm1350, %v1515, 0
        %1520 = vmatprep.subr.mxu0 0.0
        %1521 = vmatpush1.xpose.msra.mxu0 0.0
        %1522 = vmatprep.subr.mxu0 0.0
        %1523 = vmatpush1.xpose.msra.mxu0 0.0
        %1524 = vmatprep.subr.mxu0 0.0
        %1525 = vmatpush1.xpose.msra.mxu0 0.0
        %1526 = vmatprep.subr.mxu0 0.0
        %1527 = vmatpush1.xpose.msra.mxu0 0.0
        %1528 = vmatprep.subr.mxu0 0.0
        %1529 = vmatpush1.xpose.msra.mxu0 0.0
        %1530 = vmatprep.subr.mxu0 0.0
        %1531 = vmatpush1.xpose.msra.mxu0 0.0
        %1532 = vmatprep.subr.mxu0 0.0
        %1533 = vmatpush1.xpose.msra.mxu0 0.0
        %1534 = vmatprep.subr.mxu0 0.0
        %1535 = vmatpush1.xpose.msra.mxu0 0.0
        %1536 = vmatprep.subr.mxu0 0.0
        %1537 = vmatpush1.xpose.msra.mxu0 0.0
        %1538 = vmatprep.subr.mxu0 0.0
        %1539 = vmatpush1.xpose.msra.mxu0 0.0
        %1540 = vmatprep.subr.mxu0 0.0
        %1541 = vmatpush1.xpose.msra.mxu0 0.0
        %1542 = vmatprep.subr.mxu0 0.0
        %1543 = vmatpush1.xpose.msra.mxu0 0.0
        %1544 = vmatprep.subr.mxu0 0.0
        %1545 = vmatpush1.xpose.msra.mxu0 0.0
        %1546 = vmatprep.subr.mxu0 0.0
        %1547 = vmatpush1.xpose.msra.mxu0 0.0
        %1548 = vmatprep.subr.mxu0 0.0
        %1549 = vmatpush1.xpose.msra.mxu0 0.0
        %1550 = vmatprep.subr.mxu0 0.0
        %1551 = vmatpush1.xpose.msra.mxu0 %v1518
        %1552 = vmatprep.subr.mxu0 0.0
        %1553 = vmatpush2.xpose.msra.mxu0 0.0
        %1554 = vmatprep.subr.mxu0 0.0
        %1555 = vmatpush2.xpose.msra.mxu0 0.0
        %1556 = vmatprep.subr.mxu0 0.0
        %1557 = vmatpush2.xpose.msra.mxu0 0.0
        %1558 = vmatprep.subr.mxu0 0.0
        %1559 = vmatpush2.xpose.msra.mxu0 0.0
        %1560 = vmatprep.subr.mxu0 0.0
        %1561 = vmatpush2.xpose.msra.mxu0 0.0
        %1562 = vmatprep.subr.mxu0 0.0
        %1563 = vmatpush2.xpose.msra.mxu0 0.0
        %1564 = vmatprep.subr.mxu0 0.0
        %1565 = vmatpush2.xpose.msra.mxu0 0.0
        %1566 = vmatprep.subr.mxu0 0.0
        %1567 = vmatpush2.xpose.msra.mxu0 0.0
        %1568 = vmatprep.subr.mxu0 0.0
        %1569 = vmatpush2.xpose.msra.mxu0 0.0
        %1570 = vmatprep.subr.mxu0 0.0
        %1571 = vmatpush2.xpose.msra.mxu0 0.0
        %1572 = vmatprep.subr.mxu0 0.0
        %1573 = vmatpush2.xpose.msra.mxu0 0.0
        %1574 = vmatprep.subr.mxu0 0.0
        %1575 = vmatpush2.xpose.msra.mxu0 0.0
        %1576 = vmatprep.subr.mxu0 0.0
        %1577 = vmatpush2.xpose.msra.mxu0 0.0
        %1578 = vmatprep.subr.mxu0 0.0
        %1579 = vmatpush2.xpose.msra.mxu0 0.0
        %1580 = vmatprep.subr.mxu0 0.0
        %1581 = vmatpush2.xpose.msra.mxu0 0.0
        %1582 = vmatprep.subr.mxu0 0.0
        %1583 = vmatpush2.xpose.msra.mxu0 0.0
        %1584 = vmatprep.mubr.f32.mxu0 0.0
        %1585 = vmatmul.mubr.f32.gmra.mxu0 %v1516
        %v1586 = vpop.f32.mrf.mxu0
        %v1587 = vadd.f32 0.0, %v1586
        %v1588 = vpop.f32.mrf.mxu0
        %1589 = vdwg.mxu0
        %v1590 = vmul.f32 %v1587, 0.35355338
        %v1591 = vsel %vm1350, %v1590, -inf
        %1592 = vmax.xlane.f32.xlu0 %v1591
        %v1593 = vpop.xlane.xlu0 %1592
        %v1594 = vsub.f32 %v1590, %v1593
        %v1595 = vmul.f32 %v1594, 1.442695
        %v1596 = vpow.pop %v1595
        %v1597 = vsel %vm1350, %v1596, 0.0
        %1598 = vadd.xlane.f32.xlu0 %v1597
        %v1599 = vpop.xlane.xlu0 %1598
        %v1600 = vrcp.pop %v1599
        %v1601 = vmul.f32 %v1596, %v1600
        %1602 = vrot.lane.b32.xlu0 %v1344, 64
        %v1603 = vpop.permute.xlu0 %1602
        %v1606 = vsel %vm1350, %v1601, 0
        %1608 = vmatprep.subr.mxu0 0.0
        %1609 = vmatpush1.msra.mxu0 0.0
        %1610 = vmatprep.subr.mxu0 0.0
        %1611 = vmatpush1.msra.mxu0 0.0
        %1612 = vmatprep.subr.mxu0 0.0
        %1613 = vmatpush1.msra.mxu0 0.0
        %1614 = vmatprep.subr.mxu0 0.0
        %1615 = vmatpush1.msra.mxu0 0.0
        %1616 = vmatprep.subr.mxu0 0.0
        %1617 = vmatpush1.msra.mxu0 0.0
        %1618 = vmatprep.subr.mxu0 0.0
        %1619 = vmatpush1.msra.mxu0 0.0
        %1620 = vmatprep.subr.mxu0 0.0
        %1621 = vmatpush1.msra.mxu0 0.0
        %1622 = vmatprep.subr.mxu0 0.0
        %1623 = vmatpush1.msra.mxu0 0.0
        %1624 = vmatprep.subr.mxu0 0.0
        %1625 = vmatpush1.msra.mxu0 0.0
        %1626 = vmatprep.subr.mxu0 0.0
        %1627 = vmatpush1.msra.mxu0 0.0
        %1628 = vmatprep.subr.mxu0 0.0
        %1629 = vmatpush1.msra.mxu0 0.0
        %1630 = vmatprep.subr.mxu0 0.0
        %1631 = vmatpush1.msra.mxu0 0.0
        %1632 = vmatprep.subr.mxu0 0.0
        %1633 = vmatpush1.msra.mxu0 0.0
        %1634 = vmatprep.subr.mxu0 0.0
        %1635 = vmatpush1.msra.mxu0 0.0
        %1636 = vmatprep.subr.mxu0 0.0
        %1637 = vmatpush1.msra.mxu0 0.0
        %1638 = vmatprep.subr.mxu0 0.0
        %1639 = vmatpush1.msra.mxu0 %v1603
        %1640 = vmatprep.subr.mxu0 0.0
        %1641 = vmatpush2.msra.mxu0 0.0
        %1642 = vmatprep.subr.mxu0 0.0
        %1643 = vmatpush2.msra.mxu0 0.0
        %1644 = vmatprep.subr.mxu0 0.0
        %1645 = vmatpush2.msra.mxu0 0.0
        %1646 = vmatprep.subr.mxu0 0.0
        %1647 = vmatpush2.msra.mxu0 0.0
        %1648 = vmatprep.subr.mxu0 0.0
        %1649 = vmatpush2.msra.mxu0 0.0
        %1650 = vmatprep.subr.mxu0 0.0
        %1651 = vmatpush2.msra.mxu0 0.0
        %1652 = vmatprep.subr.mxu0 0.0
        %1653 = vmatpush2.msra.mxu0 0.0
        %1654 = vmatprep.subr.mxu0 0.0
        %1655 = vmatpush2.msra.mxu0 0.0
        %1656 = vmatprep.subr.mxu0 0.0
        %1657 = vmatpush2.msra.mxu0 0.0
        %1658 = vmatprep.subr.mxu0 0.0
        %1659 = vmatpush2.msra.mxu0 0.0
        %1660 = vmatprep.subr.mxu0 0.0
        %1661 = vmatpush2.msra.mxu0 0.0
        %1662 = vmatprep.subr.mxu0 0.0
        %1663 = vmatpush2.msra.mxu0 0.0
        %1664 = vmatprep.subr.mxu0 0.0
        %1665 = vmatpush2.msra.mxu0 0.0
        %1666 = vmatprep.subr.mxu0 0.0
        %1667 = vmatpush2.msra.mxu0 0.0
        %1668 = vmatprep.subr.mxu0 0.0
        %1669 = vmatpush2.msra.mxu0 0.0
        %1670 = vmatprep.subr.mxu0 0.0
        %1671 = vmatpush2.msra.mxu0 0.0
        %1672 = vmatprep.mubr.f32.mxu0 0.0
        %1673 = vmatmul.mubr.f32.gmra.mxu0 %v1606
        %v1674 = vpop.f32.mrf.mxu0
        %v1675 = vadd.f32 0.0, %v1674
        %v1676 = vpop.f32.mrf.mxu0
        %1677 = vdwg.mxu0
        %1678 = vrot.lane.b32.xlu0 %v1339, 120
        %v1679 = vpop.permute.xlu0 %1678
        %1680 = vrot.lane.b32.xlu0 %v1339, 88
        %v1681 = vpop.permute.xlu0 %1680
        %v1682 = vsel %vm1350, %v1679, 0
        %v1684 = vsel %vm1350, %v1681, 0
        %1686 = vmatprep.subr.mxu0 0.0
        %1687 = vmatpush1.xpose.msra.mxu0 0.0
        %1688 = vmatprep.subr.mxu0 0.0
        %1689 = vmatpush1.xpose.msra.mxu0 0.0
        %1690 = vmatprep.subr.mxu0 0.0
        %1691 = vmatpush1.xpose.msra.mxu0 0.0
        %1692 = vmatprep.subr.mxu0 0.0
        %1693 = vmatpush1.xpose.msra.mxu0 0.0
        %1694 = vmatprep.subr.mxu0 0.0
        %1695 = vmatpush1.xpose.msra.mxu0 0.0
        %1696 = vmatprep.subr.mxu0 0.0
        %1697 = vmatpush1.xpose.msra.mxu0 0.0
        %1698 = vmatprep.subr.mxu0 0.0
        %1699 = vmatpush1.xpose.msra.mxu0 0.0
        %1700 = vmatprep.subr.mxu0 0.0
        %1701 = vmatpush1.xpose.msra.mxu0 0.0
        %1702 = vmatprep.subr.mxu0 0.0
        %1703 = vmatpush1.xpose.msra.mxu0 0.0
        %1704 = vmatprep.subr.mxu0 0.0
        %1705 = vmatpush1.xpose.msra.mxu0 0.0
        %1706 = vmatprep.subr.mxu0 0.0
        %1707 = vmatpush1.xpose.msra.mxu0 0.0
        %1708 = vmatprep.subr.mxu0 0.0
        %1709 = vmatpush1.xpose.msra.mxu0 0.0
        %1710 = vmatprep.subr.mxu0 0.0
        %1711 = vmatpush1.xpose.msra.mxu0 0.0
        %1712 = vmatprep.subr.mxu0 0.0
        %1713 = vmatpush1.xpose.msra.mxu0 0.0
        %1714 = vmatprep.subr.mxu0 0.0
        %1715 = vmatpush1.xpose.msra.mxu0 0.0
        %1716 = vmatprep.subr.mxu0 0.0
        %1717 = vmatpush1.xpose.msra.mxu0 %v1684
        %1718 = vmatprep.subr.mxu0 0.0
        %1719 = vmatpush2.xpose.msra.mxu0 0.0
        %1720 = vmatprep.subr.mxu0 0.0
        %1721 = vmatpush2.xpose.msra.mxu0 0.0
        %1722 = vmatprep.subr.mxu0 0.0
        %1723 = vmatpush2.xpose.msra.mxu0 0.0
        %1724 = vmatprep.subr.mxu0 0.0
        %1725 = vmatpush2.xpose.msra.mxu0 0.0
        %1726 = vmatprep.subr.mxu0 0.0
        %1727 = vmatpush2.xpose.msra.mxu0 0.0
        %1728 = vmatprep.subr.mxu0 0.0
        %1729 = vmatpush2.xpose.msra.mxu0 0.0
        %1730 = vmatprep.subr.mxu0 0.0
        %1731 = vmatpush2.xpose.msra.mxu0 0.0
        %1732 = vmatprep.subr.mxu0 0.0
        %1733 = vmatpush2.xpose.msra.mxu0 0.0
        %1734 = vmatprep.subr.mxu0 0.0
        %1735 = vmatpush2.xpose.msra.mxu0 0.0
        %1736 = vmatprep.subr.mxu0 0.0
        %1737 = vmatpush2.xpose.msra.mxu0 0.0
        %1738 = vmatprep.subr.mxu0 0.0
        %1739 = vmatpush2.xpose.msra.mxu0 0.0
        %1740 = vmatprep.subr.mxu0 0.0
        %1741 = vmatpush2.xpose.msra.mxu0 0.0
        %1742 = vmatprep.subr.mxu0 0.0
        %1743 = vmatpush2.xpose.msra.mxu0 0.0
        %1744 = vmatprep.subr.mxu0 0.0
        %1745 = vmatpush2.xpose.msra.mxu0 0.0
        %1746 = vmatprep.subr.mxu0 0.0
        %1747 = vmatpush2.xpose.msra.mxu0 0.0
        %1748 = vmatprep.subr.mxu0 0.0
        %1749 = vmatpush2.xpose.msra.mxu0 0.0
        %1750 = vmatprep.mubr.f32.mxu0 0.0
        %1751 = vmatmul.mubr.f32.gmra.mxu0 %v1682
        %v1752 = vpop.f32.mrf.mxu0
        %v1753 = vadd.f32 0.0, %v1752
        %v1754 = vpop.f32.mrf.mxu0
        %1755 = vdwg.mxu0
        %v1756 = vmul.f32 %v1753, 0.35355338
        %v1757 = vsel %vm1350, %v1756, -inf
        %1758 = vmax.xlane.f32.xlu0 %v1757
        %v1759 = vpop.xlane.xlu0 %1758
        %v1760 = vsub.f32 %v1756, %v1759
        %v1761 = vmul.f32 %v1760, 1.442695
        %v1762 = vpow.pop %v1761
        %v1763 = vsel %vm1350, %v1762, 0.0
        %1764 = vadd.xlane.f32.xlu0 %v1763
        %v1765 = vpop.xlane.xlu0 %1764
        %v1766 = vrcp.pop %v1765
        %v1767 = vmul.f32 %v1762, %v1766
        %1768 = vrot.lane.b32.xlu0 %v1339, 56
        %v1769 = vpop.permute.xlu0 %1768
        %v1772 = vsel %vm1350, %v1767, 0
        %1774 = vmatprep.subr.mxu0 0.0
        %1775 = vmatpush1.msra.mxu0 0.0
        %1776 = vmatprep.subr.mxu0 0.0
        %1777 = vmatpush1.msra.mxu0 0.0
        %1778 = vmatprep.subr.mxu0 0.0
        %1779 = vmatpush1.msra.mxu0 0.0
        %1780 = vmatprep.subr.mxu0 0.0
        %1781 = vmatpush1.msra.mxu0 0.0
        %1782 = vmatprep.subr.mxu0 0.0
        %1783 = vmatpush1.msra.mxu0 0.0
        %1784 = vmatprep.subr.mxu0 0.0
        %1785 = vmatpush1.msra.mxu0 0.0
        %1786 = vmatprep.subr.mxu0 0.0
        %1787 = vmatpush1.msra.mxu0 0.0
        %1788 = vmatprep.subr.mxu0 0.0
        %1789 = vmatpush1.msra.mxu0 0.0
        %1790 = vmatprep.subr.mxu0 0.0
        %1791 = vmatpush1.msra.mxu0 0.0
        %1792 = vmatprep.subr.mxu0 0.0
        %1793 = vmatpush1.msra.mxu0 0.0
        %1794 = vmatprep.subr.mxu0 0.0
        %1795 = vmatpush1.msra.mxu0 0.0
        %1796 = vmatprep.subr.mxu0 0.0
        %1797 = vmatpush1.msra.mxu0 0.0
        %1798 = vmatprep.subr.mxu0 0.0
        %1799 = vmatpush1.msra.mxu0 0.0
        %1800 = vmatprep.subr.mxu0 0.0
        %1801 = vmatpush1.msra.mxu0 0.0
        %1802 = vmatprep.subr.mxu0 0.0
        %1803 = vmatpush1.msra.mxu0 0.0
        %1804 = vmatprep.subr.mxu0 0.0
        %1805 = vmatpush1.msra.mxu0 %v1769
        %1806 = vmatprep.subr.mxu0 0.0
        %1807 = vmatpush2.msra.mxu0 0.0
        %1808 = vmatprep.subr.mxu0 0.0
        %1809 = vmatpush2.msra.mxu0 0.0
        %1810 = vmatprep.subr.mxu0 0.0
        %1811 = vmatpush2.msra.mxu0 0.0
        %1812 = vmatprep.subr.mxu0 0.0
        %1813 = vmatpush2.msra.mxu0 0.0
        %1814 = vmatprep.subr.mxu0 0.0
        %1815 = vmatpush2.msra.mxu0 0.0
        %1816 = vmatprep.subr.mxu0 0.0
        %1817 = vmatpush2.msra.mxu0 0.0
        %1818 = vmatprep.subr.mxu0 0.0
        %1819 = vmatpush2.msra.mxu0 0.0
        %1820 = vmatprep.subr.mxu0 0.0
        %1821 = vmatpush2.msra.mxu0 0.0
        %1822 = vmatprep.subr.mxu0 0.0
        %1823 = vmatpush2.msra.mxu0 0.0
        %1824 = vmatprep.subr.mxu0 0.0
        %1825 = vmatpush2.msra.mxu0 0.0
        %1826 = vmatprep.subr.mxu0 0.0
        %1827 = vmatpush2.msra.mxu0 0.0
        %1828 = vmatprep.subr.mxu0 0.0
        %1829 = vmatpush2.msra.mxu0 0.0
        %1830 = vmatprep.subr.mxu0 0.0
        %1831 = vmatpush2.msra.mxu0 0.0
        %1832 = vmatprep.subr.mxu0 0.0
        %1833 = vmatpush2.msra.mxu0 0.0
        %1834 = vmatprep.subr.mxu0 0.0
        %1835 = vmatpush2.msra.mxu0 0.0
        %1836 = vmatprep.subr.mxu0 0.0
        %1837 = vmatpush2.msra.mxu0 0.0
        %1838 = vmatprep.mubr.f32.mxu0 0.0
        %1839 = vmatmul.mubr.f32.gmra.mxu0 %v1772
        %v1840 = vpop.f32.mrf.mxu0
        %v1841 = vadd.f32 0.0, %v1840
        %v1842 = vpop.f32.mrf.mxu0
        %1843 = vdwg.mxu0
        %1844 = vrot.lane.b32.xlu0 %v1344, 120
        %v1845 = vpop.permute.xlu0 %1844
        %1846 = vrot.lane.b32.xlu0 %v1344, 88
        %v1847 = vpop.permute.xlu0 %1846
        %v1848 = vsel %vm1350, %v1845, 0
        %v1850 = vsel %vm1350, %v1847, 0
        %1852 = vmatprep.subr.mxu0 0.0
        %1853 = vmatpush1.xpose.msra.mxu0 0.0
        %1854 = vmatprep.subr.mxu0 0.0
        %1855 = vmatpush1.xpose.msra.mxu0 0.0
        %1856 = vmatprep.subr.mxu0 0.0
        %1857 = vmatpush1.xpose.msra.mxu0 0.0
        %1858 = vmatprep.subr.mxu0 0.0
        %1859 = vmatpush1.xpose.msra.mxu0 0.0
        %1860 = vmatprep.subr.mxu0 0.0
        %1861 = vmatpush1.xpose.msra.mxu0 0.0
        %1862 = vmatprep.subr.mxu0 0.0
        %1863 = vmatpush1.xpose.msra.mxu0 0.0
        %1864 = vmatprep.subr.mxu0 0.0
        %1865 = vmatpush1.xpose.msra.mxu0 0.0
        %1866 = vmatprep.subr.mxu0 0.0
        %1867 = vmatpush1.xpose.msra.mxu0 0.0
        %1868 = vmatprep.subr.mxu0 0.0
        %1869 = vmatpush1.xpose.msra.mxu0 0.0
        %1870 = vmatprep.subr.mxu0 0.0
        %1871 = vmatpush1.xpose.msra.mxu0 0.0
        %1872 = vmatprep.subr.mxu0 0.0
        %1873 = vmatpush1.xpose.msra.mxu0 0.0
        %1874 = vmatprep.subr.mxu0 0.0
        %1875 = vmatpush1.xpose.msra.mxu0 0.0
        %1876 = vmatprep.subr.mxu0 0.0
        %1877 = vmatpush1.xpose.msra.mxu0 0.0
        %1878 = vmatprep.subr.mxu0 0.0
        %1879 = vmatpush1.xpose.msra.mxu0 0.0
        %1880 = vmatprep.subr.mxu0 0.0
        %1881 = vmatpush1.xpose.msra.mxu0 0.0
        %1882 = vmatprep.subr.mxu0 0.0
        %1883 = vmatpush1.xpose.msra.mxu0 %v1850
        %1884 = vmatprep.subr.mxu0 0.0
        %1885 = vmatpush2.xpose.msra.mxu0 0.0
        %1886 = vmatprep.subr.mxu0 0.0
        %1887 = vmatpush2.xpose.msra.mxu0 0.0
        %1888 = vmatprep.subr.mxu0 0.0
        %1889 = vmatpush2.xpose.msra.mxu0 0.0
        %1890 = vmatprep.subr.mxu0 0.0
        %1891 = vmatpush2.xpose.msra.mxu0 0.0
        %1892 = vmatprep.subr.mxu0 0.0
        %1893 = vmatpush2.xpose.msra.mxu0 0.0
        %1894 = vmatprep.subr.mxu0 0.0
        %1895 = vmatpush2.xpose.msra.mxu0 0.0
        %1896 = vmatprep.subr.mxu0 0.0
        %1897 = vmatpush2.xpose.msra.mxu0 0.0
        %1898 = vmatprep.subr.mxu0 0.0
        %1899 = vmatpush2.xpose.msra.mxu0 0.0
        %1900 = vmatprep.subr.mxu0 0.0
        %1901 = vmatpush2.xpose.msra.mxu0 0.0
        %1902 = vmatprep.subr.mxu0 0.0
        %1903 = vmatpush2.xpose.msra.mxu0 0.0
        %1904 = vmatprep.subr.mxu0 0.0
        %1905 = vmatpush2.xpose.msra.mxu0 0.0
        %1906 = vmatprep.subr.mxu0 0.0
        %1907 = vmatpush2.xpose.msra.mxu0 0.0
        %1908 = vmatprep.subr.mxu0 0.0
        %1909 = vmatpush2.xpose.msra.mxu0 0.0
        %1910 = vmatprep.subr.mxu0 0.0
        %1911 = vmatpush2.xpose.msra.mxu0 0.0
        %1912 = vmatprep.subr.mxu0 0.0
        %1913 = vmatpush2.xpose.msra.mxu0 0.0
        %1914 = vmatprep.subr.mxu0 0.0
        %1915 = vmatpush2.xpose.msra.mxu0 0.0
        %1916 = vmatprep.mubr.f32.mxu0 0.0
        %1917 = vmatmul.mubr.f32.gmra.mxu0 %v1848
        %v1918 = vpop.f32.mrf.mxu0
        %v1919 = vadd.f32 0.0, %v1918
        %v1920 = vpop.f32.mrf.mxu0
        %1921 = vdwg.mxu0
        %v1922 = vmul.f32 %v1919, 0.35355338
        %v1923 = vsel %vm1350, %v1922, -inf
        %1924 = vmax.xlane.f32.xlu0 %v1923
        %v1925 = vpop.xlane.xlu0 %1924
        %v1926 = vsub.f32 %v1922, %v1925
        %v1927 = vmul.f32 %v1926, 1.442695
        %v1928 = vpow.pop %v1927
        %v1929 = vsel %vm1350, %v1928, 0.0
        %1930 = vadd.xlane.f32.xlu0 %v1929
        %v1931 = vpop.xlane.xlu0 %1930
        %v1932 = vrcp.pop %v1931
        %v1933 = vmul.f32 %v1928, %v1932
        %1934 = vrot.lane.b32.xlu0 %v1344, 56
        %v1935 = vpop.permute.xlu0 %1934
        %v1938 = vsel %vm1350, %v1933, 0
        %1940 = vmatprep.subr.mxu0 0.0
        %1941 = vmatpush1.msra.mxu0 0.0
        %1942 = vmatprep.subr.mxu0 0.0
        %1943 = vmatpush1.msra.mxu0 0.0
        %1944 = vmatprep.subr.mxu0 0.0
        %1945 = vmatpush1.msra.mxu0 0.0
        %1946 = vmatprep.subr.mxu0 0.0
        %1947 = vmatpush1.msra.mxu0 0.0
        %1948 = vmatprep.subr.mxu0 0.0
        %1949 = vmatpush1.msra.mxu0 0.0
        %1950 = vmatprep.subr.mxu0 0.0
        %1951 = vmatpush1.msra.mxu0 0.0
        %1952 = vmatprep.subr.mxu0 0.0
        %1953 = vmatpush1.msra.mxu0 0.0
        %1954 = vmatprep.subr.mxu0 0.0
        %1955 = vmatpush1.msra.mxu0 0.0
        %1956 = vmatprep.subr.mxu0 0.0
        %1957 = vmatpush1.msra.mxu0 0.0
        %1958 = vmatprep.subr.mxu0 0.0
        %1959 = vmatpush1.msra.mxu0 0.0
        %1960 = vmatprep.subr.mxu0 0.0
        %1961 = vmatpush1.msra.mxu0 0.0
        %1962 = vmatprep.subr.mxu0 0.0
        %1963 = vmatpush1.msra.mxu0 0.0
        %1964 = vmatprep.subr.mxu0 0.0
        %1965 = vmatpush1.msra.mxu0 0.0
        %1966 = vmatprep.subr.mxu0 0.0
        %1967 = vmatpush1.msra.mxu0 0.0
        %1968 = vmatprep.subr.mxu0 0.0
        %1969 = vmatpush1.msra.mxu0 0.0
        %1970 = vmatprep.subr.mxu0 0.0
        %1971 = vmatpush1.msra.mxu0 %v1935
        %1972 = vmatprep.subr.mxu0 0.0
        %1973 = vmatpush2.msra.mxu0 0.0
        %1974 = vmatprep.subr.mxu0 0.0
        %1975 = vmatpush2.msra.mxu0 0.0
        %1976 = vmatprep.subr.mxu0 0.0
        %1977 = vmatpush2.msra.mxu0 0.0
        %1978 = vmatprep.subr.mxu0 0.0
        %1979 = vmatpush2.msra.mxu0 0.0
        %1980 = vmatprep.subr.mxu0 0.0
        %1981 = vmatpush2.msra.mxu0 0.0
        %1982 = vmatprep.subr.mxu0 0.0
        %1983 = vmatpush2.msra.mxu0 0.0
        %1984 = vmatprep.subr.mxu0 0.0
        %1985 = vmatpush2.msra.mxu0 0.0
        %1986 = vmatprep.subr.mxu0 0.0
        %1987 = vmatpush2.msra.mxu0 0.0
        %1988 = vmatprep.subr.mxu0 0.0
        %1989 = vmatpush2.msra.mxu0 0.0
        %1990 = vmatprep.subr.mxu0 0.0
        %1991 = vmatpush2.msra.mxu0 0.0
        %1992 = vmatprep.subr.mxu0 0.0
        %1993 = vmatpush2.msra.mxu0 0.0
        %1994 = vmatprep.subr.mxu0 0.0
        %1995 = vmatpush2.msra.mxu0 0.0
        %1996 = vmatprep.subr.mxu0 0.0
        %1997 = vmatpush2.msra.mxu0 0.0
        %1998 = vmatprep.subr.mxu0 0.0
        %1999 = vmatpush2.msra.mxu0 0.0
        %2000 = vmatprep.subr.mxu0 0.0
        %2001 = vmatpush2.msra.mxu0 0.0
        %2002 = vmatprep.subr.mxu0 0.0
        %2003 = vmatpush2.msra.mxu0 0.0
        %2004 = vmatprep.mubr.f32.mxu0 0.0
        %2005 = vmatmul.mubr.f32.gmra.mxu0 %v1938
        %v2006 = vpop.f32.mrf.mxu0
        %v2007 = vadd.f32 0.0, %v2006
        %v2008 = vpop.f32.mrf.mxu0
        %2009 = vdwg.mxu0
        %2010 = vrot.lane.b32.xlu0 %v1339, 112
        %v2011 = vpop.permute.xlu0 %2010
        %2012 = vrot.lane.b32.xlu0 %v1339, 80
        %v2013 = vpop.permute.xlu0 %2012
        %v2014 = vsel %vm1350, %v2011, 0
        %v2016 = vsel %vm1350, %v2013, 0
        %2018 = vmatprep.subr.mxu0 0.0
        %2019 = vmatpush1.xpose.msra.mxu0 0.0
        %2020 = vmatprep.subr.mxu0 0.0
        %2021 = vmatpush1.xpose.msra.mxu0 0.0
        %2022 = vmatprep.subr.mxu0 0.0
        %2023 = vmatpush1.xpose.msra.mxu0 0.0
        %2024 = vmatprep.subr.mxu0 0.0
        %2025 = vmatpush1.xpose.msra.mxu0 0.0
        %2026 = vmatprep.subr.mxu0 0.0
        %2027 = vmatpush1.xpose.msra.mxu0 0.0
        %2028 = vmatprep.subr.mxu0 0.0
        %2029 = vmatpush1.xpose.msra.mxu0 0.0
        %2030 = vmatprep.subr.mxu0 0.0
        %2031 = vmatpush1.xpose.msra.mxu0 0.0
        %2032 = vmatprep.subr.mxu0 0.0
        %2033 = vmatpush1.xpose.msra.mxu0 0.0
        %2034 = vmatprep.subr.mxu0 0.0
        %2035 = vmatpush1.xpose.msra.mxu0 0.0
        %2036 = vmatprep.subr.mxu0 0.0
        %2037 = vmatpush1.xpose.msra.mxu0 0.0
        %2038 = vmatprep.subr.mxu0 0.0
        %2039 = vmatpush1.xpose.msra.mxu0 0.0
        %2040 = vmatprep.subr.mxu0 0.0
        %2041 = vmatpush1.xpose.msra.mxu0 0.0
        %2042 = vmatprep.subr.mxu0 0.0
        %2043 = vmatpush1.xpose.msra.mxu0 0.0
        %2044 = vmatprep.subr.mxu0 0.0
        %2045 = vmatpush1.xpose.msra.mxu0 0.0
        %2046 = vmatprep.subr.mxu0 0.0
        %2047 = vmatpush1.xpose.msra.mxu0 0.0
        %2048 = vmatprep.subr.mxu0 0.0
        %2049 = vmatpush1.xpose.msra.mxu0 %v2016
        %2050 = vmatprep.subr.mxu0 0.0
        %2051 = vmatpush2.xpose.msra.mxu0 0.0
        %2052 = vmatprep.subr.mxu0 0.0
        %2053 = vmatpush2.xpose.msra.mxu0 0.0
        %2054 = vmatprep.subr.mxu0 0.0
        %2055 = vmatpush2.xpose.msra.mxu0 0.0
        %2056 = vmatprep.subr.mxu0 0.0
        %2057 = vmatpush2.xpose.msra.mxu0 0.0
        %2058 = vmatprep.subr.mxu0 0.0
        %2059 = vmatpush2.xpose.msra.mxu0 0.0
        %2060 = vmatprep.subr.mxu0 0.0
        %2061 = vmatpush2.xpose.msra.mxu0 0.0
        %2062 = vmatprep.subr.mxu0 0.0
        %2063 = vmatpush2.xpose.msra.mxu0 0.0
        %2064 = vmatprep.subr.mxu0 0.0
        %2065 = vmatpush2.xpose.msra.mxu0 0.0
        %2066 = vmatprep.subr.mxu0 0.0
        %2067 = vmatpush2.xpose.msra.mxu0 0.0
        %2068 = vmatprep.subr.mxu0 0.0
        %2069 = vmatpush2.xpose.msra.mxu0 0.0
        %2070 = vmatprep.subr.mxu0 0.0
        %2071 = vmatpush2.xpose.msra.mxu0 0.0
        %2072 = vmatprep.subr.mxu0 0.0
        %2073 = vmatpush2.xpose.msra.mxu0 0.0
        %2074 = vmatprep.subr.mxu0 0.0
        %2075 = vmatpush2.xpose.msra.mxu0 0.0
        %2076 = vmatprep.subr.mxu0 0.0
        %2077 = vmatpush2.xpose.msra.mxu0 0.0
        %2078 = vmatprep.subr.mxu0 0.0
        %2079 = vmatpush2.xpose.msra.mxu0 0.0
        %2080 = vmatprep.subr.mxu0 0.0
        %2081 = vmatpush2.xpose.msra.mxu0 0.0
        %2082 = vmatprep.mubr.f32.mxu0 0.0
        %2083 = vmatmul.mubr.f32.gmra.mxu0 %v2014
        %v2084 = vpop.f32.mrf.mxu0
        %v2085 = vadd.f32 0.0, %v2084
        %v2086 = vpop.f32.mrf.mxu0
        %2087 = vdwg.mxu0
        %v2088 = vmul.f32 %v2085, 0.35355338
        %v2089 = vsel %vm1350, %v2088, -inf
        %2090 = vmax.xlane.f32.xlu0 %v2089
        %v2091 = vpop.xlane.xlu0 %2090
        %v2092 = vsub.f32 %v2088, %v2091
        %v2093 = vmul.f32 %v2092, 1.442695
        %v2094 = vpow.pop %v2093
        %v2095 = vsel %vm1350, %v2094, 0.0
        %2096 = vadd.xlane.f32.xlu0 %v2095
        %v2097 = vpop.xlane.xlu0 %2096
        %v2098 = vrcp.pop %v2097
        %v2099 = vmul.f32 %v2094, %v2098
        %2100 = vrot.lane.b32.xlu0 %v1339, 48
        %v2101 = vpop.permute.xlu0 %2100
        %v2104 = vsel %vm1350, %v2099, 0
        %2106 = vmatprep.subr.mxu0 0.0
        %2107 = vmatpush1.msra.mxu0 0.0
        %2108 = vmatprep.subr.mxu0 0.0
        %2109 = vmatpush1.msra.mxu0 0.0
        %2110 = vmatprep.subr.mxu0 0.0
        %2111 = vmatpush1.msra.mxu0 0.0
        %2112 = vmatprep.subr.mxu0 0.0
        %2113 = vmatpush1.msra.mxu0 0.0
        %2114 = vmatprep.subr.mxu0 0.0
        %2115 = vmatpush1.msra.mxu0 0.0
        %2116 = vmatprep.subr.mxu0 0.0
        %2117 = vmatpush1.msra.mxu0 0.0
        %2118 = vmatprep.subr.mxu0 0.0
        %2119 = vmatpush1.msra.mxu0 0.0
        %2120 = vmatprep.subr.mxu0 0.0
        %2121 = vmatpush1.msra.mxu0 0.0
        %2122 = vmatprep.subr.mxu0 0.0
        %2123 = vmatpush1.msra.mxu0 0.0
        %2124 = vmatprep.subr.mxu0 0.0
        %2125 = vmatpush1.msra.mxu0 0.0
        %2126 = vmatprep.subr.mxu0 0.0
        %2127 = vmatpush1.msra.mxu0 0.0
        %2128 = vmatprep.subr.mxu0 0.0
        %2129 = vmatpush1.msra.mxu0 0.0
        %2130 = vmatprep.subr.mxu0 0.0
        %2131 = vmatpush1.msra.mxu0 0.0
        %2132 = vmatprep.subr.mxu0 0.0
        %2133 = vmatpush1.msra.mxu0 0.0
        %2134 = vmatprep.subr.mxu0 0.0
        %2135 = vmatpush1.msra.mxu0 0.0
        %2136 = vmatprep.subr.mxu0 0.0
        %2137 = vmatpush1.msra.mxu0 %v2101
        %2138 = vmatprep.subr.mxu0 0.0
        %2139 = vmatpush2.msra.mxu0 0.0
        %2140 = vmatprep.subr.mxu0 0.0
        %2141 = vmatpush2.msra.mxu0 0.0
        %2142 = vmatprep.subr.mxu0 0.0
        %2143 = vmatpush2.msra.mxu0 0.0
        %2144 = vmatprep.subr.mxu0 0.0
        %2145 = vmatpush2.msra.mxu0 0.0
        %2146 = vmatprep.subr.mxu0 0.0
        %2147 = vmatpush2.msra.mxu0 0.0
        %2148 = vmatprep.subr.mxu0 0.0
        %2149 = vmatpush2.msra.mxu0 0.0
        %2150 = vmatprep.subr.mxu0 0.0
        %2151 = vmatpush2.msra.mxu0 0.0
        %2152 = vmatprep.subr.mxu0 0.0
        %2153 = vmatpush2.msra.mxu0 0.0
        %2154 = vmatprep.subr.mxu0 0.0
        %2155 = vmatpush2.msra.mxu0 0.0
        %2156 = vmatprep.subr.mxu0 0.0
        %2157 = vmatpush2.msra.mxu0 0.0
        %2158 = vmatprep.subr.mxu0 0.0
        %2159 = vmatpush2.msra.mxu0 0.0
        %2160 = vmatprep.subr.mxu0 0.0
        %2161 = vmatpush2.msra.mxu0 0.0
        %2162 = vmatprep.subr.mxu0 0.0
        %2163 = vmatpush2.msra.mxu0 0.0
        %2164 = vmatprep.subr.mxu0 0.0
        %2165 = vmatpush2.msra.mxu0 0.0
        %2166 = vmatprep.subr.mxu0 0.0
        %2167 = vmatpush2.msra.mxu0 0.0
        %2168 = vmatprep.subr.mxu0 0.0
        %2169 = vmatpush2.msra.mxu0 0.0
        %2170 = vmatprep.mubr.f32.mxu0 0.0
        %2171 = vmatmul.mubr.f32.gmra.mxu0 %v2104
        %v2172 = vpop.f32.mrf.mxu0
        %v2173 = vadd.f32 0.0, %v2172
        %v2174 = vpop.f32.mrf.mxu0
        %2175 = vdwg.mxu0
        %2176 = vrot.lane.b32.xlu0 %v1344, 112
        %v2177 = vpop.permute.xlu0 %2176
        %2178 = vrot.lane.b32.xlu0 %v1344, 80
        %v2179 = vpop.permute.xlu0 %2178
        %v2180 = vsel %vm1350, %v2177, 0
        %v2182 = vsel %vm1350, %v2179, 0
        %2184 = vmatprep.subr.mxu0 0.0
        %2185 = vmatpush1.xpose.msra.mxu0 0.0
        %2186 = vmatprep.subr.mxu0 0.0
        %2187 = vmatpush1.xpose.msra.mxu0 0.0
        %2188 = vmatprep.subr.mxu0 0.0
        %2189 = vmatpush1.xpose.msra.mxu0 0.0
        %2190 = vmatprep.subr.mxu0 0.0
        %2191 = vmatpush1.xpose.msra.mxu0 0.0
        %2192 = vmatprep.subr.mxu0 0.0
        %2193 = vmatpush1.xpose.msra.mxu0 0.0
        %2194 = vmatprep.subr.mxu0 0.0
        %2195 = vmatpush1.xpose.msra.mxu0 0.0
        %2196 = vmatprep.subr.mxu0 0.0
        %2197 = vmatpush1.xpose.msra.mxu0 0.0
        %2198 = vmatprep.subr.mxu0 0.0
        %2199 = vmatpush1.xpose.msra.mxu0 0.0
        %2200 = vmatprep.subr.mxu0 0.0
        %2201 = vmatpush1.xpose.msra.mxu0 0.0
        %2202 = vmatprep.subr.mxu0 0.0
        %2203 = vmatpush1.xpose.msra.mxu0 0.0
        %2204 = vmatprep.subr.mxu0 0.0
        %2205 = vmatpush1.xpose.msra.mxu0 0.0
        %2206 = vmatprep.subr.mxu0 0.0
        %2207 = vmatpush1.xpose.msra.mxu0 0.0
        %2208 = vmatprep.subr.mxu0 0.0
        %2209 = vmatpush1.xpose.msra.mxu0 0.0
        %2210 = vmatprep.subr.mxu0 0.0
        %2211 = vmatpush1.xpose.msra.mxu0 0.0
        %2212 = vmatprep.subr.mxu0 0.0
        %2213 = vmatpush1.xpose.msra.mxu0 0.0
        %2214 = vmatprep.subr.mxu0 0.0
        %2215 = vmatpush1.xpose.msra.mxu0 %v2182
        %2216 = vmatprep.subr.mxu0 0.0
        %2217 = vmatpush2.xpose.msra.mxu0 0.0
        %2218 = vmatprep.subr.mxu0 0.0
        %2219 = vmatpush2.xpose.msra.mxu0 0.0
        %2220 = vmatprep.subr.mxu0 0.0
        %2221 = vmatpush2.xpose.msra.mxu0 0.0
        %2222 = vmatprep.subr.mxu0 0.0
        %2223 = vmatpush2.xpose.msra.mxu0 0.0
        %2224 = vmatprep.subr.mxu0 0.0
        %2225 = vmatpush2.xpose.msra.mxu0 0.0
        %2226 = vmatprep.subr.mxu0 0.0
        %2227 = vmatpush2.xpose.msra.mxu0 0.0
        %2228 = vmatprep.subr.mxu0 0.0
        %2229 = vmatpush2.xpose.msra.mxu0 0.0
        %2230 = vmatprep.subr.mxu0 0.0
        %2231 = vmatpush2.xpose.msra.mxu0 0.0
        %2232 = vmatprep.subr.mxu0 0.0
        %2233 = vmatpush2.xpose.msra.mxu0 0.0
        %2234 = vmatprep.subr.mxu0 0.0
        %2235 = vmatpush2.xpose.msra.mxu0 0.0
        %2236 = vmatprep.subr.mxu0 0.0
        %2237 = vmatpush2.xpose.msra.mxu0 0.0
        %2238 = vmatprep.subr.mxu0 0.0
        %2239 = vmatpush2.xpose.msra.mxu0 0.0
        %2240 = vmatprep.subr.mxu0 0.0
        %2241 = vmatpush2.xpose.msra.mxu0 0.0
        %2242 = vmatprep.subr.mxu0 0.0
        %2243 = vmatpush2.xpose.msra.mxu0 0.0
        %2244 = vmatprep.subr.mxu0 0.0
        %2245 = vmatpush2.xpose.msra.mxu0 0.0
        %2246 = vmatprep.subr.mxu0 0.0
        %2247 = vmatpush2.xpose.msra.mxu0 0.0
        %2248 = vmatprep.mubr.f32.mxu0 0.0
        %2249 = vmatmul.mubr.f32.gmra.mxu0 %v2180
        %v2250 = vpop.f32.mrf.mxu0
        %v2251 = vadd.f32 0.0, %v2250
        %v2252 = vpop.f32.mrf.mxu0
        %2253 = vdwg.mxu0
        %v2254 = vmul.f32 %v2251, 0.35355338
        %v2255 = vsel %vm1350, %v2254, -inf
        %2256 = vmax.xlane.f32.xlu0 %v2255
        %v2257 = vpop.xlane.xlu0 %2256
        %v2258 = vsub.f32 %v2254, %v2257
        %v2259 = vmul.f32 %v2258, 1.442695
        %v2260 = vpow.pop %v2259
        %v2261 = vsel %vm1350, %v2260, 0.0
        %2262 = vadd.xlane.f32.xlu0 %v2261
        %v2263 = vpop.xlane.xlu0 %2262
        %v2264 = vrcp.pop %v2263
        %v2265 = vmul.f32 %v2260, %v2264
        %2266 = vrot.lane.b32.xlu0 %v1344, 48
        %v2267 = vpop.permute.xlu0 %2266
        %v2270 = vsel %vm1350, %v2265, 0
        %2272 = vmatprep.subr.mxu0 0.0
        %2273 = vmatpush1.msra.mxu0 0.0
        %2274 = vmatprep.subr.mxu0 0.0
        %2275 = vmatpush1.msra.mxu0 0.0
        %2276 = vmatprep.subr.mxu0 0.0
        %2277 = vmatpush1.msra.mxu0 0.0
        %2278 = vmatprep.subr.mxu0 0.0
        %2279 = vmatpush1.msra.mxu0 0.0
        %2280 = vmatprep.subr.mxu0 0.0
        %2281 = vmatpush1.msra.mxu0 0.0
        %2282 = vmatprep.subr.mxu0 0.0
        %2283 = vmatpush1.msra.mxu0 0.0
        %2284 = vmatprep.subr.mxu0 0.0
        %2285 = vmatpush1.msra.mxu0 0.0
        %2286 = vmatprep.subr.mxu0 0.0
        %2287 = vmatpush1.msra.mxu0 0.0
        %2288 = vmatprep.subr.mxu0 0.0
        %2289 = vmatpush1.msra.mxu0 0.0
        %2290 = vmatprep.subr.mxu0 0.0
        %2291 = vmatpush1.msra.mxu0 0.0
        %2292 = vmatprep.subr.mxu0 0.0
        %2293 = vmatpush1.msra.mxu0 0.0
        %2294 = vmatprep.subr.mxu0 0.0
        %2295 = vmatpush1.msra.mxu0 0.0
        %2296 = vmatprep.subr.mxu0 0.0
        %2297 = vmatpush1.msra.mxu0 0.0
        %2298 = vmatprep.subr.mxu0 0.0
        %2299 = vmatpush1.msra.mxu0 0.0
        %2300 = vmatprep.subr.mxu0 0.0
        %2301 = vmatpush1.msra.mxu0 0.0
        %2302 = vmatprep.subr.mxu0 0.0
        %2303 = vmatpush1.msra.mxu0 %v2267
        %2304 = vmatprep.subr.mxu0 0.0
        %2305 = vmatpush2.msra.mxu0 0.0
        %2306 = vmatprep.subr.mxu0 0.0
        %2307 = vmatpush2.msra.mxu0 0.0
        %2308 = vmatprep.subr.mxu0 0.0
        %2309 = vmatpush2.msra.mxu0 0.0
        %2310 = vmatprep.subr.mxu0 0.0
        %2311 = vmatpush2.msra.mxu0 0.0
        %2312 = vmatprep.subr.mxu0 0.0
        %2313 = vmatpush2.msra.mxu0 0.0
        %2314 = vmatprep.subr.mxu0 0.0
        %2315 = vmatpush2.msra.mxu0 0.0
        %2316 = vmatprep.subr.mxu0 0.0
        %2317 = vmatpush2.msra.mxu0 0.0
        %2318 = vmatprep.subr.mxu0 0.0
        %2319 = vmatpush2.msra.mxu0 0.0
        %2320 = vmatprep.subr.mxu0 0.0
        %2321 = vmatpush2.msra.mxu0 0.0
        %2322 = vmatprep.subr.mxu0 0.0
        %2323 = vmatpush2.msra.mxu0 0.0
        %2324 = vmatprep.subr.mxu0 0.0
        %2325 = vmatpush2.msra.mxu0 0.0
        %2326 = vmatprep.subr.mxu0 0.0
        %2327 = vmatpush2.msra.mxu0 0.0
        %2328 = vmatprep.subr.mxu0 0.0
        %2329 = vmatpush2.msra.mxu0 0.0
        %2330 = vmatprep.subr.mxu0 0.0
        %2331 = vmatpush2.msra.mxu0 0.0
        %2332 = vmatprep.subr.mxu0 0.0
        %2333 = vmatpush2.msra.mxu0 0.0
        %2334 = vmatprep.subr.mxu0 0.0
        %2335 = vmatpush2.msra.mxu0 0.0
        %2336 = vmatprep.mubr.f32.mxu0 0.0
        %2337 = vmatmul.mubr.f32.gmra.mxu0 %v2270
        %v2338 = vpop.f32.mrf.mxu0
        %v2339 = vadd.f32 0.0, %v2338
        %v2340 = vpop.f32.mrf.mxu0
        %2341 = vdwg.mxu0
        %2342 = vrot.lane.b32.xlu0 %v1339, 104
        %v2343 = vpop.permute.xlu0 %2342
        %2344 = vrot.lane.b32.xlu0 %v1339, 72
        %v2345 = vpop.permute.xlu0 %2344
        %v2346 = vsel %vm1350, %v2343, 0
        %v2348 = vsel %vm1350, %v2345, 0
        %2350 = vmatprep.subr.mxu0 0.0
        %2351 = vmatpush1.xpose.msra.mxu0 0.0
        %2352 = vmatprep.subr.mxu0 0.0
        %2353 = vmatpush1.xpose.msra.mxu0 0.0
        %2354 = vmatprep.subr.mxu0 0.0
        %2355 = vmatpush1.xpose.msra.mxu0 0.0
        %2356 = vmatprep.subr.mxu0 0.0
        %2357 = vmatpush1.xpose.msra.mxu0 0.0
        %2358 = vmatprep.subr.mxu0 0.0
        %2359 = vmatpush1.xpose.msra.mxu0 0.0
        %2360 = vmatprep.subr.mxu0 0.0
        %2361 = vmatpush1.xpose.msra.mxu0 0.0
        %2362 = vmatprep.subr.mxu0 0.0
        %2363 = vmatpush1.xpose.msra.mxu0 0.0
        %2364 = vmatprep.subr.mxu0 0.0
        %2365 = vmatpush1.xpose.msra.mxu0 0.0
        %2366 = vmatprep.subr.mxu0 0.0
        %2367 = vmatpush1.xpose.msra.mxu0 0.0
        %2368 = vmatprep.subr.mxu0 0.0
        %2369 = vmatpush1.xpose.msra.mxu0 0.0
        %2370 = vmatprep.subr.mxu0 0.0
        %2371 = vmatpush1.xpose.msra.mxu0 0.0
        %2372 = vmatprep.subr.mxu0 0.0
        %2373 = vmatpush1.xpose.msra.mxu0 0.0
        %2374 = vmatprep.subr.mxu0 0.0
        %2375 = vmatpush1.xpose.msra.mxu0 0.0
        %2376 = vmatprep.subr.mxu0 0.0
        %2377 = vmatpush1.xpose.msra.mxu0 0.0
        %2378 = vmatprep.subr.mxu0 0.0
        %2379 = vmatpush1.xpose.msra.mxu0 0.0
        %2380 = vmatprep.subr.mxu0 0.0
        %2381 = vmatpush1.xpose.msra.mxu0 %v2348
        %2382 = vmatprep.subr.mxu0 0.0
        %2383 = vmatpush2.xpose.msra.mxu0 0.0
        %2384 = vmatprep.subr.mxu0 0.0
        %2385 = vmatpush2.xpose.msra.mxu0 0.0
        %2386 = vmatprep.subr.mxu0 0.0
        %2387 = vmatpush2.xpose.msra.mxu0 0.0
        %2388 = vmatprep.subr.mxu0 0.0
        %2389 = vmatpush2.xpose.msra.mxu0 0.0
        %2390 = vmatprep.subr.mxu0 0.0
        %2391 = vmatpush2.xpose.msra.mxu0 0.0
        %2392 = vmatprep.subr.mxu0 0.0
        %2393 = vmatpush2.xpose.msra.mxu0 0.0
        %2394 = vmatprep.subr.mxu0 0.0
        %2395 = vmatpush2.xpose.msra.mxu0 0.0
        %2396 = vmatprep.subr.mxu0 0.0
        %2397 = vmatpush2.xpose.msra.mxu0 0.0
        %2398 = vmatprep.subr.mxu0 0.0
        %2399 = vmatpush2.xpose.msra.mxu0 0.0
        %2400 = vmatprep.subr.mxu0 0.0
        %2401 = vmatpush2.xpose.msra.mxu0 0.0
        %2402 = vmatprep.subr.mxu0 0.0
        %2403 = vmatpush2.xpose.msra.mxu0 0.0
        %2404 = vmatprep.subr.mxu0 0.0
        %2405 = vmatpush2.xpose.msra.mxu0 0.0
        %2406 = vmatprep.subr.mxu0 0.0
        %2407 = vmatpush2.xpose.msra.mxu0 0.0
        %2408 = vmatprep.subr.mxu0 0.0
        %2409 = vmatpush2.xpose.msra.mxu0 0.0
        %2410 = vmatprep.subr.mxu0 0.0
        %2411 = vmatpush2.xpose.msra.mxu0 0.0
        %2412 = vmatprep.subr.mxu0 0.0
        %2413 = vmatpush2.xpose.msra.mxu0 0.0
        %2414 = vmatprep.mubr.f32.mxu0 0.0
        %2415 = vmatmul.mubr.f32.gmra.mxu0 %v2346
        %v2416 = vpop.f32.mrf.mxu0
        %v2417 = vadd.f32 0.0, %v2416
        %v2418 = vpop.f32.mrf.mxu0
        %2419 = vdwg.mxu0
        %v2420 = vmul.f32 %v2417, 0.35355338
        %v2421 = vsel %vm1350, %v2420, -inf
        %2422 = vmax.xlane.f32.xlu0 %v2421
        %v2423 = vpop.xlane.xlu0 %2422
        %v2424 = vsub.f32 %v2420, %v2423
        %v2425 = vmul.f32 %v2424, 1.442695
        %v2426 = vpow.pop %v2425
        %v2427 = vsel %vm1350, %v2426, 0.0
        %2428 = vadd.xlane.f32.xlu0 %v2427
        %v2429 = vpop.xlane.xlu0 %2428
        %v2430 = vrcp.pop %v2429
        %v2431 = vmul.f32 %v2426, %v2430
        %2432 = vrot.lane.b32.xlu0 %v1339, 40
        %v2433 = vpop.permute.xlu0 %2432
        %v2436 = vsel %vm1350, %v2431, 0
        %2438 = vmatprep.subr.mxu0 0.0
        %2439 = vmatpush1.msra.mxu0 0.0
        %2440 = vmatprep.subr.mxu0 0.0
        %2441 = vmatpush1.msra.mxu0 0.0
        %2442 = vmatprep.subr.mxu0 0.0
        %2443 = vmatpush1.msra.mxu0 0.0
        %2444 = vmatprep.subr.mxu0 0.0
        %2445 = vmatpush1.msra.mxu0 0.0
        %2446 = vmatprep.subr.mxu0 0.0
        %2447 = vmatpush1.msra.mxu0 0.0
        %2448 = vmatprep.subr.mxu0 0.0
        %2449 = vmatpush1.msra.mxu0 0.0
        %2450 = vmatprep.subr.mxu0 0.0
        %2451 = vmatpush1.msra.mxu0 0.0
        %2452 = vmatprep.subr.mxu0 0.0
        %2453 = vmatpush1.msra.mxu0 0.0
        %2454 = vmatprep.subr.mxu0 0.0
        %2455 = vmatpush1.msra.mxu0 0.0
        %2456 = vmatprep.subr.mxu0 0.0
        %2457 = vmatpush1.msra.mxu0 0.0
        %2458 = vmatprep.subr.mxu0 0.0
        %2459 = vmatpush1.msra.mxu0 0.0
        %2460 = vmatprep.subr.mxu0 0.0
        %2461 = vmatpush1.msra.mxu0 0.0
        %2462 = vmatprep.subr.mxu0 0.0
        %2463 = vmatpush1.msra.mxu0 0.0
        %2464 = vmatprep.subr.mxu0 0.0
        %2465 = vmatpush1.msra.mxu0 0.0
        %2466 = vmatprep.subr.mxu0 0.0
        %2467 = vmatpush1.msra.mxu0 0.0
        %2468 = vmatprep.subr.mxu0 0.0
        %2469 = vmatpush1.msra.mxu0 %v2433
        %2470 = vmatprep.subr.mxu0 0.0
        %2471 = vmatpush2.msra.mxu0 0.0
        %2472 = vmatprep.subr.mxu0 0.0
        %2473 = vmatpush2.msra.mxu0 0.0
        %2474 = vmatprep.subr.mxu0 0.0
        %2475 = vmatpush2.msra.mxu0 0.0
        %2476 = vmatprep.subr.mxu0 0.0
        %2477 = vmatpush2.msra.mxu0 0.0
        %2478 = vmatprep.subr.mxu0 0.0
        %2479 = vmatpush2.msra.mxu0 0.0
        %2480 = vmatprep.subr.mxu0 0.0
        %2481 = vmatpush2.msra.mxu0 0.0
        %2482 = vmatprep.subr.mxu0 0.0
        %2483 = vmatpush2.msra.mxu0 0.0
        %2484 = vmatprep.subr.mxu0 0.0
        %2485 = vmatpush2.msra.mxu0 0.0
        %2486 = vmatprep.subr.mxu0 0.0
        %2487 = vmatpush2.msra.mxu0 0.0
        %2488 = vmatprep.subr.mxu0 0.0
        %2489 = vmatpush2.msra.mxu0 0.0
        %2490 = vmatprep.subr.mxu0 0.0
        %2491 = vmatpush2.msra.mxu0 0.0
        %2492 = vmatprep.subr.mxu0 0.0
        %2493 = vmatpush2.msra.mxu0 0.0
        %2494 = vmatprep.subr.mxu0 0.0
        %2495 = vmatpush2.msra.mxu0 0.0
        %2496 = vmatprep.subr.mxu0 0.0
        %2497 = vmatpush2.msra.mxu0 0.0
        %2498 = vmatprep.subr.mxu0 0.0
        %2499 = vmatpush2.msra.mxu0 0.0
        %2500 = vmatprep.subr.mxu0 0.0
        %2501 = vmatpush2.msra.mxu0 0.0
        %2502 = vmatprep.mubr.f32.mxu0 0.0
        %2503 = vmatmul.mubr.f32.gmra.mxu0 %v2436
        %v2504 = vpop.f32.mrf.mxu0
        %v2505 = vadd.f32 0.0, %v2504
        %v2506 = vpop.f32.mrf.mxu0
        %2507 = vdwg.mxu0
        %2508 = vrot.lane.b32.xlu0 %v1344, 104
        %v2509 = vpop.permute.xlu0 %2508
        %2510 = vrot.lane.b32.xlu0 %v1344, 72
        %v2511 = vpop.permute.xlu0 %2510
        %v2512 = vsel %vm1350, %v2509, 0
        %v2514 = vsel %vm1350, %v2511, 0
        %2516 = vmatprep.subr.mxu0 0.0
        %2517 = vmatpush1.xpose.msra.mxu0 0.0
        %2518 = vmatprep.subr.mxu0 0.0
        %2519 = vmatpush1.xpose.msra.mxu0 0.0
        %2520 = vmatprep.subr.mxu0 0.0
        %2521 = vmatpush1.xpose.msra.mxu0 0.0
        %2522 = vmatprep.subr.mxu0 0.0
        %2523 = vmatpush1.xpose.msra.mxu0 0.0
        %2524 = vmatprep.subr.mxu0 0.0
        %2525 = vmatpush1.xpose.msra.mxu0 0.0
        %2526 = vmatprep.subr.mxu0 0.0
        %2527 = vmatpush1.xpose.msra.mxu0 0.0
        %2528 = vmatprep.subr.mxu0 0.0
        %2529 = vmatpush1.xpose.msra.mxu0 0.0
        %2530 = vmatprep.subr.mxu0 0.0
        %2531 = vmatpush1.xpose.msra.mxu0 0.0
        %2532 = vmatprep.subr.mxu0 0.0
        %2533 = vmatpush1.xpose.msra.mxu0 0.0
        %2534 = vmatprep.subr.mxu0 0.0
        %2535 = vmatpush1.xpose.msra.mxu0 0.0
        %2536 = vmatprep.subr.mxu0 0.0
        %2537 = vmatpush1.xpose.msra.mxu0 0.0
        %2538 = vmatprep.subr.mxu0 0.0
        %2539 = vmatpush1.xpose.msra.mxu0 0.0
        %2540 = vmatprep.subr.mxu0 0.0
        %2541 = vmatpush1.xpose.msra.mxu0 0.0
        %2542 = vmatprep.subr.mxu0 0.0
        %2543 = vmatpush1.xpose.msra.mxu0 0.0
        %2544 = vmatprep.subr.mxu0 0.0
        %2545 = vmatpush1.xpose.msra.mxu0 0.0
        %2546 = vmatprep.subr.mxu0 0.0
        %2547 = vmatpush1.xpose.msra.mxu0 %v2514
        %2548 = vmatprep.subr.mxu0 0.0
        %2549 = vmatpush2.xpose.msra.mxu0 0.0
        %2550 = vmatprep.subr.mxu0 0.0
        %2551 = vmatpush2.xpose.msra.mxu0 0.0
        %2552 = vmatprep.subr.mxu0 0.0
        %2553 = vmatpush2.xpose.msra.mxu0 0.0
        %2554 = vmatprep.subr.mxu0 0.0
        %2555 = vmatpush2.xpose.msra.mxu0 0.0
        %2556 = vmatprep.subr.mxu0 0.0
        %2557 = vmatpush2.xpose.msra.mxu0 0.0
        %2558 = vmatprep.subr.mxu0 0.0
        %2559 = vmatpush2.xpose.msra.mxu0 0.0
        %2560 = vmatprep.subr.mxu0 0.0
        %2561 = vmatpush2.xpose.msra.mxu0 0.0
        %2562 = vmatprep.subr.mxu0 0.0
        %2563 = vmatpush2.xpose.msra.mxu0 0.0
        %2564 = vmatprep.subr.mxu0 0.0
        %2565 = vmatpush2.xpose.msra.mxu0 0.0
        %2566 = vmatprep.subr.mxu0 0.0
        %2567 = vmatpush2.xpose.msra.mxu0 0.0
        %2568 = vmatprep.subr.mxu0 0.0
        %2569 = vmatpush2.xpose.msra.mxu0 0.0
        %2570 = vmatprep.subr.mxu0 0.0
        %2571 = vmatpush2.xpose.msra.mxu0 0.0
        %2572 = vmatprep.subr.mxu0 0.0
        %2573 = vmatpush2.xpose.msra.mxu0 0.0
        %2574 = vmatprep.subr.mxu0 0.0
        %2575 = vmatpush2.xpose.msra.mxu0 0.0
        %2576 = vmatprep.subr.mxu0 0.0
        %2577 = vmatpush2.xpose.msra.mxu0 0.0
        %2578 = vmatprep.subr.mxu0 0.0
        %2579 = vmatpush2.xpose.msra.mxu0 0.0
        %2580 = vmatprep.mubr.f32.mxu0 0.0
        %2581 = vmatmul.mubr.f32.gmra.mxu0 %v2512
        %v2582 = vpop.f32.mrf.mxu0
        %v2583 = vadd.f32 0.0, %v2582
        %v2584 = vpop.f32.mrf.mxu0
        %2585 = vdwg.mxu0
        %v2586 = vmul.f32 %v2583, 0.35355338
        %v2587 = vsel %vm1350, %v2586, -inf
        %2588 = vmax.xlane.f32.xlu0 %v2587
        %v2589 = vpop.xlane.xlu0 %2588
        %v2590 = vsub.f32 %v2586, %v2589
        %v2591 = vmul.f32 %v2590, 1.442695
        %v2592 = vpow.pop %v2591
        %v2593 = vsel %vm1350, %v2592, 0.0
        %2594 = vadd.xlane.f32.xlu0 %v2593
        %v2595 = vpop.xlane.xlu0 %2594
        %v2596 = vrcp.pop %v2595
        %v2597 = vmul.f32 %v2592, %v2596
        %2598 = vrot.lane.b32.xlu0 %v1344, 40
        %v2599 = vpop.permute.xlu0 %2598
        %v2602 = vsel %vm1350, %v2597, 0
        %2604 = vmatprep.subr.mxu0 0.0
        %2605 = vmatpush1.msra.mxu0 0.0
        %2606 = vmatprep.subr.mxu0 0.0
        %2607 = vmatpush1.msra.mxu0 0.0
        %2608 = vmatprep.subr.mxu0 0.0
        %2609 = vmatpush1.msra.mxu0 0.0
        %2610 = vmatprep.subr.mxu0 0.0
        %2611 = vmatpush1.msra.mxu0 0.0
        %2612 = vmatprep.subr.mxu0 0.0
        %2613 = vmatpush1.msra.mxu0 0.0
        %2614 = vmatprep.subr.mxu0 0.0
        %2615 = vmatpush1.msra.mxu0 0.0
        %2616 = vmatprep.subr.mxu0 0.0
        %2617 = vmatpush1.msra.mxu0 0.0
        %2618 = vmatprep.subr.mxu0 0.0
        %2619 = vmatpush1.msra.mxu0 0.0
        %2620 = vmatprep.subr.mxu0 0.0
        %2621 = vmatpush1.msra.mxu0 0.0
        %2622 = vmatprep.subr.mxu0 0.0
        %2623 = vmatpush1.msra.mxu0 0.0
        %2624 = vmatprep.subr.mxu0 0.0
        %2625 = vmatpush1.msra.mxu0 0.0
        %2626 = vmatprep.subr.mxu0 0.0
        %2627 = vmatpush1.msra.mxu0 0.0
        %2628 = vmatprep.subr.mxu0 0.0
        %2629 = vmatpush1.msra.mxu0 0.0
        %2630 = vmatprep.subr.mxu0 0.0
        %2631 = vmatpush1.msra.mxu0 0.0
        %2632 = vmatprep.subr.mxu0 0.0
        %2633 = vmatpush1.msra.mxu0 0.0
        %2634 = vmatprep.subr.mxu0 0.0
        %2635 = vmatpush1.msra.mxu0 %v2599
        %2636 = vmatprep.subr.mxu0 0.0
        %2637 = vmatpush2.msra.mxu0 0.0
        %2638 = vmatprep.subr.mxu0 0.0
        %2639 = vmatpush2.msra.mxu0 0.0
        %2640 = vmatprep.subr.mxu0 0.0
        %2641 = vmatpush2.msra.mxu0 0.0
        %2642 = vmatprep.subr.mxu0 0.0
        %2643 = vmatpush2.msra.mxu0 0.0
        %2644 = vmatprep.subr.mxu0 0.0
        %2645 = vmatpush2.msra.mxu0 0.0
        %2646 = vmatprep.subr.mxu0 0.0
        %2647 = vmatpush2.msra.mxu0 0.0
        %2648 = vmatprep.subr.mxu0 0.0
        %2649 = vmatpush2.msra.mxu0 0.0
        %2650 = vmatprep.subr.mxu0 0.0
        %2651 = vmatpush2.msra.mxu0 0.0
        %2652 = vmatprep.subr.mxu0 0.0
        %2653 = vmatpush2.msra.mxu0 0.0
        %2654 = vmatprep.subr.mxu0 0.0
        %2655 = vmatpush2.msra.mxu0 0.0
        %2656 = vmatprep.subr.mxu0 0.0
        %2657 = vmatpush2.msra.mxu0 0.0
        %2658 = vmatprep.subr.mxu0 0.0
        %2659 = vmatpush2.msra.mxu0 0.0
        %2660 = vmatprep.subr.mxu0 0.0
        %2661 = vmatpush2.msra.mxu0 0.0
        %2662 = vmatprep.subr.mxu0 0.0
        %2663 = vmatpush2.msra.mxu0 0.0
        %2664 = vmatprep.subr.mxu0 0.0
        %2665 = vmatpush2.msra.mxu0 0.0
        %2666 = vmatprep.subr.mxu0 0.0
        %2667 = vmatpush2.msra.mxu0 0.0
        %2668 = vmatprep.mubr.f32.mxu0 0.0
        %2669 = vmatmul.mubr.f32.gmra.mxu0 %v2602
        %v2670 = vpop.f32.mrf.mxu0
        %v2671 = vadd.f32 0.0, %v2670
        %v2672 = vpop.f32.mrf.mxu0
        %2673 = vdwg.mxu0
        %2676 = vrot.lane.b32.xlu0 %v1841, 8
        %v2677 = vpop.permute.xlu0 %2676
        %2678 = vrot.lane.b32.xlu0 %v2007, 8
        %v2679 = vpop.permute.xlu0 %2678
        %2684 = vrot.lane.b32.xlu0 %v2173, 16
        %v2685 = vpop.permute.xlu0 %2684
        %2686 = vrot.lane.b32.xlu0 %v2339, 16
        %v2687 = vpop.permute.xlu0 %2686
        %2692 = vrot.lane.b32.xlu0 %v2505, 24
        %v2693 = vpop.permute.xlu0 %2692
        %2694 = vrot.lane.b32.xlu0 %v2671, 24
        %v2695 = vpop.permute.xlu0 %2694
        %v2698 = vsel %vm1350, %v1510, %v2677
        %v2699 = vsel %vm1350, %v1675, %v2679
        %vm2700 = vcmask 130048
        %v2701 = vsel %vm2700, %v2698, %v2685
        %v2702 = vsel %vm2700, %v2699, %v2687
        %vm2703 = vcmask 195584
        %v2704 = vsel %vm2703, %v2701, %v2693
        %v2705 = vsel %vm2703, %v2702, %v2695
        %v2706 = vld [vmem:[%s991] sm:$0xff]
        %v2707 = vld [vmem:[%s991 + $0x8] sm:$0xff]
        %v2708 = vld [vmem:[%s991 + $0x10] sm:$0xff]
        %v2709 = vld [vmem:[%s991 + $0x18] sm:$0xff]
        %v2710 = vld [vmem:[%s1241] sm:$0x1]
        %v2712 = vlaneseq
        %v2713 = vshrl.u32 %v2712, 7
        %v2714 = vsub.s32 0, %v2713
        %v2715 = vrot.slane %v2710, %v2714
        %v2718 = vsel %vm1265, %v2704, 0
        %v2721 = vsel %vm1265, %v2705, 0
        %2723 = vmatprep.subr.mxu0 0.0
        %2724 = vmatpush1.msra.mxu0 0.0
        %2725 = vmatprep.subr.mxu0 0.0
        %2726 = vmatpush1.msra.mxu0 0.0
        %2727 = vmatprep.subr.mxu0 0.0
        %2728 = vmatpush1.msra.mxu0 0.0
        %2729 = vmatprep.subr.mxu0 0.0
        %2730 = vmatpush1.msra.mxu0 0.0
        %2731 = vmatprep.subr.mxu0 0.0
        %2732 = vmatpush1.msra.mxu0 0.0
        %2733 = vmatprep.subr.mxu0 0.0
        %2734 = vmatpush1.msra.mxu0 0.0
        %2735 = vmatprep.subr.mxu0 0.0
        %2736 = vmatpush1.msra.mxu0 0.0
        %2737 = vmatprep.subr.mxu0 0.0
        %2738 = vmatpush1.msra.mxu0 0.0
        %2739 = vmatprep.subr.mxu0 0.0
        %2740 = vmatpush1.msra.mxu0 0.0
        %2741 = vmatprep.subr.mxu0 0.0
        %2742 = vmatpush1.msra.mxu0 0.0
        %2743 = vmatprep.subr.mxu0 0.0
        %2744 = vmatpush1.msra.mxu0 0.0
        %2745 = vmatprep.subr.mxu0 0.0
        %2746 = vmatpush1.msra.mxu0 0.0
        %2747 = vmatprep.subr.mxu0 0.0
        %2748 = vmatpush1.msra.mxu0 %v2709
        %2749 = vmatprep.subr.mxu0 0.0
        %2750 = vmatpush1.msra.mxu0 %v2708
        %2751 = vmatprep.subr.mxu0 0.0
        %2752 = vmatpush1.msra.mxu0 %v2707
        %2753 = vmatprep.subr.mxu0 0.0
        %2754 = vmatpush1.msra.mxu0 %v2706
        %2755 = vmatprep.subr.mxu0 0.0
        %2756 = vmatpush2.msra.mxu0 0.0
        %2757 = vmatprep.subr.mxu0 0.0
        %2758 = vmatpush2.msra.mxu0 0.0
        %2759 = vmatprep.subr.mxu0 0.0
        %2760 = vmatpush2.msra.mxu0 0.0
        %2761 = vmatprep.subr.mxu0 0.0
        %2762 = vmatpush2.msra.mxu0 0.0
        %2763 = vmatprep.subr.mxu0 0.0
        %2764 = vmatpush2.msra.mxu0 0.0
        %2765 = vmatprep.subr.mxu0 0.0
        %2766 = vmatpush2.msra.mxu0 0.0
        %2767 = vmatprep.subr.mxu0 0.0
        %2768 = vmatpush2.msra.mxu0 0.0
        %2769 = vmatprep.subr.mxu0 0.0
        %2770 = vmatpush2.msra.mxu0 0.0
        %2771 = vmatprep.subr.mxu0 0.0
        %2772 = vmatpush2.msra.mxu0 0.0
        %2773 = vmatprep.subr.mxu0 0.0
        %2774 = vmatpush2.msra.mxu0 0.0
        %2775 = vmatprep.subr.mxu0 0.0
        %2776 = vmatpush2.msra.mxu0 0.0
        %2777 = vmatprep.subr.mxu0 0.0
        %2778 = vmatpush2.msra.mxu0 0.0
        %2779 = vmatprep.subr.mxu0 0.0
        %2780 = vmatpush2.msra.mxu0 0.0
        %2781 = vmatprep.subr.mxu0 0.0
        %2782 = vmatpush2.msra.mxu0 0.0
        %2783 = vmatprep.subr.mxu0 0.0
        %2784 = vmatpush2.msra.mxu0 0.0
        %2785 = vmatprep.subr.mxu0 0.0
        %2786 = vmatpush2.msra.mxu0 0.0
        %2787 = vmatprep.mubr.f32.mxu0 0.0
        %2788 = vmatmul.mubr.f32.gmra.mxu0 %v2718
        %v2789 = vpop.f32.mrf.mxu0
        %v2790 = vadd.f32 %v2715, %v2789
        %v2791 = vpop.f32.mrf.mxu0
        %2792 = vmatprep.mubr.f32.mxu0 0.0
        %2793 = vmatmul.mubr.f32.gmra.mxu0 %v2721
        %v2794 = vpop.f32.mrf.mxu0
        %v2795 = vadd.f32 %v2715, %v2794
        %v2796 = vpop.f32.mrf.mxu0
        %2797 = vdwg.mxu0
        %v2798 = vadd.f32 %v1251, %v2790
        %v2799 = vadd.f32 %v1252, %v2795
        %v2800 = vld [vmem:[%s1033] sm:$0x1]
        %v2801 = vld [vmem:[%s1041] sm:$0x1]
        %v2802 = vsel %vm1265, %v2798, 0.0
        %2803 = vadd.xlane.f32.xlu0 %v2802
        %v2804 = vpop.xlane.xlu0 %2803
        %v2805 = vsel %vm1265, %v2799, 0.0
        %2806 = vadd.xlane.f32.xlu0 %v2805
        %v2807 = vpop.xlane.xlu0 %2806
        %v2808 = vrcp.pop 32.0
        %v2809 = vmul.f32 %v2804, %v2808
        %v2810 = vmul.f32 %v2807, %v2808
        %v2811 = vsub.f32 %v2798, %v2809
        %v2812 = vsub.f32 %v2799, %v2810
        %v2813 = vmul.f32 %v2811, %v2811
        %v2814 = vmul.f32 %v2812, %v2812
        %v2815 = vsel %vm1265, %v2813, 0.0
        %2816 = vadd.xlane.f32.xlu0 %v2815
        %v2817 = vpop.xlane.xlu0 %2816
        %v2818 = vsel %vm1265, %v2814, 0.0
        %2819 = vadd.xlane.f32.xlu0 %v2818
        %v2820 = vpop.xlane.xlu0 %2819
        %v2821 = vmul.f32 %v2817, %v2808
        %v2822 = vmul.f32 %v2820, %v2808
        %v2823 = vadd.f32 %v2821, 1e-05
        %v2824 = vadd.f32 %v2822, 1e-05
        %v2825 = vrsqrt.pop %v2823
        %v2826 = vrsqrt.pop %v2824
        %v2827 = vmul.f32 %v2811, %v2825
        %v2828 = vmul.f32 %v2812, %v2826
        %v2830 = vlaneseq
        %v2831 = vshrl.u32 %v2830, 7
        %v2832 = vsub.s32 0, %v2831
        %v2833 = vrot.slane %v2800, %v2832
        %v2835 = vmul.f32 %v2827, %v2833
        %v2836 = vmul.f32 %v2828, %v2833
        %v2838 = vlaneseq
        %v2839 = vshrl.u32 %v2838, 7
        %v2840 = vsub.s32 0, %v2839
        %v2841 = vrot.slane %v2801, %v2840
        %v2843 = vadd.f32 %v2835, %v2841
        %v2844 = vadd.f32 %v2836, %v2841
        %v2845 = vld [vmem:[%s1000] sm:$0xff]
        %v2846 = vld [vmem:[%s1000 + $0x8] sm:$0xff]
        %v2847 = vld [vmem:[%s1000 + $0x10] sm:$0xff]
        %v2848 = vld [vmem:[%s1000 + $0x18] sm:$0xff]
        %v2849 = vld [vmem:[%s1008] sm:$0x1]
        %v2851 = vlaneseq
        %v2852 = vshrl.u32 %v2851, 7
        %v2853 = vsub.s32 0, %v2852
        %v2854 = vrot.slane %v2849, %v2853
        %v2857 = vsel %vm1265, %v1253, 0
        %2859 = vmatprep.subr.mxu0 0.0
        %2860 = vmatpush1.msra.mxu0 0.0
        %2861 = vmatprep.subr.mxu0 0.0
        %2862 = vmatpush1.msra.mxu0 0.0
        %2863 = vmatprep.subr.mxu0 0.0
        %2864 = vmatpush1.msra.mxu0 0.0
        %2865 = vmatprep.subr.mxu0 0.0
        %2866 = vmatpush1.msra.mxu0 0.0
        %2867 = vmatprep.subr.mxu0 0.0
        %2868 = vmatpush1.msra.mxu0 0.0
        %2869 = vmatprep.subr.mxu0 0.0
        %2870 = vmatpush1.msra.mxu0 0.0
        %2871 = vmatprep.subr.mxu0 0.0
        %2872 = vmatpush1.msra.mxu0 0.0
        %2873 = vmatprep.subr.mxu0 0.0
        %2874 = vmatpush1.msra.mxu0 0.0
        %2875 = vmatprep.subr.mxu0 0.0
        %2876 = vmatpush1.msra.mxu0 0.0
        %2877 = vmatprep.subr.mxu0 0.0
        %2878 = vmatpush1.msra.mxu0 0.0
        %2879 = vmatprep.subr.mxu0 0.0
        %2880 = vmatpush1.msra.mxu0 0.0
        %2881 = vmatprep.subr.mxu0 0.0
        %2882 = vmatpush1.msra.mxu0 0.0
        %2883 = vmatprep.subr.mxu0 0.0
        %2884 = vmatpush1.msra.mxu0 %v2848
        %2885 = vmatprep.subr.mxu0 0.0
        %2886 = vmatpush1.msra.mxu0 %v2847
        %2887 = vmatprep.subr.mxu0 0.0
        %2888 = vmatpush1.msra.mxu0 %v2846
        %2889 = vmatprep.subr.mxu0 0.0
        %2890 = vmatpush1.msra.mxu0 %v2845
        %2891 = vmatprep.subr.mxu0 0.0
        %2892 = vmatpush2.msra.mxu0 0.0
        %2893 = vmatprep.subr.mxu0 0.0
        %2894 = vmatpush2.msra.mxu0 0.0
        %2895 = vmatprep.subr.mxu0 0.0
        %2896 = vmatpush2.msra.mxu0 0.0
        %2897 = vmatprep.subr.mxu0 0.0
        %2898 = vmatpush2.msra.mxu0 0.0
        %2899 = vmatprep.subr.mxu0 0.0
        %2900 = vmatpush2.msra.mxu0 0.0
        %2901 = vmatprep.subr.mxu0 0.0
        %2902 = vmatpush2.msra.mxu0 0.0
        %2903 = vmatprep.subr.mxu0 0.0
        %2904 = vmatpush2.msra.mxu0 0.0
        %2905 = vmatprep.subr.mxu0 0.0
        %2906 = vmatpush2.msra.mxu0 0.0
        %2907 = vmatprep.subr.mxu0 0.0
        %2908 = vmatpush2.msra.mxu0 0.0
        %2909 = vmatprep.subr.mxu0 0.0
        %2910 = vmatpush2.msra.mxu0 0.0
        %2911 = vmatprep.subr.mxu0 0.0
        %2912 = vmatpush2.msra.mxu0 0.0
        %2913 = vmatprep.subr.mxu0 0.0
        %2914 = vmatpush2.msra.mxu0 0.0
        %2915 = vmatprep.subr.mxu0 0.0
        %2916 = vmatpush2.msra.mxu0 0.0
        %2917 = vmatprep.subr.mxu0 0.0
        %2918 = vmatpush2.msra.mxu0 0.0
        %2919 = vmatprep.subr.mxu0 0.0
        %2920 = vmatpush2.msra.mxu0 0.0
        %2921 = vmatprep.subr.mxu0 0.0
        %2922 = vmatpush2.msra.mxu0 0.0
        %2923 = vmatprep.mubr.f32.mxu0 0.0
        %2924 = vmatmul.mubr.f32.gmra.mxu0 %v2857
        %v2925 = vpop.f32.mrf.mxu0
        %v2926 = vadd.f32 %v2854, %v2925
        %v2927 = vpop.f32.mrf.mxu0
        %2928 = vdwg.mxu0
        %v2929 = vld [vmem:[%s1017] sm:$0xff]
        %v2930 = vld [vmem:[%s1017 + $0x8] sm:$0xff]
        %v2931 = vld [vmem:[%s1017 + $0x10] sm:$0xff]
        %v2932 = vld [vmem:[%s1017 + $0x18] sm:$0xff]
        %v2933 = vld [vmem:[%s1025] sm:$0x1]
        %v2935 = vlaneseq
        %v2936 = vshrl.u32 %v2935, 7
        %v2937 = vsub.s32 0, %v2936
        %v2938 = vrot.slane %v2933, %v2937
        %v2941 = vsel %vm1265, %v2926, 0
        %2943 = vmatprep.subr.mxu0 0.0
        %2944 = vmatpush1.msra.mxu0 0.0
        %2945 = vmatprep.subr.mxu0 0.0
        %2946 = vmatpush1.msra.mxu0 0.0
        %2947 = vmatprep.subr.mxu0 0.0
        %2948 = vmatpush1.msra.mxu0 0.0
        %2949 = vmatprep.subr.mxu0 0.0
        %2950 = vmatpush1.msra.mxu0 0.0
        %2951 = vmatprep.subr.mxu0 0.0
        %2952 = vmatpush1.msra.mxu0 0.0
        %2953 = vmatprep.subr.mxu0 0.0
        %2954 = vmatpush1.msra.mxu0 0.0
        %2955 = vmatprep.subr.mxu0 0.0
        %2956 = vmatpush1.msra.mxu0 0.0
        %2957 = vmatprep.subr.mxu0 0.0
        %2958 = vmatpush1.msra.mxu0 0.0
        %2959 = vmatprep.subr.mxu0 0.0
        %2960 = vmatpush1.msra.mxu0 0.0
        %2961 = vmatprep.subr.mxu0 0.0
        %2962 = vmatpush1.msra.mxu0 0.0
        %2963 = vmatprep.subr.mxu0 0.0
        %2964 = vmatpush1.msra.mxu0 0.0
        %2965 = vmatprep.subr.mxu0 0.0
        %2966 = vmatpush1.msra.mxu0 0.0
        %2967 = vmatprep.subr.mxu0 0.0
        %2968 = vmatpush1.msra.mxu0 %v2932
        %2969 = vmatprep.subr.mxu0 0.0
        %2970 = vmatpush1.msra.mxu0 %v2931
        %2971 = vmatprep.subr.mxu0 0.0
        %2972 = vmatpush1.msra.mxu0 %v2930
        %2973 = vmatprep.subr.mxu0 0.0
        %2974 = vmatpush1.msra.mxu0 %v2929
        %2975 = vmatprep.subr.mxu0 0.0
        %2976 = vmatpush2.msra.mxu0 0.0
        %2977 = vmatprep.subr.mxu0 0.0
        %2978 = vmatpush2.msra.mxu0 0.0
        %2979 = vmatprep.subr.mxu0 0.0
        %2980 = vmatpush2.msra.mxu0 0.0
        %2981 = vmatprep.subr.mxu0 0.0
        %2982 = vmatpush2.msra.mxu0 0.0
        %2983 = vmatprep.subr.mxu0 0.0
        %2984 = vmatpush2.msra.mxu0 0.0
        %2985 = vmatprep.subr.mxu0 0.0
        %2986 = vmatpush2.msra.mxu0 0.0
        %2987 = vmatprep.subr.mxu0 0.0
        %2988 = vmatpush2.msra.mxu0 0.0
        %2989 = vmatprep.subr.mxu0 0.0
        %2990 = vmatpush2.msra.mxu0 0.0
        %2991 = vmatprep.subr.mxu0 0.0
        %2992 = vmatpush2.msra.mxu0 0.0
        %2993 = vmatprep.subr.mxu0 0.0
        %2994 = vmatpush2.msra.mxu0 0.0
        %2995 = vmatprep.subr.mxu0 0.0
        %2996 = vmatpush2.msra.mxu0 0.0
        %2997 = vmatprep.subr.mxu0 0.0
        %2998 = vmatpush2.msra.mxu0 0.0
        %2999 = vmatprep.subr.mxu0 0.0
        %3000 = vmatpush2.msra.mxu0 0.0
        %3001 = vmatprep.subr.mxu0 0.0
        %3002 = vmatpush2.msra.mxu0 0.0
        %3003 = vmatprep.subr.mxu0 0.0
        %3004 = vmatpush2.msra.mxu0 0.0
        %3005 = vmatprep.subr.mxu0 0.0
        %3006 = vmatpush2.msra.mxu0 0.0
        %3007 = vmatprep.mubr.f32.mxu0 0.0
        %3008 = vmatmul.mubr.f32.gmra.mxu0 %v2941
        %v3009 = vpop.f32.mrf.mxu0
        %v3010 = vadd.f32 %v2938, %v3009
        %v3011 = vpop.f32.mrf.mxu0
        %3012 = vdwg.mxu0
        %v3013 = vlaneseq
        %v3014 = vshrl.u32 %v3013, 7
        %v3015 = vsub.s32 0, %v3014
        %v3016 = vrot.slane %v3010, %v3015
        %v3017 = vlaneseq
        %v3018 = vshrl.u32 %v3017, 7
        %v3019 = vsub.s32 1, %v3018
        %v3020 = vrot.slane %v3010, %v3019
        %v3021 = vadd.f32 %v2843, %v3016
        %v3022 = vadd.f32 %v2844, %v3020
        %v3023 = vld [vmem:[%s1049] sm:$0x1]
        %v3024 = vld [vmem:[%s1057] sm:$0x1]
        %v3025 = vsel %vm1265, %v3021, 0.0
        %3026 = vadd.xlane.f32.xlu0 %v3025
        %v3027 = vpop.xlane.xlu0 %3026
        %v3028 = vsel %vm1265, %v3022, 0.0
        %3029 = vadd.xlane.f32.xlu0 %v3028
        %v3030 = vpop.xlane.xlu0 %3029
        %v3031 = vmul.f32 %v3027, %v2808
        %v3032 = vmul.f32 %v3030, %v2808
        %v3033 = vsub.f32 %v3021, %v3031
        %v3034 = vsub.f32 %v3022, %v3032
        %v3035 = vmul.f32 %v3033, %v3033
        %v3036 = vmul.f32 %v3034, %v3034
        %v3037 = vsel %vm1265, %v3035, 0.0
        %3038 = vadd.xlane.f32.xlu0 %v3037
        %v3039 = vpop.xlane.xlu0 %3038
        %v3040 = vsel %vm1265, %v3036, 0.0
        %3041 = vadd.xlane.f32.xlu0 %v3040
        %v3042 = vpop.xlane.xlu0 %3041
        %v3043 = vmul.f32 %v3039, %v2808
        %v3044 = vmul.f32 %v3042, %v2808
        %v3045 = vadd.f32 %v3043, 1e-05
        %v3046 = vadd.f32 %v3044, 1e-05
        %v3047 = vrsqrt.pop %v3045
        %v3048 = vrsqrt.pop %v3046
        %v3049 = vmul.f32 %v3033, %v3047
        %v3050 = vmul.f32 %v3034, %v3048
        %v3052 = vlaneseq
        %v3053 = vshrl.u32 %v3052, 7
        %v3054 = vsub.s32 0, %v3053
        %v3055 = vrot.slane %v3023, %v3054
        %v3057 = vmul.f32 %v3049, %v3055
        %v3058 = vmul.f32 %v3050, %v3055
        %v3060 = vlaneseq
        %v3061 = vshrl.u32 %v3060, 7
        %v3062 = vsub.s32 0, %v3061
        %v3063 = vrot.slane %v3024, %v3062
        %v3065 = vadd.f32 %v3057, %v3063
        %v3066 = vadd.f32 %v3058, %v3063
        %v3067 = vld [vmem:[%s1082] sm:$0xff]
        %v3068 = vld [vmem:[%s1082 + $0x8] sm:$0xff]
        %v3069 = vld [vmem:[%s1082 + $0x10] sm:$0xff]
        %v3070 = vld [vmem:[%s1082 + $0x18] sm:$0xff]
        %v3071 = vld [vmem:[%s1082 + $0x20] sm:$0xff]
        %v3072 = vld [vmem:[%s1082 + $0x28] sm:$0xff]
        %v3073 = vld [vmem:[%s1082 + $0x30] sm:$0xff]
        %v3074 = vld [vmem:[%s1082 + $0x38] sm:$0xff]
        %v3075 = vld [vmem:[%s1082 + $0x40] sm:$0xff]
        %v3076 = vld [vmem:[%s1082 + $0x48] sm:$0xff]
        %v3077 = vld [vmem:[%s1082 + $0x50] sm:$0xff]
        %v3078 = vld [vmem:[%s1082 + $0x58] sm:$0xff]
        %v3079 = vld [vmem:[%s1082 + $0x60] sm:$0xff]
        %v3080 = vld [vmem:[%s1082 + $0x68] sm:$0xff]
        %v3081 = vld [vmem:[%s1082 + $0x70] sm:$0xff]
        %v3082 = vld [vmem:[%s1082 + $0x78] sm:$0xff]
        %v3083 = vld [vmem:[%s1082 + $0x80] sm:$0xff]
        %v3084 = vld [vmem:[%s1082 + $0x88] sm:$0xff]
        %v3085 = vld [vmem:[%s1082 + $0x90] sm:$0xff]
        %v3086 = vld [vmem:[%s1082 + $0x98] sm:$0xff]
        %v3087 = vld [vmem:[%s1082 + $0xa0] sm:$0xff]
        %v3088 = vld [vmem:[%s1082 + $0xa8] sm:$0xff]
        %v3089 = vld [vmem:[%s1082 + $0xb0] sm:$0xff]
        %v3090 = vld [vmem:[%s1082 + $0xb8] sm:$0xff]
        %v3091 = vld [vmem:[%s1082 + $0xc0] sm:$0xff]
        %v3092 = vld [vmem:[%s1082 + $0xc8] sm:$0xff]
        %v3093 = vld [vmem:[%s1082 + $0xd0] sm:$0xff]
        %v3094 = vld [vmem:[%s1082 + $0xd8] sm:$0xff]
        %v3095 = vld [vmem:[%s1082 + $0xe0] sm:$0xff]
        %v3096 = vld [vmem:[%s1082 + $0xe8] sm:$0xff]
        %v3097 = vld [vmem:[%s1082 + $0xf0] sm:$0xff]
        %v3098 = vld [vmem:[%s1082 + $0xf8] sm:$0xff]
        %v3099 = vld [vmem:[%s1082 + $0x100] sm:$0xff]
        %v3100 = vld [vmem:[%s1082 + $0x108] sm:$0xff]
        %v3101 = vld [vmem:[%s1082 + $0x110] sm:$0xff]
        %v3102 = vld [vmem:[%s1082 + $0x118] sm:$0xff]
        %v3103 = vld [vmem:[%s1082 + $0x120] sm:$0xff]
        %v3104 = vld [vmem:[%s1082 + $0x128] sm:$0xff]
        %v3105 = vld [vmem:[%s1082 + $0x130] sm:$0xff]
        %v3106 = vld [vmem:[%s1082 + $0x138] sm:$0xff]
        %v3107 = vld [vmem:[%s1082 + $0x140] sm:$0xff]
        %v3108 = vld [vmem:[%s1082 + $0x148] sm:$0xff]
        %v3109 = vld [vmem:[%s1082 + $0x150] sm:$0xff]
        %v3110 = vld [vmem:[%s1082 + $0x158] sm:$0xff]
        %v3111 = vld [vmem:[%s1082 + $0x160] sm:$0xff]
        %v3112 = vld [vmem:[%s1082 + $0x168] sm:$0xff]
        %v3113 = vld [vmem:[%s1082 + $0x170] sm:$0xff]
        %v3114 = vld [vmem:[%s1082 + $0x178] sm:$0xff]
        %v3115 = vld [vmem:[%s1082 + $0x180] sm:$0xff]
        %v3116 = vld [vmem:[%s1082 + $0x188] sm:$0xff]
        %v3117 = vld [vmem:[%s1082 + $0x190] sm:$0xff]
        %v3118 = vld [vmem:[%s1082 + $0x198] sm:$0xff]
        %v3119 = vld [vmem:[%s1082 + $0x1a0] sm:$0xff]
        %v3120 = vld [vmem:[%s1082 + $0x1a8] sm:$0xff]
        %v3121 = vld [vmem:[%s1082 + $0x1b0] sm:$0xff]
        %v3122 = vld [vmem:[%s1082 + $0x1b8] sm:$0xff]
        %v3123 = vld [vmem:[%s1082 + $0x1c0] sm:$0xff]
        %v3124 = vld [vmem:[%s1082 + $0x1c8] sm:$0xff]
        %v3125 = vld [vmem:[%s1082 + $0x1d0] sm:$0xff]
        %v3126 = vld [vmem:[%s1082 + $0x1d8] sm:$0xff]
        %v3127 = vld [vmem:[%s1082 + $0x1e0] sm:$0xff]
        %v3128 = vld [vmem:[%s1082 + $0x1e8] sm:$0xff]
        %v3129 = vld [vmem:[%s1082 + $0x1f0] sm:$0xff]
        %v3130 = vld [vmem:[%s1082 + $0x1f8] sm:$0xff]
        %v3131 = vld [vmem:[%s1091] sm:$0xff]
        %v3132 = vld [vmem:[%s1091 + $0x8] sm:$0xff]
        %v3135 = vlaneseq
        %v3136 = vshrl.u32 %v3135, 7
        %v3137 = vsub.s32 0, %v3136
        %v3138 = vrot.slane %v3131, %v3137
        %v3139 = vlaneseq
        %v3140 = vshrl.u32 %v3139, 7
        %v3141 = vsub.s32 1, %v3140
        %v3142 = vrot.slane %v3131, %v3141
        %v3143 = vlaneseq
        %v3144 = vshrl.u32 %v3143, 7
        %v3145 = vsub.s32 2, %v3144
        %v3146 = vrot.slane %v3131, %v3145
        %v3147 = vlaneseq
        %v3148 = vshrl.u32 %v3147, 7
        %v3149 = vsub.s32 3, %v3148
        %v3150 = vrot.slane %v3131, %v3149
        %v3151 = vlaneseq
        %v3152 = vshrl.u32 %v3151, 7
        %v3153 = vsub.s32 4, %v3152
        %v3154 = vrot.slane %v3131, %v3153
        %v3155 = vlaneseq
        %v3156 = vshrl.u32 %v3155, 7
        %v3157 = vsub.s32 5, %v3156
        %v3158 = vrot.slane %v3131, %v3157
        %v3159 = vlaneseq
        %v3160 = vshrl.u32 %v3159, 7
        %v3161 = vsub.s32 6, %v3160
        %v3162 = vrot.slane %v3131, %v3161
        %v3163 = vlaneseq
        %v3164 = vshrl.u32 %v3163, 7
        %v3165 = vsub.s32 7, %v3164
        %v3166 = vrot.slane %v3131, %v3165
        %v3167 = vlaneseq
        %v3168 = vshrl.u32 %v3167, 7
        %v3169 = vsub.s32 0, %v3168
        %v3170 = vrot.slane %v3132, %v3169
        %v3171 = vlaneseq
        %v3172 = vshrl.u32 %v3171, 7
        %v3173 = vsub.s32 1, %v3172
        %v3174 = vrot.slane %v3132, %v3173
        %v3175 = vlaneseq
        %v3176 = vshrl.u32 %v3175, 7
        %v3177 = vsub.s32 2, %v3176
        %v3178 = vrot.slane %v3132, %v3177
        %v3179 = vlaneseq
        %v3180 = vshrl.u32 %v3179, 7
        %v3181 = vsub.s32 3, %v3180
        %v3182 = vrot.slane %v3132, %v3181
        %v3183 = vlaneseq
        %v3184 = vshrl.u32 %v3183, 7
        %v3185 = vsub.s32 4, %v3184
        %v3186 = vrot.slane %v3132, %v3185
        %v3187 = vlaneseq
        %v3188 = vshrl.u32 %v3187, 7
        %v3189 = vsub.s32 5, %v3188
        %v3190 = vrot.slane %v3132, %v3189
        %v3191 = vlaneseq
        %v3192 = vshrl.u32 %v3191, 7
        %v3193 = vsub.s32 6, %v3192
        %v3194 = vrot.slane %v3132, %v3193
        %v3195 = vlaneseq
        %v3196 = vshrl.u32 %v3195, 7
        %v3197 = vsub.s32 7, %v3196
        %v3198 = vrot.slane %v3132, %v3197
        %v3216 = vsel %vm1265, %v3065, 0
        %v3219 = vsel %vm1265, %v3066, 0
        %3221 = vmatprep.subr.mxu0 0.0
        %3222 = vmatpush1.msra.mxu0 0.0
        %3223 = vmatprep.subr.mxu0 0.0
        %3224 = vmatpush1.msra.mxu0 0.0
        %3225 = vmatprep.subr.mxu0 0.0
        %3226 = vmatpush1.msra.mxu0 0.0
        %3227 = vmatprep.subr.mxu0 0.0
        %3228 = vmatpush1.msra.mxu0 0.0
        %3229 = vmatprep.subr.mxu0 0.0
        %3230 = vmatpush1.msra.mxu0 0.0
        %3231 = vmatprep.subr.mxu0 0.0
        %3232 = vmatpush1.msra.mxu0 0.0
        %3233 = vmatprep.subr.mxu0 0.0
        %3234 = vmatpush1.msra.mxu0 0.0
        %3235 = vmatprep.subr.mxu0 0.0
        %3236 = vmatpush1.msra.mxu0 0.0
        %3237 = vmatprep.subr.mxu0 0.0
        %3238 = vmatpush1.msra.mxu0 0.0
        %3239 = vmatprep.subr.mxu0 0.0
        %3240 = vmatpush1.msra.mxu0 0.0
        %3241 = vmatprep.subr.mxu0 0.0
        %3242 = vmatpush1.msra.mxu0 0.0
        %3243 = vmatprep.subr.mxu0 0.0
        %3244 = vmatpush1.msra.mxu0 0.0
        %3245 = vmatprep.subr.mxu0 %v3116
        %3246 = vmatpush1.msra.mxu0 %v3115
        %3247 = vmatprep.subr.mxu0 %v3100
        %3248 = vmatpush1.msra.mxu0 %v3099
        %3249 = vmatprep.subr.mxu0 %v3084
        %3250 = vmatpush1.msra.mxu0 %v3083
        %3251 = vmatprep.subr.mxu0 %v3068
        %3252 = vmatpush1.msra.mxu0 %v3067
        %3253 = vmatprep.subr.mxu0 0.0
        %3254 = vmatpush2.msra.mxu0 0.0
        %3255 = vmatprep.subr.mxu0 0.0
        %3256 = vmatpush2.msra.mxu0 0.0
        %3257 = vmatprep.subr.mxu0 0.0
        %3258 = vmatpush2.msra.mxu0 0.0
        %3259 = vmatprep.subr.mxu0 0.0
        %3260 = vmatpush2.msra.mxu0 0.0
        %3261 = vmatprep.subr.mxu0 0.0
        %3262 = vmatpush2.msra.mxu0 0.0
        %3263 = vmatprep.subr.mxu0 0.0
        %3264 = vmatpush2.msra.mxu0 0.0
        %3265 = vmatprep.subr.mxu0 0.0
        %3266 = vmatpush2.msra.mxu0 0.0
        %3267 = vmatprep.subr.mxu0 0.0
        %3268 = vmatpush2.msra.mxu0 0.0
        %3269 = vmatprep.subr.mxu0 0.0
        %3270 = vmatpush2.msra.mxu0 0.0
        %3271 = vmatprep.subr.mxu0 0.0
        %3272 = vmatpush2.msra.mxu0 0.0
        %3273 = vmatprep.subr.mxu0 0.0
        %3274 = vmatpush2.msra.mxu0 0.0
        %3275 = vmatprep.subr.mxu0 0.0
        %3276 = vmatpush2.msra.mxu0 0.0
        %3277 = vmatprep.subr.mxu0 0.0
        %3278 = vmatpush2.msra.mxu0 0.0
        %3279 = vmatprep.subr.mxu0 0.0
        %3280 = vmatpush2.msra.mxu0 0.0
        %3281 = vmatprep.subr.mxu0 0.0
        %3282 = vmatpush2.msra.mxu0 0.0
        %3283 = vmatprep.subr.mxu0 0.0
        %3284 = vmatpush2.msra.mxu0 0.0
        %3285 = vmatprep.mubr.f32.mxu0 0.0
        %3286 = vmatmul.mubr.f32.gmra.mxu0 %v3216
        %v3287 = vpop.f32.mrf.mxu0
        %v3288 = vadd.f32 %v3138, %v3287
        %v3289 = vpop.f32.mrf.mxu0
        %v3290 = vadd.f32 %v3142, %v3289
        %3291 = vmatprep.mubr.f32.mxu0 0.0
        %3292 = vmatmul.mubr.f32.gmra.mxu0 %v3219
        %v3293 = vpop.f32.mrf.mxu0
        %v3294 = vadd.f32 %v3138, %v3293
        %v3295 = vpop.f32.mrf.mxu0
        %v3296 = vadd.f32 %v3142, %v3295
        %3297 = vdwg.mxu0
        %3298 = vmatprep.subr.mxu0 0.0
        %3299 = vmatpush1.msra.mxu0 0.0
        %3300 = vmatprep.subr.mxu0 0.0
        %3301 = vmatpush1.msra.mxu0 0.0
        %3302 = vmatprep.subr.mxu0 0.0
        %3303 = vmatpush1.msra.mxu0 0.0
        %3304 = vmatprep.subr.mxu0 0.0
        %3305 = vmatpush1.msra.mxu0 0.0
        %3306 = vmatprep.subr.mxu0 0.0
        %3307 = vmatpush1.msra.mxu0 0.0
        %3308 = vmatprep.subr.mxu0 0.0
        %3309 = vmatpush1.msra.mxu0 0.0
        %3310 = vmatprep.subr.mxu0 0.0
        %3311 = vmatpush1.msra.mxu0 0.0
        %3312 = vmatprep.subr.mxu0 0.0
        %3313 = vmatpush1.msra.mxu0 0.0
        %3314 = vmatprep.subr.mxu0 0.0
        %3315 = vmatpush1.msra.mxu0 0.0
        %3316 = vmatprep.subr.mxu0 0.0
        %3317 = vmatpush1.msra.mxu0 0.0
        %3318 = vmatprep.subr.mxu0 0.0
        %3319 = vmatpush1.msra.mxu0 0.0
        %3320 = vmatprep.subr.mxu0 0.0
        %3321 = vmatpush1.msra.mxu0 0.0
        %3322 = vmatprep.subr.mxu0 %v3118
        %3323 = vmatpush1.msra.mxu0 %v3117
        %3324 = vmatprep.subr.mxu0 %v3102
        %3325 = vmatpush1.msra.mxu0 %v3101
        %3326 = vmatprep.subr.mxu0 %v3086
        %3327 = vmatpush1.msra.mxu0 %v3085
        %3328 = vmatprep.subr.mxu0 %v3070
        %3329 = vmatpush1.msra.mxu0 %v3069
        %3330 = vmatprep.subr.mxu0 0.0
        %3331 = vmatpush2.msra.mxu0 0.0
        %3332 = vmatprep.subr.mxu0 0.0
        %3333 = vmatpush2.msra.mxu0 0.0
        %3334 = vmatprep.subr.mxu0 0.0
        %3335 = vmatpush2.msra.mxu0 0.0
        %3336 = vmatprep.subr.mxu0 0.0
        %3337 = vmatpush2.msra.mxu0 0.0
        %3338 = vmatprep.subr.mxu0 0.0
        %3339 = vmatpush2.msra.mxu0 0.0
        %3340 = vmatprep.subr.mxu0 0.0
        %3341 = vmatpush2.msra.mxu0 0.0
        %3342 = vmatprep.subr.mxu0 0.0
        %3343 = vmatpush2.msra.mxu0 0.0
        %3344 = vmatprep.subr.mxu0 0.0
        %3345 = vmatpush2.msra.mxu0 0.0
        %3346 = vmatprep.subr.mxu0 0.0
        %3347 = vmatpush2.msra.mxu0 0.0
        %3348 = vmatprep.subr.mxu0 0.0
        %3349 = vmatpush2.msra.mxu0 0.0
        %3350 = vmatprep.subr.mxu0 0.0
        %3351 = vmatpush2.msra.mxu0 0.0
        %3352 = vmatprep.subr.mxu0 0.0
        %3353 = vmatpush2.msra.mxu0 0.0
        %3354 = vmatprep.subr.mxu0 0.0
        %3355 = vmatpush2.msra.mxu0 0.0
        %3356 = vmatprep.subr.mxu0 0.0
        %3357 = vmatpush2.msra.mxu0 0.0
        %3358 = vmatprep.subr.mxu0 0.0
        %3359 = vmatpush2.msra.mxu0 0.0
        %3360 = vmatprep.subr.mxu0 0.0
        %3361 = vmatpush2.msra.mxu0 0.0
        %3362 = vmatprep.mubr.f32.mxu0 0.0
        %3363 = vmatmul.mubr.f32.gmra.mxu0 %v3216
        %v3364 = vpop.f32.mrf.mxu0
        %v3365 = vadd.f32 %v3146, %v3364
        %v3366 = vpop.f32.mrf.mxu0
        %v3367 = vadd.f32 %v3150, %v3366
        %3368 = vmatprep.mubr.f32.mxu0 0.0
        %3369 = vmatmul.mubr.f32.gmra.mxu0 %v3219
        %v3370 = vpop.f32.mrf.mxu0
        %v3371 = vadd.f32 %v3146, %v3370
        %v3372 = vpop.f32.mrf.mxu0
        %v3373 = vadd.f32 %v3150, %v3372
        %3374 = vdwg.mxu0
        %3375 = vmatprep.subr.mxu0 0.0
        %3376 = vmatpush1.msra.mxu0 0.0
        %3377 = vmatprep.subr.mxu0 0.0
        %3378 = vmatpush1.msra.mxu0 0.0
        %3379 = vmatprep.subr.mxu0 0.0
        %3380 = vmatpush1.msra.mxu0 0.0
        %3381 = vmatprep.subr.mxu0 0.0
        %3382 = vmatpush1.msra.mxu0 0.0
        %3383 = vmatprep.subr.mxu0 0.0
        %3384 = vmatpush1.msra.mxu0 0.0
        %3385 = vmatprep.subr.mxu0 0.0
        %3386 = vmatpush1.msra.mxu0 0.0
        %3387 = vmatprep.subr.mxu0 0.0
        %3388 = vmatpush1.msra.mxu0 0.0
        %3389 = vmatprep.subr.mxu0 0.0
        %3390 = vmatpush1.msra.mxu0 0.0
        %3391 = vmatprep.subr.mxu0 0.0
        %3392 = vmatpush1.msra.mxu0 0.0
        %3393 = vmatprep.subr.mxu0 0.0
        %3394 = vmatpush1.msra.mxu0 0.0
        %3395 = vmatprep.subr.mxu0 0.0
        %3396 = vmatpush1.msra.mxu0 0.0
        %3397 = vmatprep.subr.mxu0 0.0
        %3398 = vmatpush1.msra.mxu0 0.0
        %3399 = vmatprep.subr.mxu0 %v3120
        %3400 = vmatpush1.msra.mxu0 %v3119
        %3401 = vmatprep.subr.mxu0 %v3104
        %3402 = vmatpush1.msra.mxu0 %v3103
        %3403 = vmatprep.subr.mxu0 %v3088
        %3404 = vmatpush1.msra.mxu0 %v3087
        %3405 = vmatprep.subr.mxu0 %v3072
        %3406 = vmatpush1.msra.mxu0 %v3071
        %3407 = vmatprep.subr.mxu0 0.0
        %3408 = vmatpush2.msra.mxu0 0.0
        %3409 = vmatprep.subr.mxu0 0.0
        %3410 = vmatpush2.msra.mxu0 0.0
        %3411 = vmatprep.subr.mxu0 0.0
        %3412 = vmatpush2.msra.mxu0 0.0
        %3413 = vmatprep.subr.mxu0 0.0
        %3414 = vmatpush2.msra.mxu0 0.0
        %3415 = vmatprep.subr.mxu0 0.0
        %3416 = vmatpush2.msra.mxu0 0.0
        %3417 = vmatprep.subr.mxu0 0.0
        %3418 = vmatpush2.msra.mxu0 0.0
        %3419 = vmatprep.subr.mxu0 0.0
        %3420 = vmatpush2.msra.mxu0 0.0
        %3421 = vmatprep.subr.mxu0 0.0
        %3422 = vmatpush2.msra.mxu0 0.0
        %3423 = vmatprep.subr.mxu0 0.0
        %3424 = vmatpush2.msra.mxu0 0.0
        %3425 = vmatprep.subr.mxu0 0.0
        %3426 = vmatpush2.msra.mxu0 0.0
        %3427 = vmatprep.subr.mxu0 0.0
        %3428 = vmatpush2.msra.mxu0 0.0
        %3429 = vmatprep.subr.mxu0 0.0
        %3430 = vmatpush2.msra.mxu0 0.0
        %3431 = vmatprep.subr.mxu0 0.0
        %3432 = vmatpush2.msra.mxu0 0.0
        %3433 = vmatprep.subr.mxu0 0.0
        %3434 = vmatpush2.msra.mxu0 0.0
        %3435 = vmatprep.subr.mxu0 0.0
        %3436 = vmatpush2.msra.mxu0 0.0
        %3437 = vmatprep.subr.mxu0 0.0
        %3438 = vmatpush2.msra.mxu0 0.0
        %3439 = vmatprep.mubr.f32.mxu0 0.0
        %3440 = vmatmul.mubr.f32.gmra.mxu0 %v3216
        %v3441 = vpop.f32.mrf.mxu0
        %v3442 = vadd.f32 %v3154, %v3441
        %v3443 = vpop.f32.mrf.mxu0
        %v3444 = vadd.f32 %v3158, %v3443
        %3445 = vmatprep.mubr.f32.mxu0 0.0
        %3446 = vmatmul.mubr.f32.gmra.mxu0 %v3219
        %v3447 = vpop.f32.mrf.mxu0
        %v3448 = vadd.f32 %v3154, %v3447
        %v3449 = vpop.f32.mrf.mxu0
        %v3450 = vadd.f32 %v3158, %v3449
        %3451 = vdwg.mxu0
        %3452 = vmatprep.subr.mxu0 0.0
        %3453 = vmatpush1.msra.mxu0 0.0
        %3454 = vmatprep.subr.mxu0 0.0
        %3455 = vmatpush1.msra.mxu0 0.0
        %3456 = vmatprep.subr.mxu0 0.0
        %3457 = vmatpush1.msra.mxu0 0.0
        %3458 = vmatprep.subr.mxu0 0.0
        %3459 = vmatpush1.msra.mxu0 0.0
        %3460 = vmatprep.subr.mxu0 0.0
        %3461 = vmatpush1.msra.mxu0 0.0
        %3462 = vmatprep.subr.mxu0 0.0
        %3463 = vmatpush1.msra.mxu0 0.0
        %3464 = vmatprep.subr.mxu0 0.0
        %3465 = vmatpush1.msra.mxu0 0.0
        %3466 = vmatprep.subr.mxu0 0.0
        %3467 = vmatpush1.msra.mxu0 0.0
        %3468 = vmatprep.subr.mxu0 0.0
        %3469 = vmatpush1.msra.mxu0 0.0
        %3470 = vmatprep.subr.mxu0 0.0
        %3471 = vmatpush1.msra.mxu0 0.0
        %3472 = vmatprep.subr.mxu0 0.0
        %3473 = vmatpush1.msra.mxu0 0.0
        %3474 = vmatprep.subr.mxu0 0.0
        %3475 = vmatpush1.msra.mxu0 0.0
        %3476 = vmatprep.subr.mxu0 %v3122
        %3477 = vmatpush1.msra.mxu0 %v3121
        %3478 = vmatprep.subr.mxu0 %v3106
        %3479 = vmatpush1.msra.mxu0 %v3105
        %3480 = vmatprep.subr.mxu0 %v3090
        %3481 = vmatpush1.msra.mxu0 %v3089
        %3482 = vmatprep.subr.mxu0 %v3074
        %3483 = vmatpush1.msra.mxu0 %v3073
        %3484 = vmatprep.subr.mxu0 0.0
        %3485 = vmatpush2.msra.mxu0 0.0
        %3486 = vmatprep.subr.mxu0 0.0
        %3487 = vmatpush2.msra.mxu0 0.0
        %3488 = vmatprep.subr.mxu0 0.0
        %3489 = vmatpush2.msra.mxu0 0.0
        %3490 = vmatprep.subr.mxu0 0.0
        %3491 = vmatpush2.msra.mxu0 0.0
        %3492 = vmatprep.subr.mxu0 0.0
        %3493 = vmatpush2.msra.mxu0 0.0
        %3494 = vmatprep.subr.mxu0 0.0
        %3495 = vmatpush2.msra.mxu0 0.0
        %3496 = vmatprep.subr.mxu0 0.0
        %3497 = vmatpush2.msra.mxu0 0.0
        %3498 = vmatprep.subr.mxu0 0.0
        %3499 = vmatpush2.msra.mxu0 0.0
        %3500 = vmatprep.subr.mxu0 0.0
        %3501 = vmatpush2.msra.mxu0 0.0
        %3502 = vmatprep.subr.mxu0 0.0
        %3503 = vmatpush2.msra.mxu0 0.0
        %3504 = vmatprep.subr.mxu0 0.0
        %3505 = vmatpush2.msra.mxu0 0.0
        %3506 = vmatprep.subr.mxu0 0.0
        %3507 = vmatpush2.msra.mxu0 0.0
        %3508 = vmatprep.subr.mxu0 0.0
        %3509 = vmatpush2.msra.mxu0 0.0
        %3510 = vmatprep.subr.mxu0 0.0
        %3511 = vmatpush2.msra.mxu0 0.0
        %3512 = vmatprep.subr.mxu0 0.0
        %3513 = vmatpush2.msra.mxu0 0.0
        %3514 = vmatprep.subr.mxu0 0.0
        %3515 = vmatpush2.msra.mxu0 0.0
        %3516 = vmatprep.mubr.f32.mxu0 0.0
        %3517 = vmatmul.mubr.f32.gmra.mxu0 %v3216
        %v3518 = vpop.f32.mrf.mxu0
        %v3519 = vadd.f32 %v3162, %v3518
        %v3520 = vpop.f32.mrf.mxu0
        %v3521 = vadd.f32 %v3166, %v3520
        %3522 = vmatprep.mubr.f32.mxu0 0.0
        %3523 = vmatmul.mubr.f32.gmra.mxu0 %v3219
        %v3524 = vpop.f32.mrf.mxu0
        %v3525 = vadd.f32 %v3162, %v3524
        %v3526 = vpop.f32.mrf.mxu0
        %v3527 = vadd.f32 %v3166, %v3526
        %3528 = vdwg.mxu0
        %3529 = vmatprep.subr.mxu0 0.0
        %3530 = vmatpush1.msra.mxu0 0.0
        %3531 = vmatprep.subr.mxu0 0.0
        %3532 = vmatpush1.msra.mxu0 0.0
        %3533 = vmatprep.subr.mxu0 0.0
        %3534 = vmatpush1.msra.mxu0 0.0
        %3535 = vmatprep.subr.mxu0 0.0
        %3536 = vmatpush1.msra.mxu0 0.0
        %3537 = vmatprep.subr.mxu0 0.0
        %3538 = vmatpush1.msra.mxu0 0.0
        %3539 = vmatprep.subr.mxu0 0.0
        %3540 = vmatpush1.msra.mxu0 0.0
        %3541 = vmatprep.subr.mxu0 0.0
        %3542 = vmatpush1.msra.mxu0 0.0
        %3543 = vmatprep.subr.mxu0 0.0
        %3544 = vmatpush1.msra.mxu0 0.0
        %3545 = vmatprep.subr.mxu0 0.0
        %3546 = vmatpush1.msra.mxu0 0.0
        %3547 = vmatprep.subr.mxu0 0.0
        %3548 = vmatpush1.msra.mxu0 0.0
        %3549 = vmatprep.subr.mxu0 0.0
        %3550 = vmatpush1.msra.mxu0 0.0
        %3551 = vmatprep.subr.mxu0 0.0
        %3552 = vmatpush1.msra.mxu0 0.0
        %3553 = vmatprep.subr.mxu0 %v3124
        %3554 = vmatpush1.msra.mxu0 %v3123
        %3555 = vmatprep.subr.mxu0 %v3108
        %3556 = vmatpush1.msra.mxu0 %v3107
        %3557 = vmatprep.subr.mxu0 %v3092
        %3558 = vmatpush1.msra.mxu0 %v3091
        %3559 = vmatprep.subr.mxu0 %v3076
        %3560 = vmatpush1.msra.mxu0 %v3075
        %3561 = vmatprep.subr.mxu0 0.0
        %3562 = vmatpush2.msra.mxu0 0.0
        %3563 = vmatprep.subr.mxu0 0.0
        %3564 = vmatpush2.msra.mxu0 0.0
        %3565 = vmatprep.subr.mxu0 0.0
        %3566 = vmatpush2.msra.mxu0 0.0
        %3567 = vmatprep.subr.mxu0 0.0
        %3568 = vmatpush2.msra.mxu0 0.0
        %3569 = vmatprep.subr.mxu0 0.0
        %3570 = vmatpush2.msra.mxu0 0.0
        %3571 = vmatprep.subr.mxu0 0.0
        %3572 = vmatpush2.msra.mxu0 0.0
        %3573 = vmatprep.subr.mxu0 0.0
        %3574 = vmatpush2.msra.mxu0 0.0
        %3575 = vmatprep.subr.mxu0 0.0
        %3576 = vmatpush2.msra.mxu0 0.0
        %3577 = vmatprep.subr.mxu0 0.0
        %3578 = vmatpush2.msra.mxu0 0.0
        %3579 = vmatprep.subr.mxu0 0.0
        %3580 = vmatpush2.msra.mxu0 0.0
        %3581 = vmatprep.subr.mxu0 0.0
        %3582 = vmatpush2.msra.mxu0 0.0
        %3583 = vmatprep.subr.mxu0 0.0
        %3584 = vmatpush2.msra.mxu0 0.0
        %3585 = vmatprep.subr.mxu0 0.0
        %3586 = vmatpush2.msra.mxu0 0.0
        %3587 = vmatprep.subr.mxu0 0.0
        %3588 = vmatpush2.msra.mxu0 0.0
        %3589 = vmatprep.subr.mxu0 0.0
        %3590 = vmatpush2.msra.mxu0 0.0
        %3591 = vmatprep.subr.mxu0 0.0
        %3592 = vmatpush2.msra.mxu0 0.0
        %3593 = vmatprep.mubr.f32.mxu0 0.0
        %3594 = vmatmul.mubr.f32.gmra.mxu0 %v3216
        %v3595 = vpop.f32.mrf.mxu0
        %v3596 = vadd.f32 %v3170, %v3595
        %v3597 = vpop.f32.mrf.mxu0
        %v3598 = vadd.f32 %v3174, %v3597
        %3599 = vmatprep.mubr.f32.mxu0 0.0
        %3600 = vmatmul.mubr.f32.gmra.mxu0 %v3219
        %v3601 = vpop.f32.mrf.mxu0
        %v3602 = vadd.f32 %v3170, %v3601
        %v3603 = vpop.f32.mrf.mxu0
        %v3604 = vadd.f32 %v3174, %v3603
        %3605 = vdwg.mxu0
        %3606 = vmatprep.subr.mxu0 0.0
        %3607 = vmatpush1.msra.mxu0 0.0
        %3608 = vmatprep.subr.mxu0 0.0
        %3609 = vmatpush1.msra.mxu0 0.0
        %3610 = vmatprep.subr.mxu0 0.0
        %3611 = vmatpush1.msra.mxu0 0.0
        %3612 = vmatprep.subr.mxu0 0.0
        %3613 = vmatpush1.msra.mxu0 0.0
        %3614 = vmatprep.subr.mxu0 0.0
        %3615 = vmatpush1.msra.mxu0 0.0
        %3616 = vmatprep.subr.mxu0 0.0
        %3617 = vmatpush1.msra.mxu0 0.0
        %3618 = vmatprep.subr.mxu0 0.0
        %3619 = vmatpush1.msra.mxu0 0.0
        %3620 = vmatprep.subr.mxu0 0.0
        %3621 = vmatpush1.msra.mxu0 0.0
        %3622 = vmatprep.subr.mxu0 0.0
        %3623 = vmatpush1.msra.mxu0 0.0
        %3624 = vmatprep.subr.mxu0 0.0
        %3625 = vmatpush1.msra.mxu0 0.0
        %3626 = vmatprep.subr.mxu0 0.0
        %3627 = vmatpush1.msra.mxu0 0.0
        %3628 = vmatprep.subr.mxu0 0.0
        %3629 = vmatpush1.msra.mxu0 0.0
        %3630 = vmatprep.subr.mxu0 %v3126
        %3631 = vmatpush1.msra.mxu0 %v3125
        %3632 = vmatprep.subr.mxu0 %v3110
        %3633 = vmatpush1.msra.mxu0 %v3109
        %3634 = vmatprep.subr.mxu0 %v3094
        %3635 = vmatpush1.msra.mxu0 %v3093
        %3636 = vmatprep.subr.mxu0 %v3078
        %3637 = vmatpush1.msra.mxu0 %v3077
        %3638 = vmatprep.subr.mxu0 0.0
        %3639 = vmatpush2.msra.mxu0 0.0
        %3640 = vmatprep.subr.mxu0 0.0
        %3641 = vmatpush2.msra.mxu0 0.0
        %3642 = vmatprep.subr.mxu0 0.0
        %3643 = vmatpush2.msra.mxu0 0.0
        %3644 = vmatprep.subr.mxu0 0.0
        %3645 = vmatpush2.msra.mxu0 0.0
        %3646 = vmatprep.subr.mxu0 0.0
        %3647 = vmatpush2.msra.mxu0 0.0
        %3648 = vmatprep.subr.mxu0 0.0
        %3649 = vmatpush2.msra.mxu0 0.0
        %3650 = vmatprep.subr.mxu0 0.0
        %3651 = vmatpush2.msra.mxu0 0.0
        %3652 = vmatprep.subr.mxu0 0.0
        %3653 = vmatpush2.msra.mxu0 0.0
        %3654 = vmatprep.subr.mxu0 0.0
        %3655 = vmatpush2.msra.mxu0 0.0
        %3656 = vmatprep.subr.mxu0 0.0
        %3657 = vmatpush2.msra.mxu0 0.0
        %3658 = vmatprep.subr.mxu0 0.0
        %3659 = vmatpush2.msra.mxu0 0.0
        %3660 = vmatprep.subr.mxu0 0.0
        %3661 = vmatpush2.msra.mxu0 0.0
        %3662 = vmatprep.subr.mxu0 0.0
        %3663 = vmatpush2.msra.mxu0 0.0
        %3664 = vmatprep.subr.mxu0 0.0
        %3665 = vmatpush2.msra.mxu0 0.0
        %3666 = vmatprep.subr.mxu0 0.0
        %3667 = vmatpush2.msra.mxu0 0.0
        %3668 = vmatprep.subr.mxu0 0.0
        %3669 = vmatpush2.msra.mxu0 0.0
        %3670 = vmatprep.mubr.f32.mxu0 0.0
        %3671 = vmatmul.mubr.f32.gmra.mxu0 %v3216
        %v3672 = vpop.f32.mrf.mxu0
        %v3673 = vadd.f32 %v3178, %v3672
        %v3674 = vpop.f32.mrf.mxu0
        %v3675 = vadd.f32 %v3182, %v3674
        %3676 = vmatprep.mubr.f32.mxu0 0.0
        %3677 = vmatmul.mubr.f32.gmra.mxu0 %v3219
        %v3678 = vpop.f32.mrf.mxu0
        %v3679 = vadd.f32 %v3178, %v3678
        %v3680 = vpop.f32.mrf.mxu0
        %v3681 = vadd.f32 %v3182, %v3680
        %3682 = vdwg.mxu0
        %3683 = vmatprep.subr.mxu0 0.0
        %3684 = vmatpush1.msra.mxu0 0.0
        %3685 = vmatprep.subr.mxu0 0.0
        %3686 = vmatpush1.msra.mxu0 0.0
        %3687 = vmatprep.subr.mxu0 0.0
        %3688 = vmatpush1.msra.mxu0 0.0
        %3689 = vmatprep.subr.mxu0 0.0
        %3690 = vmatpush1.msra.mxu0 0.0
        %3691 = vmatprep.subr.mxu0 0.0
        %3692 = vmatpush1.msra.mxu0 0.0
        %3693 = vmatprep.subr.mxu0 0.0
        %3694 = vmatpush1.msra.mxu0 0.0
        %3695 = vmatprep.subr.mxu0 0.0
        %3696 = vmatpush1.msra.mxu0 0.0
        %3697 = vmatprep.subr.mxu0 0.0
        %3698 = vmatpush1.msra.mxu0 0.0
        %3699 = vmatprep.subr.mxu0 0.0
        %3700 = vmatpush1.msra.mxu0 0.0
        %3701 = vmatprep.subr.mxu0 0.0
        %3702 = vmatpush1.msra.mxu0 0.0
        %3703 = vmatprep.subr.mxu0 0.0
        %3704 = vmatpush1.msra.mxu0 0.0
        %3705 = vmatprep.subr.mxu0 0.0
        %3706 = vmatpush1.msra.mxu0 0.0
        %3707 = vmatprep.subr.mxu0 %v3128
        %3708 = vmatpush1.msra.mxu0 %v3127
        %3709 = vmatprep.subr.mxu0 %v3112
        %3710 = vmatpush1.msra.mxu0 %v3111
        %3711 = vmatprep.subr.mxu0 %v3096
        %3712 = vmatpush1.msra.mxu0 %v3095
        %3713 = vmatprep.subr.mxu0 %v3080
        %3714 = vmatpush1.msra.mxu0 %v3079
        %3715 = vmatprep.subr.mxu0 0.0
        %3716 = vmatpush2.msra.mxu0 0.0
        %3717 = vmatprep.subr.mxu0 0.0
        %3718 = vmatpush2.msra.mxu0 0.0
        %3719 = vmatprep.subr.mxu0 0.0
        %3720 = vmatpush2.msra.mxu0 0.0
        %3721 = vmatprep.subr.mxu0 0.0
        %3722 = vmatpush2.msra.mxu0 0.0
        %3723 = vmatprep.subr.mxu0 0.0
        %3724 = vmatpush2.msra.mxu0 0.0
        %3725 = vmatprep.subr.mxu0 0.0
        %3726 = vmatpush2.msra.mxu0 0.0
        %3727 = vmatprep.subr.mxu0 0.0
        %3728 = vmatpush2.msra.mxu0 0.0
        %3729 = vmatprep.subr.mxu0 0.0
        %3730 = vmatpush2.msra.mxu0 0.0
        %3731 = vmatprep.subr.mxu0 0.0
        %3732 = vmatpush2.msra.mxu0 0.0
        %3733 = vmatprep.subr.mxu0 0.0
        %3734 = vmatpush2.msra.mxu0 0.0
        %3735 = vmatprep.subr.mxu0 0.0
        %3736 = vmatpush2.msra.mxu0 0.0
        %3737 = vmatprep.subr.mxu0 0.0
        %3738 = vmatpush2.msra.mxu0 0.0
        %3739 = vmatprep.subr.mxu0 0.0
        %3740 = vmatpush2.msra.mxu0 0.0
        %3741 = vmatprep.subr.mxu0 0.0
        %3742 = vmatpush2.msra.mxu0 0.0
        %3743 = vmatprep.subr.mxu0 0.0
        %3744 = vmatpush2.msra.mxu0 0.0
        %3745 = vmatprep.subr.mxu0 0.0
        %3746 = vmatpush2.msra.mxu0 0.0
        %3747 = vmatprep.mubr.f32.mxu0 0.0
        %3748 = vmatmul.mubr.f32.gmra.mxu0 %v3216
        %v3749 = vpop.f32.mrf.mxu0
        %v3750 = vadd.f32 %v3186, %v3749
        %v3751 = vpop.f32.mrf.mxu0
        %v3752 = vadd.f32 %v3190, %v3751
        %3753 = vmatprep.mubr.f32.mxu0 0.0
        %3754 = vmatmul.mubr.f32.gmra.mxu0 %v3219
        %v3755 = vpop.f32.mrf.mxu0
        %v3756 = vadd.f32 %v3186, %v3755
        %v3757 = vpop.f32.mrf.mxu0
        %v3758 = vadd.f32 %v3190, %v3757
        %3759 = vdwg.mxu0
        %3760 = vmatprep.subr.mxu0 0.0
        %3761 = vmatpush1.msra.mxu0 0.0
        %3762 = vmatprep.subr.mxu0 0.0
        %3763 = vmatpush1.msra.mxu0 0.0
        %3764 = vmatprep.subr.mxu0 0.0
        %3765 = vmatpush1.msra.mxu0 0.0
        %3766 = vmatprep.subr.mxu0 0.0
        %3767 = vmatpush1.msra.mxu0 0.0
        %3768 = vmatprep.subr.mxu0 0.0
        %3769 = vmatpush1.msra.mxu0 0.0
        %3770 = vmatprep.subr.mxu0 0.0
        %3771 = vmatpush1.msra.mxu0 0.0
        %3772 = vmatprep.subr.mxu0 0.0
        %3773 = vmatpush1.msra.mxu0 0.0
        %3774 = vmatprep.subr.mxu0 0.0
        %3775 = vmatpush1.msra.mxu0 0.0
        %3776 = vmatprep.subr.mxu0 0.0
        %3777 = vmatpush1.msra.mxu0 0.0
        %3778 = vmatprep.subr.mxu0 0.0
        %3779 = vmatpush1.msra.mxu0 0.0
        %3780 = vmatprep.subr.mxu0 0.0
        %3781 = vmatpush1.msra.mxu0 0.0
        %3782 = vmatprep.subr.mxu0 0.0
        %3783 = vmatpush1.msra.mxu0 0.0
        %3784 = vmatprep.subr.mxu0 %v3130
        %3785 = vmatpush1.msra.mxu0 %v3129
        %3786 = vmatprep.subr.mxu0 %v3114
        %3787 = vmatpush1.msra.mxu0 %v3113
        %3788 = vmatprep.subr.mxu0 %v3098
        %3789 = vmatpush1.msra.mxu0 %v3097
        %3790 = vmatprep.subr.mxu0 %v3082
        %3791 = vmatpush1.msra.mxu0 %v3081
        %3792 = vmatprep.subr.mxu0 0.0
        %3793 = vmatpush2.msra.mxu0 0.0
        %3794 = vmatprep.subr.mxu0 0.0
        %3795 = vmatpush2.msra.mxu0 0.0
        %3796 = vmatprep.subr.mxu0 0.0
        %3797 = vmatpush2.msra.mxu0 0.0
        %3798 = vmatprep.subr.mxu0 0.0
        %3799 = vmatpush2.msra.mxu0 0.0
        %3800 = vmatprep.subr.mxu0 0.0
        %3801 = vmatpush2.msra.mxu0 0.0
        %3802 = vmatprep.subr.mxu0 0.0
        %3803 = vmatpush2.msra.mxu0 0.0
        %3804 = vmatprep.subr.mxu0 0.0
        %3805 = vmatpush2.msra.mxu0 0.0
        %3806 = vmatprep.subr.mxu0 0.0
        %3807 = vmatpush2.msra.mxu0 0.0
        %3808 = vmatprep.subr.mxu0 0.0
        %3809 = vmatpush2.msra.mxu0 0.0
        %3810 = vmatprep.subr.mxu0 0.0
        %3811 = vmatpush2.msra.mxu0 0.0
        %3812 = vmatprep.subr.mxu0 0.0
        %3813 = vmatpush2.msra.mxu0 0.0
        %3814 = vmatprep.subr.mxu0 0.0
        %3815 = vmatpush2.msra.mxu0 0.0
        %3816 = vmatprep.subr.mxu0 0.0
        %3817 = vmatpush2.msra.mxu0 0.0
        %3818 = vmatprep.subr.mxu0 0.0
        %3819 = vmatpush2.msra.mxu0 0.0
        %3820 = vmatprep.subr.mxu0 0.0
        %3821 = vmatpush2.msra.mxu0 0.0
        %3822 = vmatprep.subr.mxu0 0.0
        %3823 = vmatpush2.msra.mxu0 0.0
        %3824 = vmatprep.mubr.f32.mxu0 0.0
        %3825 = vmatmul.mubr.f32.gmra.mxu0 %v3216
        %v3826 = vpop.f32.mrf.mxu0
        %v3827 = vadd.f32 %v3194, %v3826
        %v3828 = vpop.f32.mrf.mxu0
        %v3829 = vadd.f32 %v3198, %v3828
        %3830 = vmatprep.mubr.f32.mxu0 0.0
        %3831 = vmatmul.mubr.f32.gmra.mxu0 %v3219
        %v3832 = vpop.f32.mrf.mxu0
        %v3833 = vadd.f32 %v3194, %v3832
        %v3834 = vpop.f32.mrf.mxu0
        %v3835 = vadd.f32 %v3198, %v3834
        %3836 = vdwg.mxu0
        %v3837 = vmax.f32 %v3288, 0.0
        %v3838 = vmax.f32 %v3290, 0.0
        %v3839 = vmax.f32 %v3365, 0.0
        %v3840 = vmax.f32 %v3367, 0.0
        %v3841 = vmax.f32 %v3442, 0.0
        %v3842 = vmax.f32 %v3444, 0.0
        %v3843 = vmax.f32 %v3519, 0.0
        %v3844 = vmax.f32 %v3521, 0.0
        %v3845 = vmax.f32 %v3596, 0.0
        %v3846 = vmax.f32 %v3598, 0.0
        %v3847 = vmax.f32 %v3673, 0.0
        %v3848 = vmax.f32 %v3675, 0.0
        %v3849 = vmax.f32 %v3750, 0.0
        %v3850 = vmax.f32 %v3752, 0.0
        %v3851 = vmax.f32 %v3827, 0.0
        %v3852 = vmax.f32 %v3829, 0.0
        %v3853 = vmax.f32 %v3294, 0.0
        %v3854 = vmax.f32 %v3296, 0.0
        %v3855 = vmax.f32 %v3371, 0.0
        %v3856 = vmax.f32 %v3373, 0.0
        %v3857 = vmax.f32 %v3448, 0.0
        %v3858 = vmax.f32 %v3450, 0.0
        %v3859 = vmax.f32 %v3525, 0.0
        %v3860 = vmax.f32 %v3527, 0.0
        %v3861 = vmax.f32 %v3602, 0.0
        %v3862 = vmax.f32 %v3604, 0.0
        %v3863 = vmax.f32 %v3679, 0.0
        %v3864 = vmax.f32 %v3681, 0.0
        %v3865 = vmax.f32 %v3756, 0.0
        %v3866 = vmax.f32 %v3758, 0.0
        %v3867 = vmax.f32 %v3833, 0.0
        %v3868 = vmax.f32 %v3835, 0.0
        %v3869 = vld [vmem:[%s1100] sm:$0xff]
        %v3870 = vld [vmem:[%s1100 + $0x8] sm:$0xff]
        %v3871 = vld [vmem:[%s1100 + $0x10] sm:$0xff]
        %v3872 = vld [vmem:[%s1100 + $0x18] sm:$0xff]
        %v3873 = vld [vmem:[%s1100 + $0x20] sm:$0xff]
        %v3874 = vld [vmem:[%s1100 + $0x28] sm:$0xff]
        %v3875 = vld [vmem:[%s1100 + $0x30] sm:$0xff]
        %v3876 = vld [vmem:[%s1100 + $0x38] sm:$0xff]
        %v3877 = vld [vmem:[%s1100 + $0x40] sm:$0xff]
        %v3878 = vld [vmem:[%s1100 + $0x48] sm:$0xff]
        %v3879 = vld [vmem:[%s1100 + $0x50] sm:$0xff]
        %v3880 = vld [vmem:[%s1100 + $0x58] sm:$0xff]
        %v3881 = vld [vmem:[%s1100 + $0x60] sm:$0xff]
        %v3882 = vld [vmem:[%s1100 + $0x68] sm:$0xff]
        %v3883 = vld [vmem:[%s1100 + $0x70] sm:$0xff]
        %v3884 = vld [vmem:[%s1100 + $0x78] sm:$0xff]
        %v3885 = vld [vmem:[%s1100 + $0x80] sm:$0xff]
        %v3886 = vld [vmem:[%s1100 + $0x88] sm:$0xff]
        %v3887 = vld [vmem:[%s1100 + $0x90] sm:$0xff]
        %v3888 = vld [vmem:[%s1100 + $0x98] sm:$0xff]
        %v3889 = vld [vmem:[%s1100 + $0xa0] sm:$0xff]
        %v3890 = vld [vmem:[%s1100 + $0xa8] sm:$0xff]
        %v3891 = vld [vmem:[%s1100 + $0xb0] sm:$0xff]
        %v3892 = vld [vmem:[%s1100 + $0xb8] sm:$0xff]
        %v3893 = vld [vmem:[%s1100 + $0xc0] sm:$0xff]
        %v3894 = vld [vmem:[%s1100 + $0xc8] sm:$0xff]
        %v3895 = vld [vmem:[%s1100 + $0xd0] sm:$0xff]
        %v3896 = vld [vmem:[%s1100 + $0xd8] sm:$0xff]
        %v3897 = vld [vmem:[%s1100 + $0xe0] sm:$0xff]
        %v3898 = vld [vmem:[%s1100 + $0xe8] sm:$0xff]
        %v3899 = vld [vmem:[%s1100 + $0xf0] sm:$0xff]
        %v3900 = vld [vmem:[%s1100 + $0xf8] sm:$0xff]
        %v3901 = vld [vmem:[%s1100 + $0x100] sm:$0xff]
        %v3902 = vld [vmem:[%s1100 + $0x108] sm:$0xff]
        %v3903 = vld [vmem:[%s1100 + $0x110] sm:$0xff]
        %v3904 = vld [vmem:[%s1100 + $0x118] sm:$0xff]
        %v3905 = vld [vmem:[%s1100 + $0x120] sm:$0xff]
        %v3906 = vld [vmem:[%s1100 + $0x128] sm:$0xff]
        %v3907 = vld [vmem:[%s1100 + $0x130] sm:$0xff]
        %v3908 = vld [vmem:[%s1100 + $0x138] sm:$0xff]
        %v3909 = vld [vmem:[%s1100 + $0x140] sm:$0xff]
        %v3910 = vld [vmem:[%s1100 + $0x148] sm:$0xff]
        %v3911 = vld [vmem:[%s1100 + $0x150] sm:$0xff]
        %v3912 = vld [vmem:[%s1100 + $0x158] sm:$0xff]
        %v3913 = vld [vmem:[%s1100 + $0x160] sm:$0xff]
        %v3914 = vld [vmem:[%s1100 + $0x168] sm:$0xff]
        %v3915 = vld [vmem:[%s1100 + $0x170] sm:$0xff]
        %v3916 = vld [vmem:[%s1100 + $0x178] sm:$0xff]
        %v3917 = vld [vmem:[%s1100 + $0x180] sm:$0xff]
        %v3918 = vld [vmem:[%s1100 + $0x188] sm:$0xff]
        %v3919 = vld [vmem:[%s1100 + $0x190] sm:$0xff]
        %v3920 = vld [vmem:[%s1100 + $0x198] sm:$0xff]
        %v3921 = vld [vmem:[%s1100 + $0x1a0] sm:$0xff]
        %v3922 = vld [vmem:[%s1100 + $0x1a8] sm:$0xff]
        %v3923 = vld [vmem:[%s1100 + $0x1b0] sm:$0xff]
        %v3924 = vld [vmem:[%s1100 + $0x1b8] sm:$0xff]
        %v3925 = vld [vmem:[%s1100 + $0x1c0] sm:$0xff]
        %v3926 = vld [vmem:[%s1100 + $0x1c8] sm:$0xff]
        %v3927 = vld [vmem:[%s1100 + $0x1d0] sm:$0xff]
        %v3928 = vld [vmem:[%s1100 + $0x1d8] sm:$0xff]
        %v3929 = vld [vmem:[%s1100 + $0x1e0] sm:$0xff]
        %v3930 = vld [vmem:[%s1100 + $0x1e8] sm:$0xff]
        %v3931 = vld [vmem:[%s1100 + $0x1f0] sm:$0xff]
        %v3932 = vld [vmem:[%s1100 + $0x1f8] sm:$0xff]
        %v3933 = vld [vmem:[%s1108] sm:$0x1]
        %v3935 = vlaneseq
        %v3936 = vshrl.u32 %v3935, 7
        %v3937 = vsub.s32 0, %v3936
        %v3938 = vrot.slane %v3933, %v3937
        %3940 = vmatprep.subr.mxu0 0.0
        %3941 = vmatpush1.xpose.msra.mxu0 0.0
        %3942 = vmatprep.subr.mxu0 0.0
        %3943 = vmatpush1.xpose.msra.mxu0 0.0
        %3944 = vmatprep.subr.mxu0 0.0
        %3945 = vmatpush1.xpose.msra.mxu0 0.0
        %3946 = vmatprep.subr.mxu0 0.0
        %3947 = vmatpush1.xpose.msra.mxu0 0.0
        %3948 = vmatprep.subr.mxu0 0.0
        %3949 = vmatpush1.xpose.msra.mxu0 0.0
        %3950 = vmatprep.subr.mxu0 0.0
        %3951 = vmatpush1.xpose.msra.mxu0 0.0
        %3952 = vmatprep.subr.mxu0 0.0
        %3953 = vmatpush1.xpose.msra.mxu0 0.0
        %3954 = vmatprep.subr.mxu0 0.0
        %3955 = vmatpush1.xpose.msra.mxu0 0.0
        %3956 = vmatprep.subr.mxu0 0.0
        %3957 = vmatpush1.xpose.msra.mxu0 0.0
        %3958 = vmatprep.subr.mxu0 0.0
        %3959 = vmatpush1.xpose.msra.mxu0 0.0
        %3960 = vmatprep.subr.mxu0 0.0
        %3961 = vmatpush1.xpose.msra.mxu0 0.0
        %3962 = vmatprep.subr.mxu0 0.0
        %3963 = vmatpush1.xpose.msra.mxu0 0.0
        %3964 = vmatprep.subr.mxu0 %v3918
        %3965 = vmatpush1.xpose.msra.mxu0 %v3917
        %3966 = vmatprep.subr.mxu0 %v3902
        %3967 = vmatpush1.xpose.msra.mxu0 %v3901
        %3968 = vmatprep.subr.mxu0 %v3886
        %3969 = vmatpush1.xpose.msra.mxu0 %v3885
        %3970 = vmatprep.subr.mxu0 %v3870
        %3971 = vmatpush1.xpose.msra.mxu0 %v3869
        %3972 = vmatprep.subr.mxu0 0.0
        %3973 = vmatpush2.xpose.msra.mxu0 0.0
        %3974 = vmatprep.subr.mxu0 0.0
        %3975 = vmatpush2.xpose.msra.mxu0 0.0
        %3976 = vmatprep.subr.mxu0 0.0
        %3977 = vmatpush2.xpose.msra.mxu0 0.0
        %3978 = vmatprep.subr.mxu0 0.0
        %3979 = vmatpush2.xpose.msra.mxu0 0.0
        %3980 = vmatprep.subr.mxu0 0.0
        %3981 = vmatpush2.xpose.msra.mxu0 0.0
        %3982 = vmatprep.subr.mxu0 0.0
        %3983 = vmatpush2.xpose.msra.mxu0 0.0
        %3984 = vmatprep.subr.mxu0 0.0
        %3985 = vmatpush2.xpose.msra.mxu0 0.0
        %3986 = vmatprep.subr.mxu0 0.0
        %3987 = vmatpush2.xpose.msra.mxu0 0.0
        %3988 = vmatprep.subr.mxu0 0.0
        %3989 = vmatpush2.xpose.msra.mxu0 0.0
        %3990 = vmatprep.subr.mxu0 0.0
        %3991 = vmatpush2.xpose.msra.mxu0 0.0
        %3992 = vmatprep.subr.mxu0 0.0
        %3993 = vmatpush2.xpose.msra.mxu0 0.0
        %3994 = vmatprep.subr.mxu0 0.0
        %3995 = vmatpush2.xpose.msra.mxu0 0.0
        %3996 = vmatprep.subr.mxu0 0.0
        %3997 = vmatpush2.xpose.msra.mxu0 0.0
        %3998 = vmatprep.subr.mxu0 0.0
        %3999 = vmatpush2.xpose.msra.mxu0 0.0
        %4000 = vmatprep.subr.mxu0 0.0
        %4001 = vmatpush2.xpose.msra.mxu0 0.0
        %4002 = vmatprep.subr.mxu0 0.0
        %4003 = vmatpush2.xpose.msra.mxu0 0.0
        %4004 = vmatprep.mubr.f32.mxu0 %v3838
        %4005 = vmatmul.mubr.f32.gmra.mxu0 %v3837
        %v4006 = vpop.f32.mrf.mxu0
        %v4007 = vadd.f32 %v3938, %v4006
        %v4008 = vpop.f32.mrf.mxu0
        %4009 = vmatprep.mubr.f32.mxu0 %v3854
        %4010 = vmatmul.mubr.f32.gmra.mxu0 %v3853
        %v4011 = vpop.f32.mrf.mxu0
        %v4012 = vadd.f32 %v3938, %v4011
        %v4013 = vpop.f32.mrf.mxu0
        %4014 = vdwg.mxu0
        %4015 = vmatprep.subr.mxu0 0.0
        %4016 = vmatpush1.xpose.msra.mxu0 0.0
        %4017 = vmatprep.subr.mxu0 0.0
        %4018 = vmatpush1.xpose.msra.mxu0 0.0
        %4019 = vmatprep.subr.mxu0 0.0
        %4020 = vmatpush1.xpose.msra.mxu0 0.0
        %4021 = vmatprep.subr.mxu0 0.0
        %4022 = vmatpush1.xpose.msra.mxu0 0.0
        %4023 = vmatprep.subr.mxu0 0.0
        %4024 = vmatpush1.xpose.msra.mxu0 0.0
        %4025 = vmatprep.subr.mxu0 0.0
        %4026 = vmatpush1.xpose.msra.mxu0 0.0
        %4027 = vmatprep.subr.mxu0 0.0
        %4028 = vmatpush1.xpose.msra.mxu0 0.0
        %4029 = vmatprep.subr.mxu0 0.0
        %4030 = vmatpush1.xpose.msra.mxu0 0.0
        %4031 = vmatprep.subr.mxu0 0.0
        %4032 = vmatpush1.xpose.msra.mxu0 0.0
        %4033 = vmatprep.subr.mxu0 0.0
        %4034 = vmatpush1.xpose.msra.mxu0 0.0
        %4035 = vmatprep.subr.mxu0 0.0
        %4036 = vmatpush1.xpose.msra.mxu0 0.0
        %4037 = vmatprep.subr.mxu0 0.0
        %4038 = vmatpush1.xpose.msra.mxu0 0.0
        %4039 = vmatprep.subr.mxu0 %v3920
        %4040 = vmatpush1.xpose.msra.mxu0 %v3919
        %4041 = vmatprep.subr.mxu0 %v3904
        %4042 = vmatpush1.xpose.msra.mxu0 %v3903
        %4043 = vmatprep.subr.mxu0 %v3888
        %4044 = vmatpush1.xpose.msra.mxu0 %v3887
        %4045 = vmatprep.subr.mxu0 %v3872
        %4046 = vmatpush1.xpose.msra.mxu0 %v3871
        %4047 = vmatprep.subr.mxu0 0.0
        %4048 = vmatpush2.xpose.msra.mxu0 0.0
        %4049 = vmatprep.subr.mxu0 0.0
        %4050 = vmatpush2.xpose.msra.mxu0 0.0
        %4051 = vmatprep.subr.mxu0 0.0
        %4052 = vmatpush2.xpose.msra.mxu0 0.0
        %4053 = vmatprep.subr.mxu0 0.0
        %4054 = vmatpush2.xpose.msra.mxu0 0.0
        %4055 = vmatprep.subr.mxu0 0.0
        %4056 = vmatpush2.xpose.msra.mxu0 0.0
        %4057 = vmatprep.subr.mxu0 0.0
        %4058 = vmatpush2.xpose.msra.mxu0 0.0
        %4059 = vmatprep.subr.mxu0 0.0
        %4060 = vmatpush2.xpose.msra.mxu0 0.0
        %4061 = vmatprep.subr.mxu0 0.0
        %4062 = vmatpush2.xpose.msra.mxu0 0.0
        %4063 = vmatprep.subr.mxu0 0.0
        %4064 = vmatpush2.xpose.msra.mxu0 0.0
        %4065 = vmatprep.subr.mxu0 0.0
        %4066 = vmatpush2.xpose.msra.mxu0 0.0
        %4067 = vmatprep.subr.mxu0 0.0
        %4068 = vmatpush2.xpose.msra.mxu0 0.0
        %4069 = vmatprep.subr.mxu0 0.0
        %4070 = vmatpush2.xpose.msra.mxu0 0.0
        %4071 = vmatprep.subr.mxu0 0.0
        %4072 = vmatpush2.xpose.msra.mxu0 0.0
        %4073 = vmatprep.subr.mxu0 0.0
        %4074 = vmatpush2.xpose.msra.mxu0 0.0
        %4075 = vmatprep.subr.mxu0 0.0
        %4076 = vmatpush2.xpose.msra.mxu0 0.0
        %4077 = vmatprep.subr.mxu0 0.0
        %4078 = vmatpush2.xpose.msra.mxu0 0.0
        %4079 = vmatprep.mubr.f32.mxu0 %v3840
        %4080 = vmatmul.mubr.f32.gmra.mxu0 %v3839
        %v4081 = vpop.f32.mrf.mxu0
        %v4082 = vadd.f32 %v4007, %v4081
        %v4083 = vpop.f32.mrf.mxu0
        %4084 = vmatprep.mubr.f32.mxu0 %v3856
        %4085 = vmatmul.mubr.f32.gmra.mxu0 %v3855
        %v4086 = vpop.f32.mrf.mxu0
        %v4087 = vadd.f32 %v4012, %v4086
        %v4088 = vpop.f32.mrf.mxu0
        %4089 = vdwg.mxu0
        %4090 = vmatprep.subr.mxu0 0.0
        %4091 = vmatpush1.xpose.msra.mxu0 0.0
        %4092 = vmatprep.subr.mxu0 0.0
        %4093 = vmatpush1.xpose.msra.mxu0 0.0
        %4094 = vmatprep.subr.mxu0 0.0
        %4095 = vmatpush1.xpose.msra.mxu0 0.0
        %4096 = vmatprep.subr.mxu0 0.0
        %4097 = vmatpush1.xpose.msra.mxu0 0.0
        %4098 = vmatprep.subr.mxu0 0.0
        %4099 = vmatpush1.xpose.msra.mxu0 0.0
        %4100 = vmatprep.subr.mxu0 0.0
        %4101 = vmatpush1.xpose.msra.mxu0 0.0
        %4102 = vmatprep.subr.mxu0 0.0
        %4103 = vmatpush1.xpose.msra.mxu0 0.0
        %4104 = vmatprep.subr.mxu0 0.0
        %4105 = vmatpush1.xpose.msra.mxu0 0.0
        %4106 = vmatprep.subr.mxu0 0.0
        %4107 = vmatpush1.xpose.msra.mxu0 0.0
        %4108 = vmatprep.subr.mxu0 0.0
        %4109 = vmatpush1.xpose.msra.mxu0 0.0
        %4110 = vmatprep.subr.mxu0 0.0
        %4111 = vmatpush1.xpose.msra.mxu0 0.0
        %4112 = vmatprep.subr.mxu0 0.0
        %4113 = vmatpush1.xpose.msra.mxu0 0.0
        %4114 = vmatprep.subr.mxu0 %v3922
        %4115 = vmatpush1.xpose.msra.mxu0 %v3921
        %4116 = vmatprep.subr.mxu0 %v3906
        %4117 = vmatpush1.xpose.msra.mxu0 %v3905
        %4118 = vmatprep.subr.mxu0 %v3890
        %4119 = vmatpush1.xpose.msra.mxu0 %v3889
        %4120 = vmatprep.subr.mxu0 %v3874
        %4121 = vmatpush1.xpose.msra.mxu0 %v3873
        %4122 = vmatprep.subr.mxu0 0.0
        %4123 = vmatpush2.xpose.msra.mxu0 0.0
        %4124 = vmatprep.subr.mxu0 0.0
        %4125 = vmatpush2.xpose.msra.mxu0 0.0
        %4126 = vmatprep.subr.mxu0 0.0
        %4127 = vmatpush2.xpose.msra.mxu0 0.0
        %4128 = vmatprep.subr.mxu0 0.0
        %4129 = vmatpush2.xpose.msra.mxu0 0.0
        %4130 = vmatprep.subr.mxu0 0.0
        %4131 = vmatpush2.xpose.msra.mxu0 0.0
        %4132 = vmatprep.subr.mxu0 0.0
        %4133 = vmatpush2.xpose.msra.mxu0 0.0
        %4134 = vmatprep.subr.mxu0 0.0
        %4135 = vmatpush2.xpose.msra.mxu0 0.0
        %4136 = vmatprep.subr.mxu0 0.0
        %4137 = vmatpush2.xpose.msra.mxu0 0.0
        %4138 = vmatprep.subr.mxu0 0.0
        %4139 = vmatpush2.xpose.msra.mxu0 0.0
        %4140 = vmatprep.subr.mxu0 0.0
        %4141 = vmatpush2.xpose.msra.mxu0 0.0
        %4142 = vmatprep.subr.mxu0 0.0
        %4143 = vmatpush2.xpose.msra.mxu0 0.0
        %4144 = vmatprep.subr.mxu0 0.0
        %4145 = vmatpush2.xpose.msra.mxu0 0.0
        %4146 = vmatprep.subr.mxu0 0.0
        %4147 = vmatpush2.xpose.msra.mxu0 0.0
        %4148 = vmatprep.subr.mxu0 0.0
        %4149 = vmatpush2.xpose.msra.mxu0 0.0
        %4150 = vmatprep.subr.mxu0 0.0
        %4151 = vmatpush2.xpose.msra.mxu0 0.0
        %4152 = vmatprep.subr.mxu0 0.0
        %4153 = vmatpush2.xpose.msra.mxu0 0.0
        %4154 = vmatprep.mubr.f32.mxu0 %v3842
        %4155 = vmatmul.mubr.f32.gmra.mxu0 %v3841
        %v4156 = vpop.f32.mrf.mxu0
        %v4157 = vadd.f32 %v4082, %v4156
        %v4158 = vpop.f32.mrf.mxu0
        %4159 = vmatprep.mubr.f32.mxu0 %v3858
        %4160 = vmatmul.mubr.f32.gmra.mxu0 %v3857
        %v4161 = vpop.f32.mrf.mxu0
        %v4162 = vadd.f32 %v4087, %v4161
        %v4163 = vpop.f32.mrf.mxu0
        %4164 = vdwg.mxu0
        %4165 = vmatprep.subr.mxu0 0.0
        %4166 = vmatpush1.xpose.msra.mxu0 0.0
        %4167 = vmatprep.subr.mxu0 0.0
        %4168 = vmatpush1.xpose.msra.mxu0 0.0
        %4169 = vmatprep.subr.mxu0 0.0
        %4170 = vmatpush1.xpose.msra.mxu0 0.0
        %4171 = vmatprep.subr.mxu0 0.0
        %4172 = vmatpush1.xpose.msra.mxu0 0.0
        %4173 = vmatprep.subr.mxu0 0.0
        %4174 = vmatpush1.xpose.msra.mxu0 0.0
        %4175 = vmatprep.subr.mxu0 0.0
        %4176 = vmatpush1.xpose.msra.mxu0 0.0
        %4177 = vmatprep.subr.mxu0 0.0
        %4178 = vmatpush1.xpose.msra.mxu0 0.0
        %4179 = vmatprep.subr.mxu0 0.0
        %4180 = vmatpush1.xpose.msra.mxu0 0.0
        %4181 = vmatprep.subr.mxu0 0.0
        %4182 = vmatpush1.xpose.msra.mxu0 0.0
        %4183 = vmatprep.subr.mxu0 0.0
        %4184 = vmatpush1.xpose.msra.mxu0 0.0
        %4185 = vmatprep.subr.mxu0 0.0
        %4186 = vmatpush1.xpose.msra.mxu0 0.0
        %4187 = vmatprep.subr.mxu0 0.0
        %4188 = vmatpush1.xpose.msra.mxu0 0.0
        %4189 = vmatprep.subr.mxu0 %v3924
        %4190 = vmatpush1.xpose.msra.mxu0 %v3923
        %4191 = vmatprep.subr.mxu0 %v3908
        %4192 = vmatpush1.xpose.msra.mxu0 %v3907
        %4193 = vmatprep.subr.mxu0 %v3892
        %4194 = vmatpush1.xpose.msra.mxu0 %v3891
        %4195 = vmatprep.subr.mxu0 %v3876
        %4196 = vmatpush1.xpose.msra.mxu0 %v3875
        %4197 = vmatprep.subr.mxu0 0.0
        %4198 = vmatpush2.xpose.msra.mxu0 0.0
        %4199 = vmatprep.subr.mxu0 0.0
        %4200 = vmatpush2.xpose.msra.mxu0 0.0
        %4201 = vmatprep.subr.mxu0 0.0
        %4202 = vmatpush2.xpose.msra.mxu0 0.0
        %4203 = vmatprep.subr.mxu0 0.0
        %4204 = vmatpush2.xpose.msra.mxu0 0.0
        %4205 = vmatprep.subr.mxu0 0.0
        %4206 = vmatpush2.xpose.msra.mxu0 0.0
        %4207 = vmatprep.subr.mxu0 0.0
        %4208 = vmatpush2.xpose.msra.mxu0 0.0
        %4209 = vmatprep.subr.mxu0 0.0
        %4210 = vmatpush2.xpose.msra.mxu0 0.0
        %4211 = vmatprep.subr.mxu0 0.0
        %4212 = vmatpush2.xpose.msra.mxu0 0.0
        %4213 = vmatprep.subr.mxu0 0.0
        %4214 = vmatpush2.xpose.msra.mxu0 0.0
        %4215 = vmatprep.subr.mxu0 0.0
        %4216 = vmatpush2.xpose.msra.mxu0 0.0
        %4217 = vmatprep.subr.mxu0 0.0
        %4218 = vmatpush2.xpose.msra.mxu0 0.0
        %4219 = vmatprep.subr.mxu0 0.0
        %4220 = vmatpush2.xpose.msra.mxu0 0.0
        %4221 = vmatprep.subr.mxu0 0.0
        %4222 = vmatpush2.xpose.msra.mxu0 0.0
        %4223 = vmatprep.subr.mxu0 0.0
        %4224 = vmatpush2.xpose.msra.mxu0 0.0
        %4225 = vmatprep.subr.mxu0 0.0
        %4226 = vmatpush2.xpose.msra.mxu0 0.0
        %4227 = vmatprep.subr.mxu0 0.0
        %4228 = vmatpush2.xpose.msra.mxu0 0.0
        %4229 = vmatprep.mubr.f32.mxu0 %v3844
        %4230 = vmatmul.mubr.f32.gmra.mxu0 %v3843
        %v4231 = vpop.f32.mrf.mxu0
        %v4232 = vadd.f32 %v4157, %v4231
        %v4233 = vpop.f32.mrf.mxu0
        %4234 = vmatprep.mubr.f32.mxu0 %v3860
        %4235 = vmatmul.mubr.f32.gmra.mxu0 %v3859
        %v4236 = vpop.f32.mrf.mxu0
        %v4237 = vadd.f32 %v4162, %v4236
        %v4238 = vpop.f32.mrf.mxu0
        %4239 = vdwg.mxu0
        %4240 = vmatprep.subr.mxu0 0.0
        %4241 = vmatpush1.xpose.msra.mxu0 0.0
        %4242 = vmatprep.subr.mxu0 0.0
        %4243 = vmatpush1.xpose.msra.mxu0 0.0
        %4244 = vmatprep.subr.mxu0 0.0
        %4245 = vmatpush1.xpose.msra.mxu0 0.0
        %4246 = vmatprep.subr.mxu0 0.0
        %4247 = vmatpush1.xpose.msra.mxu0 0.0
        %4248 = vmatprep.subr.mxu0 0.0
        %4249 = vmatpush1.xpose.msra.mxu0 0.0
        %4250 = vmatprep.subr.mxu0 0.0
        %4251 = vmatpush1.xpose.msra.mxu0 0.0
        %4252 = vmatprep.subr.mxu0 0.0
        %4253 = vmatpush1.xpose.msra.mxu0 0.0
        %4254 = vmatprep.subr.mxu0 0.0
        %4255 = vmatpush1.xpose.msra.mxu0 0.0
        %4256 = vmatprep.subr.mxu0 0.0
        %4257 = vmatpush1.xpose.msra.mxu0 0.0
        %4258 = vmatprep.subr.mxu0 0.0
        %4259 = vmatpush1.xpose.msra.mxu0 0.0
        %4260 = vmatprep.subr.mxu0 0.0
        %4261 = vmatpush1.xpose.msra.mxu0 0.0
        %4262 = vmatprep.subr.mxu0 0.0
        %4263 = vmatpush1.xpose.msra.mxu0 0.0
        %4264 = vmatprep.subr.mxu0 %v3926
        %4265 = vmatpush1.xpose.msra.mxu0 %v3925
        %4266 = vmatprep.subr.mxu0 %v3910
        %4267 = vmatpush1.xpose.msra.mxu0 %v3909
        %4268 = vmatprep.subr.mxu0 %v3894
        %4269 = vmatpush1.xpose.msra.mxu0 %v3893
        %4270 = vmatprep.subr.mxu0 %v3878
        %4271 = vmatpush1.xpose.msra.mxu0 %v3877
        %4272 = vmatprep.subr.mxu0 0.0
        %4273 = vmatpush2.xpose.msra.mxu0 0.0
        %4274 = vmatprep.subr.mxu0 0.0
        %4275 = vmatpush2.xpose.msra.mxu0 0.0
        %4276 = vmatprep.subr.mxu0 0.0
        %4277 = vmatpush2.xpose.msra.mxu0 0.0
        %4278 = vmatprep.subr.mxu0 0.0
        %4279 = vmatpush2.xpose.msra.mxu0 0.0
        %4280 = vmatprep.subr.mxu0 0.0
        %4281 = vmatpush2.xpose.msra.mxu0 0.0
        %4282 = vmatprep.subr.mxu0 0.0
        %4283 = vmatpush2.xpose.msra.mxu0 0.0
        %4284 = vmatprep.subr.mxu0 0.0
        %4285 = vmatpush2.xpose.msra.mxu0 0.0
        %4286 = vmatprep.subr.mxu0 0.0
        %4287 = vmatpush2.xpose.msra.mxu0 0.0
        %4288 = vmatprep.subr.mxu0 0.0
        %4289 = vmatpush2.xpose.msra.mxu0 0.0
        %4290 = vmatprep.subr.mxu0 0.0
        %4291 = vmatpush2.xpose.msra.mxu0 0.0
        %4292 = vmatprep.subr.mxu0 0.0
        %4293 = vmatpush2.xpose.msra.mxu0 0.0
        %4294 = vmatprep.subr.mxu0 0.0
        %4295 = vmatpush2.xpose.msra.mxu0 0.0
        %4296 = vmatprep.subr.mxu0 0.0
        %4297 = vmatpush2.xpose.msra.mxu0 0.0
        %4298 = vmatprep.subr.mxu0 0.0
        %4299 = vmatpush2.xpose.msra.mxu0 0.0
        %4300 = vmatprep.subr.mxu0 0.0
        %4301 = vmatpush2.xpose.msra.mxu0 0.0
        %4302 = vmatprep.subr.mxu0 0.0
        %4303 = vmatpush2.xpose.msra.mxu0 0.0
        %4304 = vmatprep.mubr.f32.mxu0 %v3846
        %4305 = vmatmul.mubr.f32.gmra.mxu0 %v3845
        %v4306 = vpop.f32.mrf.mxu0
        %v4307 = vadd.f32 %v4232, %v4306
        %v4308 = vpop.f32.mrf.mxu0
        %4309 = vmatprep.mubr.f32.mxu0 %v3862
        %4310 = vmatmul.mubr.f32.gmra.mxu0 %v3861
        %v4311 = vpop.f32.mrf.mxu0
        %v4312 = vadd.f32 %v4237, %v4311
        %v4313 = vpop.f32.mrf.mxu0
        %4314 = vdwg.mxu0
        %4315 = vmatprep.subr.mxu0 0.0
        %4316 = vmatpush1.xpose.msra.mxu0 0.0
        %4317 = vmatprep.subr.mxu0 0.0
        %4318 = vmatpush1.xpose.msra.mxu0 0.0
        %4319 = vmatprep.subr.mxu0 0.0
        %4320 = vmatpush1.xpose.msra.mxu0 0.0
        %4321 = vmatprep.subr.mxu0 0.0
        %4322 = vmatpush1.xpose.msra.mxu0 0.0
        %4323 = vmatprep.subr.mxu0 0.0
        %4324 = vmatpush1.xpose.msra.mxu0 0.0
        %4325 = vmatprep.subr.mxu0 0.0
        %4326 = vmatpush1.xpose.msra.mxu0 0.0
        %4327 = vmatprep.subr.mxu0 0.0
        %4328 = vmatpush1.xpose.msra.mxu0 0.0
        %4329 = vmatprep.subr.mxu0 0.0
        %4330 = vmatpush1.xpose.msra.mxu0 0.0
        %4331 = vmatprep.subr.mxu0 0.0
        %4332 = vmatpush1.xpose.msra.mxu0 0.0
        %4333 = vmatprep.subr.mxu0 0.0
        %4334 = vmatpush1.xpose.msra.mxu0 0.0
        %4335 = vmatprep.subr.mxu0 0.0
        %4336 = vmatpush1.xpose.msra.mxu0 0.0
        %4337 = vmatprep.subr.mxu0 0.0
        %4338 = vmatpush1.xpose.msra.mxu0 0.0
        %4339 = vmatprep.subr.mxu0 %v3928
        %4340 = vmatpush1.xpose.msra.mxu0 %v3927
        %4341 = vmatprep.subr.mxu0 %v3912
        %4342 = vmatpush1.xpose.msra.mxu0 %v3911
        %4343 = vmatprep.subr.mxu0 %v3896
        %4344 = vmatpush1.xpose.msra.mxu0 %v3895
        %4345 = vmatprep.subr.mxu0 %v3880
        %4346 = vmatpush1.xpose.msra.mxu0 %v3879
        %4347 = vmatprep.subr.mxu0 0.0
        %4348 = vmatpush2.xpose.msra.mxu0 0.0
        %4349 = vmatprep.subr.mxu0 0.0
        %4350 = vmatpush2.xpose.msra.mxu0 0.0
        %4351 = vmatprep.subr.mxu0 0.0
        %4352 = vmatpush2.xpose.msra.mxu0 0.0
        %4353 = vmatprep.subr.mxu0 0.0
        %4354 = vmatpush2.xpose.msra.mxu0 0.0
        %4355 = vmatprep.subr.mxu0 0.0
        %4356 = vmatpush2.xpose.msra.mxu0 0.0
        %4357 = vmatprep.subr.mxu0 0.0
        %4358 = vmatpush2.xpose.msra.mxu0 0.0
        %4359 = vmatprep.subr.mxu0 0.0
        %4360 = vmatpush2.xpose.msra.mxu0 0.0
        %4361 = vmatprep.subr.mxu0 0.0
        %4362 = vmatpush2.xpose.msra.mxu0 0.0
        %4363 = vmatprep.subr.mxu0 0.0
        %4364 = vmatpush2.xpose.msra.mxu0 0.0
        %4365 = vmatprep.subr.mxu0 0.0
        %4366 = vmatpush2.xpose.msra.mxu0 0.0
        %4367 = vmatprep.subr.mxu0 0.0
        %4368 = vmatpush2.xpose.msra.mxu0 0.0
        %4369 = vmatprep.subr.mxu0 0.0
        %4370 = vmatpush2.xpose.msra.mxu0 0.0
        %4371 = vmatprep.subr.mxu0 0.0
        %4372 = vmatpush2.xpose.msra.mxu0 0.0
        %4373 = vmatprep.subr.mxu0 0.0
        %4374 = vmatpush2.xpose.msra.mxu0 0.0
        %4375 = vmatprep.subr.mxu0 0.0
        %4376 = vmatpush2.xpose.msra.mxu0 0.0
        %4377 = vmatprep.subr.mxu0 0.0
        %4378 = vmatpush2.xpose.msra.mxu0 0.0
        %4379 = vmatprep.mubr.f32.mxu0 %v3848
        %4380 = vmatmul.mubr.f32.gmra.mxu0 %v3847
        %v4381 = vpop.f32.mrf.mxu0
        %v4382 = vadd.f32 %v4307, %v4381
        %v4383 = vpop.f32.mrf.mxu0
        %4384 = vmatprep.mubr.f32.mxu0 %v3864
        %4385 = vmatmul.mubr.f32.gmra.mxu0 %v3863
        %v4386 = vpop.f32.mrf.mxu0
        %v4387 = vadd.f32 %v4312, %v4386
        %v4388 = vpop.f32.mrf.mxu0
        %4389 = vdwg.mxu0
        %4390 = vmatprep.subr.mxu0 0.0
        %4391 = vmatpush1.xpose.msra.mxu0 0.0
        %4392 = vmatprep.subr.mxu0 0.0
        %4393 = vmatpush1.xpose.msra.mxu0 0.0
        %4394 = vmatprep.subr.mxu0 0.0
        %4395 = vmatpush1.xpose.msra.mxu0 0.0
        %4396 = vmatprep.subr.mxu0 0.0
        %4397 = vmatpush1.xpose.msra.mxu0 0.0
        %4398 = vmatprep.subr.mxu0 0.0
        %4399 = vmatpush1.xpose.msra.mxu0 0.0
        %4400 = vmatprep.subr.mxu0 0.0
        %4401 = vmatpush1.xpose.msra.mxu0 0.0
        %4402 = vmatprep.subr.mxu0 0.0
        %4403 = vmatpush1.xpose.msra.mxu0 0.0
        %4404 = vmatprep.subr.mxu0 0.0
        %4405 = vmatpush1.xpose.msra.mxu0 0.0
        %4406 = vmatprep.subr.mxu0 0.0
        %4407 = vmatpush1.xpose.msra.mxu0 0.0
        %4408 = vmatprep.subr.mxu0 0.0
        %4409 = vmatpush1.xpose.msra.mxu0 0.0
        %4410 = vmatprep.subr.mxu0 0.0
        %4411 = vmatpush1.xpose.msra.mxu0 0.0
        %4412 = vmatprep.subr.mxu0 0.0
        %4413 = vmatpush1.xpose.msra.mxu0 0.0
        %4414 = vmatprep.subr.mxu0 %v3930
        %4415 = vmatpush1.xpose.msra.mxu0 %v3929
        %4416 = vmatprep.subr.mxu0 %v3914
        %4417 = vmatpush1.xpose.msra.mxu0 %v3913
        %4418 = vmatprep.subr.mxu0 %v3898
        %4419 = vmatpush1.xpose.msra.mxu0 %v3897
        %4420 = vmatprep.subr.mxu0 %v3882
        %4421 = vmatpush1.xpose.msra.mxu0 %v3881
        %4422 = vmatprep.subr.mxu0 0.0
        %4423 = vmatpush2.xpose.msra.mxu0 0.0
        %4424 = vmatprep.subr.mxu0 0.0
        %4425 = vmatpush2.xpose.msra.mxu0 0.0
        %4426 = vmatprep.subr.mxu0 0.0
        %4427 = vmatpush2.xpose.msra.mxu0 0.0
        %4428 = vmatprep.subr.mxu0 0.0
        %4429 = vmatpush2.xpose.msra.mxu0 0.0
        %4430 = vmatprep.subr.mxu0 0.0
        %4431 = vmatpush2.xpose.msra.mxu0 0.0
        %4432 = vmatprep.subr.mxu0 0.0
        %4433 = vmatpush2.xpose.msra.mxu0 0.0
        %4434 = vmatprep.subr.mxu0 0.0
        %4435 = vmatpush2.xpose.msra.mxu0 0.0
        %4436 = vmatprep.subr.mxu0 0.0
        %4437 = vmatpush2.xpose.msra.mxu0 0.0
        %4438 = vmatprep.subr.mxu0 0.0
        %4439 = vmatpush2.xpose.msra.mxu0 0.0
        %4440 = vmatprep.subr.mxu0 0.0
        %4441 = vmatpush2.xpose.msra.mxu0 0.0
        %4442 = vmatprep.subr.mxu0 0.0
        %4443 = vmatpush2.xpose.msra.mxu0 0.0
        %4444 = vmatprep.subr.mxu0 0.0
        %4445 = vmatpush2.xpose.msra.mxu0 0.0
        %4446 = vmatprep.subr.mxu0 0.0
        %4447 = vmatpush2.xpose.msra.mxu0 0.0
        %4448 = vmatprep.subr.mxu0 0.0
        %4449 = vmatpush2.xpose.msra.mxu0 0.0
        %4450 = vmatprep.subr.mxu0 0.0
        %4451 = vmatpush2.xpose.msra.mxu0 0.0
        %4452 = vmatprep.subr.mxu0 0.0
        %4453 = vmatpush2.xpose.msra.mxu0 0.0
        %4454 = vmatprep.mubr.f32.mxu0 %v3850
        %4455 = vmatmul.mubr.f32.gmra.mxu0 %v3849
        %v4456 = vpop.f32.mrf.mxu0
        %v4457 = vadd.f32 %v4382, %v4456
        %v4458 = vpop.f32.mrf.mxu0
        %4459 = vmatprep.mubr.f32.mxu0 %v3866
        %4460 = vmatmul.mubr.f32.gmra.mxu0 %v3865
        %v4461 = vpop.f32.mrf.mxu0
        %v4462 = vadd.f32 %v4387, %v4461
        %v4463 = vpop.f32.mrf.mxu0
        %4464 = vdwg.mxu0
        %4465 = vmatprep.subr.mxu0 0.0
        %4466 = vmatpush1.xpose.msra.mxu0 0.0
        %4467 = vmatprep.subr.mxu0 0.0
        %4468 = vmatpush1.xpose.msra.mxu0 0.0
        %4469 = vmatprep.subr.mxu0 0.0
        %4470 = vmatpush1.xpose.msra.mxu0 0.0
        %4471 = vmatprep.subr.mxu0 0.0
        %4472 = vmatpush1.xpose.msra.mxu0 0.0
        %4473 = vmatprep.subr.mxu0 0.0
        %4474 = vmatpush1.xpose.msra.mxu0 0.0
        %4475 = vmatprep.subr.mxu0 0.0
        %4476 = vmatpush1.xpose.msra.mxu0 0.0
        %4477 = vmatprep.subr.mxu0 0.0
        %4478 = vmatpush1.xpose.msra.mxu0 0.0
        %4479 = vmatprep.subr.mxu0 0.0
        %4480 = vmatpush1.xpose.msra.mxu0 0.0
        %4481 = vmatprep.subr.mxu0 0.0
        %4482 = vmatpush1.xpose.msra.mxu0 0.0
        %4483 = vmatprep.subr.mxu0 0.0
        %4484 = vmatpush1.xpose.msra.mxu0 0.0
        %4485 = vmatprep.subr.mxu0 0.0
        %4486 = vmatpush1.xpose.msra.mxu0 0.0
        %4487 = vmatprep.subr.mxu0 0.0
        %4488 = vmatpush1.xpose.msra.mxu0 0.0
        %4489 = vmatprep.subr.mxu0 %v3932
        %4490 = vmatpush1.xpose.msra.mxu0 %v3931
        %4491 = vmatprep.subr.mxu0 %v3916
        %4492 = vmatpush1.xpose.msra.mxu0 %v3915
        %4493 = vmatprep.subr.mxu0 %v3900
        %4494 = vmatpush1.xpose.msra.mxu0 %v3899
        %4495 = vmatprep.subr.mxu0 %v3884
        %4496 = vmatpush1.xpose.msra.mxu0 %v3883
        %4497 = vmatprep.subr.mxu0 0.0
        %4498 = vmatpush2.xpose.msra.mxu0 0.0
        %4499 = vmatprep.subr.mxu0 0.0
        %4500 = vmatpush2.xpose.msra.mxu0 0.0
        %4501 = vmatprep.subr.mxu0 0.0
        %4502 = vmatpush2.xpose.msra.mxu0 0.0
        %4503 = vmatprep.subr.mxu0 0.0
        %4504 = vmatpush2.xpose.msra.mxu0 0.0
        %4505 = vmatprep.subr.mxu0 0.0
        %4506 = vmatpush2.xpose.msra.mxu0 0.0
        %4507 = vmatprep.subr.mxu0 0.0
        %4508 = vmatpush2.xpose.msra.mxu0 0.0
        %4509 = vmatprep.subr.mxu0 0.0
        %4510 = vmatpush2.xpose.msra.mxu0 0.0
        %4511 = vmatprep.subr.mxu0 0.0
        %4512 = vmatpush2.xpose.msra.mxu0 0.0
        %4513 = vmatprep.subr.mxu0 0.0
        %4514 = vmatpush2.xpose.msra.mxu0 0.0
        %4515 = vmatprep.subr.mxu0 0.0
        %4516 = vmatpush2.xpose.msra.mxu0 0.0
        %4517 = vmatprep.subr.mxu0 0.0
        %4518 = vmatpush2.xpose.msra.mxu0 0.0
        %4519 = vmatprep.subr.mxu0 0.0
        %4520 = vmatpush2.xpose.msra.mxu0 0.0
        %4521 = vmatprep.subr.mxu0 0.0
        %4522 = vmatpush2.xpose.msra.mxu0 0.0
        %4523 = vmatprep.subr.mxu0 0.0
        %4524 = vmatpush2.xpose.msra.mxu0 0.0
        %4525 = vmatprep.subr.mxu0 0.0
        %4526 = vmatpush2.xpose.msra.mxu0 0.0
        %4527 = vmatprep.subr.mxu0 0.0
        %4528 = vmatpush2.xpose.msra.mxu0 0.0
        %4529 = vmatprep.mubr.f32.mxu0 %v3852
        %4530 = vmatmul.mubr.f32.gmra.mxu0 %v3851
        %v4531 = vpop.f32.mrf.mxu0
        %v4532 = vadd.f32 %v4457, %v4531
        %v4533 = vpop.f32.mrf.mxu0
        %4534 = vmatprep.mubr.f32.mxu0 %v3868
        %4535 = vmatmul.mubr.f32.gmra.mxu0 %v3867
        %v4536 = vpop.f32.mrf.mxu0
        %v4537 = vadd.f32 %v4462, %v4536
        %v4538 = vpop.f32.mrf.mxu0
        %4539 = vdwg.mxu0
        %v4540 = vadd.f32 %v3065, %v4532
        %v4541 = vadd.f32 %v3066, %v4537
        %v4542 = vld [vmem:[%s1065] sm:$0x1]
        %v4543 = vld [vmem:[%s1073] sm:$0x1]
        %v4544 = vsel %vm1265, %v4540, 0.0
        %4545 = vadd.xlane.f32.xlu0 %v4544
        %v4546 = vpop.xlane.xlu0 %4545
        %v4547 = vsel %vm1265, %v4541, 0.0
        %4548 = vadd.xlane.f32.xlu0 %v4547
        %v4549 = vpop.xlane.xlu0 %4548
        %v4550 = vmul.f32 %v4546, %v2808
        %v4551 = vmul.f32 %v4549, %v2808
        %v4552 = vsub.f32 %v4540, %v4550
        %v4553 = vsub.f32 %v4541, %v4551
        %v4554 = vmul.f32 %v4552, %v4552
        %v4555 = vmul.f32 %v4553, %v4553
        %v4556 = vsel %vm1265, %v4554, 0.0
        %4557 = vadd.xlane.f32.xlu0 %v4556
        %v4558 = vpop.xlane.xlu0 %4557
        %v4559 = vsel %vm1265, %v4555, 0.0
        %4560 = vadd.xlane.f32.xlu0 %v4559
        %v4561 = vpop.xlane.xlu0 %4560
        %v4562 = vmul.f32 %v4558, %v2808
        %v4563 = vmul.f32 %v4561, %v2808
        %v4564 = vadd.f32 %v4562, 1e-05
        %v4565 = vadd.f32 %v4563, 1e-05
        %v4566 = vrsqrt.pop %v4564
        %v4567 = vrsqrt.pop %v4565
        %v4568 = vmul.f32 %v4552, %v4566
        %v4569 = vmul.f32 %v4553, %v4567
        %v4571 = vlaneseq
        %v4572 = vshrl.u32 %v4571, 7
        %v4573 = vsub.s32 0, %v4572
        %v4574 = vrot.slane %v4542, %v4573
        %v4576 = vmul.f32 %v4568, %v4574
        %v4577 = vmul.f32 %v4569, %v4574
        %v4579 = vlaneseq
        %v4580 = vshrl.u32 %v4579, 7
        %v4581 = vsub.s32 0, %v4580
        %v4582 = vrot.slane %v4543, %v4581
        %v4584 = vadd.f32 %v4576, %v4582
        %v4585 = vadd.f32 %v4577, %v4582
        %4586 = vst.msk [vmem:[#allocation2] sm:$0xff] %vm1265, %v4584
        %4587 = vst.msk [vmem:[#allocation2 + $0x8] sm:$0xff] %vm1265, %v4585
        %p4588 = scmp.eq.s32.totalorder %s36, 1
        // Predicated region
        $region185: #{tpu_custom_call.1} parent=107 // pred_check
          %p4589 = pneg %p4588
        $region186: #{tpu_custom_call.1} parent=107 // pred_check_branch
          %4591 = sbr.rel (%p4589) target = $region188
        $region187: #{tpu_custom_call.1} parent=107 // pred_region
          %v4592 = vld [vmem:[%s20] sm:$0xff]
          %v4593 = vld [vmem:[%s20 + $0x8] sm:$0xff]
          %v4594 = vld [vmem:[%s20 + $0x10] sm:$0xff]
          %v4595 = vld [vmem:[%s20 + $0x18] sm:$0xff]
          %v4596 = vld [vmem:[%s21] sm:$0x1]
          %v4598 = vlaneseq
          %v4599 = vshrl.u32 %v4598, 7
          %v4600 = vsub.s32 0, %v4599
          %v4601 = vrot.slane %v4596, %v4600
          %v4604 = vsel %vm1265, %v4584, 0
          %v4607 = vsel %vm1265, %v4585, 0
          %4609 = vmatprep.subr.mxu0 0.0
          %4610 = vmatpush1.msra.mxu0 0.0
          %4611 = vmatprep.subr.mxu0 0.0
          %4612 = vmatpush1.msra.mxu0 0.0
          %4613 = vmatprep.subr.mxu0 0.0
          %4614 = vmatpush1.msra.mxu0 0.0
          %4615 = vmatprep.subr.mxu0 0.0
          %4616 = vmatpush1.msra.mxu0 0.0
          %4617 = vmatprep.subr.mxu0 0.0
          %4618 = vmatpush1.msra.mxu0 0.0
          %4619 = vmatprep.subr.mxu0 0.0
          %4620 = vmatpush1.msra.mxu0 0.0
          %4621 = vmatprep.subr.mxu0 0.0
          %4622 = vmatpush1.msra.mxu0 0.0
          %4623 = vmatprep.subr.mxu0 0.0
          %4624 = vmatpush1.msra.mxu0 0.0
          %4625 = vmatprep.subr.mxu0 0.0
          %4626 = vmatpush1.msra.mxu0 0.0
          %4627 = vmatprep.subr.mxu0 0.0
          %4628 = vmatpush1.msra.mxu0 0.0
          %4629 = vmatprep.subr.mxu0 0.0
          %4630 = vmatpush1.msra.mxu0 0.0
          %4631 = vmatprep.subr.mxu0 0.0
          %4632 = vmatpush1.msra.mxu0 0.0
          %4633 = vmatprep.subr.mxu0 0.0
          %4634 = vmatpush1.msra.mxu0 %v4595
          %4635 = vmatprep.subr.mxu0 0.0
          %4636 = vmatpush1.msra.mxu0 %v4594
          %4637 = vmatprep.subr.mxu0 0.0
          %4638 = vmatpush1.msra.mxu0 %v4593
          %4639 = vmatprep.subr.mxu0 0.0
          %4640 = vmatpush1.msra.mxu0 %v4592
          %4641 = vmatprep.subr.mxu0 0.0
          %4642 = vmatpush2.msra.mxu0 0.0
          %4643 = vmatprep.subr.mxu0 0.0
          %4644 = vmatpush2.msra.mxu0 0.0
          %4645 = vmatprep.subr.mxu0 0.0
          %4646 = vmatpush2.msra.mxu0 0.0
          %4647 = vmatprep.subr.mxu0 0.0
          %4648 = vmatpush2.msra.mxu0 0.0
          %4649 = vmatprep.subr.mxu0 0.0
          %4650 = vmatpush2.msra.mxu0 0.0
          %4651 = vmatprep.subr.mxu0 0.0
          %4652 = vmatpush2.msra.mxu0 0.0
          %4653 = vmatprep.subr.mxu0 0.0
          %4654 = vmatpush2.msra.mxu0 0.0
          %4655 = vmatprep.subr.mxu0 0.0
          %4656 = vmatpush2.msra.mxu0 0.0
          %4657 = vmatprep.subr.mxu0 0.0
          %4658 = vmatpush2.msra.mxu0 0.0
          %4659 = vmatprep.subr.mxu0 0.0
          %4660 = vmatpush2.msra.mxu0 0.0
          %4661 = vmatprep.subr.mxu0 0.0
          %4662 = vmatpush2.msra.mxu0 0.0
          %4663 = vmatprep.subr.mxu0 0.0
          %4664 = vmatpush2.msra.mxu0 0.0
          %4665 = vmatprep.subr.mxu0 0.0
          %4666 = vmatpush2.msra.mxu0 0.0
          %4667 = vmatprep.subr.mxu0 0.0
          %4668 = vmatpush2.msra.mxu0 0.0
          %4669 = vmatprep.subr.mxu0 0.0
          %4670 = vmatpush2.msra.mxu0 0.0
          %4671 = vmatprep.subr.mxu0 0.0
          %4672 = vmatpush2.msra.mxu0 0.0
          %4673 = vmatprep.mubr.f32.mxu0 0.0
          %4674 = vmatmul.mubr.f32.gmra.mxu0 %v4604
          %v4675 = vpop.f32.mrf.mxu0
          %v4676 = vadd.f32 %v4601, %v4675
          %v4677 = vpop.f32.mrf.mxu0
          %4678 = vmatprep.mubr.f32.mxu0 0.0
          %4679 = vmatmul.mubr.f32.gmra.mxu0 %v4607
          %v4680 = vpop.f32.mrf.mxu0
          %v4681 = vadd.f32 %v4601, %v4680
          %v4682 = vpop.f32.mrf.mxu0
          %4683 = vdwg.mxu0
          %vm4684 = vcmask 523264
          %4685 = vst.msk [vmem:[#allocation24] sm:$0xff] %vm4684, %v4676
          %4686 = vst.msk [vmem:[#allocation24 + $0x8] sm:$0xff] %vm4684, %v4681
        $region188: #{tpu_custom_call.1} parent=107 // pred_fallthru
          _
        // Predicated region
        $region189: #{tpu_custom_call.1} parent=107 // pred_check
          %p4687 = pneg %p601
        $region190: #{tpu_custom_call.1} parent=107 // pred_check_branch
          %4689 = sbr.rel (%p4687) target = $region192
        $region191: #{tpu_custom_call.1} parent=107 // pred_region
          %s4691 = ssub.s32 256, 256
          %4692 = vsyncadd [#allocation5], %s4691
          %s4693 = sshll.u32 [#allocation24], 4
          %s4694 = int_to_ptr.vmem [resolvable:$true] %s4693
          %4699 = dma.vmem_to_hbm [thread:$0]  %s4694, 256, %s22, [#allocation5], 128, 128, 8
        $region192: #{tpu_custom_call.1} parent=107 // pred_fallthru
          _
        // Predicated region
        $region193: #{tpu_custom_call.1} parent=107 // pred_check
          %p4700 = pneg %p601
        $region194: #{tpu_custom_call.1} parent=107 // pred_check_branch
          %4702 = sbr.rel (%p4700) target = $region196
        $region195: #{tpu_custom_call.1} parent=107 // pred_region
          %4703 = dma.done [#allocation5], 256
        $region196: #{tpu_custom_call.1} parent=107 // pred_fallthru
          _
      $region108: #{tpu_custom_call.1} parent=5 // pred_fallthru
        _
      %p4704 = scmp.le.s32.totalorder 2, %s31
      // Predicated region
      $region197: #{tpu_custom_call.1} parent=5 // pred_check
        %p4705 = pneg %p4704
      $region198: #{tpu_custom_call.1} parent=5 // pred_check_branch
        %4707 = sbr.rel (%p4705) target = $region200
      $region199: #{tpu_custom_call.1} parent=5 // pred_region
        %s4708 = ssub.s32 %s31, 2
      $region200: #{tpu_custom_call.1} parent=5 // pred_fallthru
        _
    $region6: #{tpu_custom_call.1} parent=1 // loop_footer
      %s35 = sadd.s32 1, %s31
    $region7: #{tpu_custom_call.1} parent=1 // loop_footer_branch
      %30 = sbr.rel target = $region3
    $region8: #{tpu_custom_call.1} parent=1 // loop_exit
      _
    %4709 = vsyncpa [#allocation4], 1
    %s4710 = scalar_lea.sflag [#allocation4], 1
    %4711 = vsyncpa %s4710, 1
    %4712 = vsyncpa [#allocation7], 1
    %4713 = vsyncpa [#allocation5], 1
    %s4714 = scalar_lea.sflag [#allocation5], 1
    %4715 = vsyncpa %s4714, 1

</llo_original>
